<compile_context>
chip_gen: v7x
topology: tpu7x:2x2x1
jax: 0.10.0
libtpu: 0.0.40
codegen_flags: <defaults>
</compile_context>

<pallas_src>
import math
import functools

import jax
import jax.numpy as jnp
from jax.experimental import pallas as pl
from jax.experimental.pallas import tpu as pltpu

# ----------------------- model config (small, BERT-shaped) -----------------
B, S = 2, 8            # batch, sequence length
H = 128                # hidden size (stands in for 768)
NH, DH = 4, 32         # heads, head dim
FFN = 256              # intermediate size
LAYERS = 2
VOCAB, MAX_POS, TYPES = 100, 16, 2
CLASSES = 14           # nn.Linear(768, 14) -> (H, 14)
CLS_PAD = 128          # classifier padded to a full lane tile

_VMEM = pl.BlockSpec(memory_space=pltpu.MemorySpace.VMEM)


# ----------------------------- fused Pallas kernel ---------------------------
def _bert_classify_kernel(
    x_ref, mask_ref,                       # embeddings (B*S, H) f32, mask (B*S, B*S) f32
    emb_g_ref, emb_b_ref,                  # embedding LayerNorm (f32)
    wqkv_ref, bqkv_ref, wo_ref, bo_ref,    # per-layer attention weights (bf16 W, f32 b)
    ln1_g_ref, ln1_b_ref,
    w1_ref, b1_ref, w2_ref, b2_ref,        # per-layer FFN weights (bf16 W, f32 b)
    ln2_g_ref, ln2_b_ref,
    wp_ref, bp_ref, wc_ref, bc_ref,        # pooler + classifier (padded to 128 cols)
    o_ref,                                 # padded logits (B, 128) f32
):
    def layernorm(v, g, b):
        mu = jnp.mean(v, axis=-1, keepdims=True)
        var = jnp.mean(jnp.square(v - mu), axis=-1, keepdims=True)
        return (v - mu) * jax.lax.rsqrt(var + 1e-12) * g + b

    # Embedding LayerNorm (f32).
    x = layernorm(x_ref[...], emb_g_ref[...], emb_b_ref[...])        # (B*S, H) f32
    mask = mask_ref[...]                                             # (B*S, B*S) f32
    # (1/sqrt(DH) is folded into the Q weights at init time.)

    for li in range(LAYERS):                      # static loop, weights stay in VMEM
        # ---- fused QKV projection: one bf16 (B*S, H) @ (H, 3H) MXU matmul ----
        qkv = (jnp.dot(x.astype(jnp.bfloat16), wqkv_ref[li],
                       preferred_element_type=jnp.float32)
               + bqkv_ref[li])                                       # (B*S, 3H) f32
        qkv_bf = qkv.astype(jnp.bfloat16)

        # ---- attention: all batches at once per head (block-diag mask) ----
        heads = []
        for h in range(NH):
            qh = qkv_bf[:, h * DH:(h + 1) * DH]                      # (B*S, DH)
            kh = qkv_bf[:, H + h * DH:H + (h + 1) * DH]              # (B*S, DH)
            vh = qkv_bf[:, 2 * H + h * DH:2 * H + (h + 1) * DH]      # (B*S, DH)
            s = jax.lax.dot_general(                                 # q @ k^T
                qh, kh, (((1,), (1,)), ((), ())),
                preferred_element_type=jnp.float32)                  # (B*S, B*S) f32
            s = s + mask                         # padding bias + cross-batch -1e9
            s = s - jnp.max(s, axis=-1, keepdims=True)
            p = jnp.exp(s)
            # TODO(synk): approx reciprocal gives ~1e-3 rel. error in attention
            # probabilities; use an exact divide for bit-parity with PyTorch.
            p = p * pl.reciprocal(jnp.sum(p, axis=-1, keepdims=True),
                                  approx=True)
            heads.append(jnp.dot(p.astype(jnp.bfloat16), vh,
                                 preferred_element_type=jnp.float32))  # (B*S, DH)
        ctx = jnp.concatenate(heads, axis=1)                          # (B*S, H) f32

        # ---- attention output projection + residual + LayerNorm ----
        attn_out = (jnp.dot(ctx.astype(jnp.bfloat16), wo_ref[li],
                            preferred_element_type=jnp.float32) + bo_ref[li])
        x = layernorm(attn_out + x, ln1_g_ref[li], ln1_b_ref[li])

        # ---- FFN (GELU) + residual + LayerNorm ----
        # TODO(synk): PyTorch/HF BERT uses exact erf GELU; tanh approximation
        # is used here (tiny numeric divergence).
        hmid = (jnp.dot(x.astype(jnp.bfloat16), w1_ref[li],
                        preferred_element_type=jnp.float32) + b1_ref[li])
        hmid = jax.nn.gelu(hmid, approximate=True)
        ffn = (jnp.dot(hmid.astype(jnp.bfloat16), w2_ref[li],
                       preferred_element_type=jnp.float32) + b2_ref[li])
        x = layernorm(ffn + x, ln2_g_ref[li], ln2_b_ref[li])

    # ---- pooler + classifier on the [CLS] rows (row b*S of x) ----
    # One-hot selection matmul keeps everything lane-dense (exact in f32).
    col = jax.lax.broadcasted_iota(jnp.int32, (B, B * S), 1)
    row = jax.lax.broadcasted_iota(jnp.int32, (B, B * S), 0)
    sel = (col == row * S).astype(jnp.float32)                       # (B, B*S)
    cls = jnp.dot(sel, x, preferred_element_type=jnp.float32)        # (B, H) f32

    pooled = jnp.tanh(
        jnp.dot(cls.astype(jnp.bfloat16), wp_ref[...],
                preferred_element_type=jnp.float32) + bp_ref[...])
    # TODO(synk): nn.Dropout(0.5) in training mode would need pltpu PRNG
    # masking; here it is the standard eval-mode identity.
    logits = (jnp.dot(pooled.astype(jnp.bfloat16), wc_ref[...],
                      preferred_element_type=jnp.float32) + bc_ref[...])
    o_ref[...] = logits.astype(o_ref.dtype)                          # (B, 128)


# ----------------------------- parameters -----------------------------------
def init_params(key):
    def dense(k, fan_in, fan_out):
        return (0.02 * jax.random.normal(k, (fan_in, fan_out), jnp.float32),
                jnp.zeros((fan_out,), jnp.float32))

    bf16 = jnp.bfloat16
    keys = jax.random.split(key, 5 + LAYERS)
    params = {
        "word_emb": 0.02 * jax.random.normal(keys[0], (VOCAB, H), jnp.float32),
        "pos_emb": 0.02 * jax.random.normal(keys[1], (MAX_POS, H), jnp.float32),
        "type_emb": 0.02 * jax.random.normal(keys[2], (TYPES, H), jnp.float32),
        "emb_ln_g": jnp.ones((1, H), jnp.float32),
        "emb_ln_b": jnp.zeros((1, H), jnp.float32),
    }
    wp, bp = dense(keys[3], H, H)               # pooler
    wc, bc = dense(keys[4], H, CLASSES)         # self.linear (768 -> 14)
    params["wp"], params["bp"] = wp.astype(bf16), bp.reshape(1, H)
    # Pad classifier to a full 128-lane tile (lane-dense output store).
    wc_pad = jnp.zeros((H, CLS_PAD), jnp.float32).at[:, :CLASSES].set(wc)
    bc_pad = jnp.zeros((1, CLS_PAD), jnp.float32).at[:, :CLASSES].set(bc)
    params["wc"], params["bc"] = wc_pad.astype(bf16), bc_pad

    inv_scale = 1.0 / math.sqrt(DH)             # fold 1/sqrt(DH) into Q proj
    wqkv, bqkv, wo, bo = [], [], [], []
    w1, b1, w2, b2 = [], [], [], []
    for li in range(LAYERS):
        lk = jax.random.split(keys[5 + li], 6)
        wq, bq_ = dense(lk[0], H, H)
        wq, bq_ = wq * inv_scale, bq_ * inv_scale
        wk, bk_ = dense(lk[1], H, H)
        wv, bv_ = dense(lk[2], H, H)
        wqkv.append(jnp.concatenate([wq, wk, wv], axis=1))          # (H, 3H)
        bqkv.append(jnp.concatenate([bq_, bk_, bv_]).reshape(1, 3 * H))
        w, b_ = dense(lk[3], H, H);   wo.append(w); bo.append(b_.reshape(1, H))
        w, b_ = dense(lk[4], H, FFN); w1.append(w); b1.append(b_.reshape(1, FFN))
        w, b_ = dense(lk[5], FFN, H); w2.append(w); b2.append(b_.reshape(1, H))

    params["layers"] = {
        "wqkv": jnp.stack(wqkv).astype(bf16), "bqkv": jnp.stack(bqkv),
        "wo": jnp.stack(wo).astype(bf16), "bo": jnp.stack(bo),
        "w1": jnp.stack(w1).astype(bf16), "b1": jnp.stack(b1),
        "w2": jnp.stack(w2).astype(bf16), "b2": jnp.stack(b2),
        "ln1_g": jnp.ones((LAYERS, 1, H), jnp.float32),
        "ln1_b": jnp.zeros((LAYERS, 1, H), jnp.float32),
        "ln2_g": jnp.ones((LAYERS, 1, H), jnp.float32),
        "ln2_b": jnp.zeros((LAYERS, 1, H), jnp.float32),
    }
    return params


# ----------------------------- forward pass ----------------------------------
def bert_classify_forward(params, token_ids, attn_masks, token_type_ids):
    Bq, Sq = token_ids.shape
    # Embedding gathers are plain-JAX glue; everything else is the fused kernel.
    word = jnp.take(params["word_emb"], token_ids, axis=0)
    pos = params["pos_emb"][:Sq][None, :, :]
    typ = jnp.take(params["type_emb"], token_type_ids, axis=0)
    x2 = (word + pos + typ).reshape(Bq * Sq, H).astype(jnp.float32)

    # One (B*S, B*S) additive mask folding the HF padding bias and the
    # cross-batch block-diagonal mask (so all batches share one score tile).
    key_bias = ((1.0 - attn_masks.astype(jnp.float32)) * -10000.0).reshape(-1)
    batch_id = jnp.repeat(jnp.arange(Bq), Sq)                       # (B*S,)
    same = batch_id[:, None] == batch_id[None, :]
    mask = jnp.where(same, key_bias[None, :], -1e9).astype(jnp.float32)

    L = params["layers"]
    logits_pad = pl.pallas_call(
        _bert_classify_kernel,
        out_shape=jax.ShapeDtypeStruct((Bq, CLS_PAD), jnp.float32),
        in_specs=[_VMEM] * 20,
        out_specs=_VMEM,
    )(x2, mask,
      params["emb_ln_g"], params["emb_ln_b"],
      L["wqkv"], L["bqkv"], L["wo"], L["bo"],
      L["ln1_g"], L["ln1_b"],
      L["w1"], L["b1"], L["w2"], L["b2"],
      L["ln2_g"], L["ln2_b"],
      params["wp"], params["bp"], params["wc"], params["bc"])
    return logits_pad[:, :CLASSES]


# ----------------------------------- main ------------------------------------
if __name__ == "__main__":
    key = jax.random.PRNGKey(0)
    pkey, ikey, mkey, tkey = jax.random.split(key, 4)

    params = init_params(pkey)
    token_ids = jax.random.randint(ikey, (B, S), 0, VOCAB, dtype=jnp.int32)
    # mask: keep first 6 positions, pad last 2 of batch element 1
    attn_masks = jnp.ones((B, S), jnp.int32).at[1, 6:].set(0)
    token_type_ids = jnp.zeros((B, S), jnp.int32).at[:, S // 2:].set(1)

    fwd = jax.jit(functools.partial(bert_classify_forward, params))
    logits = fwd(token_ids, attn_masks, token_type_ids)
    jax.block_until_ready(logits)
    assert logits.shape == (B, CLASSES)
    print("KERNEL_OK")
</pallas_src>

<mosaic_0001>
module attributes {stable_mosaic.version = 11 : i64} {
  func.func @_bert_classify_kernel(%arg0: memref<16x128xf32, #tpu.memory_space<vmem>>, %arg1: memref<16x16xf32, #tpu.memory_space<vmem>>, %arg2: memref<1x128xf32, #tpu.memory_space<vmem>>, %arg3: memref<1x128xf32, #tpu.memory_space<vmem>>, %arg4: memref<2x128x384xbf16, #tpu.memory_space<vmem>>, %arg5: memref<2x1x384xf32, #tpu.memory_space<vmem>>, %arg6: memref<2x128x128xbf16, #tpu.memory_space<vmem>>, %arg7: memref<2x1x128xf32, #tpu.memory_space<vmem>>, %arg8: memref<2x1x128xf32, #tpu.memory_space<vmem>>, %arg9: memref<2x1x128xf32, #tpu.memory_space<vmem>>, %arg10: memref<2x128x256xbf16, #tpu.memory_space<vmem>>, %arg11: memref<2x1x256xf32, #tpu.memory_space<vmem>>, %arg12: memref<2x256x128xbf16, #tpu.memory_space<vmem>>, %arg13: memref<2x1x128xf32, #tpu.memory_space<vmem>>, %arg14: memref<2x1x128xf32, #tpu.memory_space<vmem>>, %arg15: memref<2x1x128xf32, #tpu.memory_space<vmem>>, %arg16: memref<128x128xbf16, #tpu.memory_space<vmem>>, %arg17: memref<1x128xf32, #tpu.memory_space<vmem>>, %arg18: memref<128x128xbf16, #tpu.memory_space<vmem>>, %arg19: memref<1x128xf32, #tpu.memory_space<vmem>>, %arg20: memref<2x128xf32, #tpu.memory_space<vmem>>) attributes {dimension_semantics = [], scalar_prefetch = 0 : i64, scratch_operands = 0 : i64, tpu.core_type = #tpu.core_type<tc>} {
    %c0 = arith.constant 0 : index
    %c0_0 = arith.constant 0 : index
    %0 = vector.load %arg0[%c0, %c0_0] : memref<16x128xf32, #tpu.memory_space<vmem>>, vector<16x128xf32>
    %c0_1 = arith.constant 0 : index
    %c0_2 = arith.constant 0 : index
    %1 = vector.load %arg2[%c0_1, %c0_2] : memref<1x128xf32, #tpu.memory_space<vmem>>, vector<1x128xf32>
    %c0_3 = arith.constant 0 : index
    %c0_4 = arith.constant 0 : index
    %2 = vector.load %arg3[%c0_3, %c0_4] : memref<1x128xf32, #tpu.memory_space<vmem>>, vector<1x128xf32>
    %cst = arith.constant dense<0.000000e+00> : vector<16xf32>
    %3 = vector.multi_reduction <add>, %0, %cst [1] : vector<16x128xf32> to vector<16xf32>
    %4 = vector.shape_cast %3 : vector<16xf32> to vector<16x1xf32>
    %cst_5 = arith.constant 1.280000e+02 : f32
    %5 = vector.broadcast %cst_5 : f32 to vector<16x1xf32>
    %6 = arith.divf %4, %5 : vector<16x1xf32>
    %7 = vector.broadcast %6 : vector<16x1xf32> to vector<16x128xf32>
    %8 = arith.subf %0, %7 : vector<16x128xf32>
    %9 = arith.mulf %8, %8 : vector<16x128xf32>
    %cst_6 = arith.constant dense<0.000000e+00> : vector<16xf32>
    %10 = vector.multi_reduction <add>, %9, %cst_6 [1] : vector<16x128xf32> to vector<16xf32>
    %11 = vector.shape_cast %10 : vector<16xf32> to vector<16x1xf32>
    %cst_7 = arith.constant 1.280000e+02 : f32
    %12 = vector.broadcast %cst_7 : f32 to vector<16x1xf32>
    %13 = arith.divf %11, %12 : vector<16x1xf32>
    %14 = vector.broadcast %6 : vector<16x1xf32> to vector<16x128xf32>
    %15 = arith.subf %0, %14 : vector<16x128xf32>
    %cst_8 = arith.constant 9.99999996E-13 : f32
    %16 = vector.broadcast %cst_8 : f32 to vector<16x1xf32>
    %17 = arith.addf %13, %16 : vector<16x1xf32>
    %18 = math.rsqrt %17 : vector<16x1xf32>
    %19 = vector.broadcast %18 : vector<16x1xf32> to vector<16x128xf32>
    %20 = arith.mulf %15, %19 : vector<16x128xf32>
    %21 = vector.broadcast %1 : vector<1x128xf32> to vector<16x128xf32>
    %22 = arith.mulf %20, %21 : vector<16x128xf32>
    %23 = vector.broadcast %2 : vector<1x128xf32> to vector<16x128xf32>
    %24 = arith.addf %22, %23 : vector<16x128xf32>
    %c0_9 = arith.constant 0 : index
    %c0_10 = arith.constant 0 : index
    %25 = vector.load %arg1[%c0_9, %c0_10] : memref<16x16xf32, #tpu.memory_space<vmem>>, vector<16x16xf32>
    %26 = arith.truncf %24 : vector<16x128xf32> to vector<16x128xbf16>
    %c0_11 = arith.constant 0 : index
    %c0_12 = arith.constant 0 : index
    %c0_13 = arith.constant 0 : index
    %27 = vector.load %arg4[%c0_11, %c0_12, %c0_13] : memref<2x128x384xbf16, #tpu.memory_space<vmem>>, vector<1x128x384xbf16>
    %28 = vector.shape_cast %27 : vector<1x128x384xbf16> to vector<128x384xbf16>
    %cst_14 = arith.constant dense<0.000000e+00> : vector<16x384xf32>
    %29 = tpu.matmul %26, %28, %cst_14 {dimension_numbers = #tpu.dot_dimension_numbers<[1], [0], [0], [1], [0, 0, 1, 1], [], []>} : vector<16x128xbf16>, vector<128x384xbf16>, vector<16x384xf32> -> vector<16x384xf32>
    %c0_15 = arith.constant 0 : index
    %c0_16 = arith.constant 0 : index
    %c0_17 = arith.constant 0 : index
    %30 = vector.load %arg5[%c0_15, %c0_16, %c0_17] : memref<2x1x384xf32, #tpu.memory_space<vmem>>, vector<1x1x384xf32>
    %31 = vector.shape_cast %30 : vector<1x1x384xf32> to vector<1x384xf32>
    %32 = vector.broadcast %31 : vector<1x384xf32> to vector<16x384xf32>
    %33 = arith.addf %29, %32 : vector<16x384xf32>
    %34 = arith.truncf %33 : vector<16x384xf32> to vector<16x384xbf16>
    %35 = vector.extract_strided_slice %34 {offsets = [0, 0], sizes = [16, 32], strides = [1, 1]} : vector<16x384xbf16> to vector<16x32xbf16>
    %36 = vector.extract_strided_slice %34 {offsets = [0, 128], sizes = [16, 32], strides = [1, 1]} : vector<16x384xbf16> to vector<16x32xbf16>
    %37 = vector.extract_strided_slice %34 {offsets = [0, 256], sizes = [16, 32], strides = [1, 1]} : vector<16x384xbf16> to vector<16x32xbf16>
    %cst_18 = arith.constant dense<0.000000e+00> : vector<16x16xf32>
    %38 = tpu.matmul %35, %36, %cst_18 {dimension_numbers = #tpu.dot_dimension_numbers<[1], [1], [0], [0], [0, 0, 1, 0], [], []>} : vector<16x32xbf16>, vector<16x32xbf16>, vector<16x16xf32> -> vector<16x16xf32>
    %39 = arith.addf %38, %25 : vector<16x16xf32>
    %cst_19 = arith.constant dense<0xFF800000> : vector<16xf32>
    %40 = vector.multi_reduction <maximumf>, %39, %cst_19 [1] : vector<16x16xf32> to vector<16xf32>
    %41 = vector.shape_cast %40 : vector<16xf32> to vector<16x1xf32>
    %42 = vector.broadcast %41 : vector<16x1xf32> to vector<16x16xf32>
    %43 = arith.subf %39, %42 : vector<16x16xf32>
    %44 = math.exp %43 : vector<16x16xf32>
    %cst_20 = arith.constant dense<0.000000e+00> : vector<16xf32>
    %45 = vector.multi_reduction <add>, %44, %cst_20 [1] : vector<16x16xf32> to vector<16xf32>
    %46 = vector.shape_cast %45 : vector<16xf32> to vector<16x1xf32>
    %47 = tpu.reciprocal %46 {approx = true} : vector<16x1xf32> -> vector<16x1xf32>
    %48 = vector.broadcast %47 : vector<16x1xf32> to vector<16x16xf32>
    %49 = arith.mulf %44, %48 : vector<16x16xf32>
    %50 = arith.truncf %49 : vector<16x16xf32> to vector<16x16xbf16>
    %cst_21 = arith.constant dense<0.000000e+00> : vector<16x32xf32>
    %51 = tpu.matmul %50, %37, %cst_21 {dimension_numbers = #tpu.dot_dimension_numbers<[1], [0], [0], [1], [0, 0, 1, 1], [], []>} : vector<16x16xbf16>, vector<16x32xbf16>, vector<16x32xf32> -> vector<16x32xf32>
    %52 = vector.extract_strided_slice %34 {offsets = [0, 32], sizes = [16, 32], strides = [1, 1]} : vector<16x384xbf16> to vector<16x32xbf16>
    %53 = vector.extract_strided_slice %34 {offsets = [0, 160], sizes = [16, 32], strides = [1, 1]} : vector<16x384xbf16> to vector<16x32xbf16>
    %54 = vector.extract_strided_slice %34 {offsets = [0, 288], sizes = [16, 32], strides = [1, 1]} : vector<16x384xbf16> to vector<16x32xbf16>
    %cst_22 = arith.constant dense<0.000000e+00> : vector<16x16xf32>
    %55 = tpu.matmul %52, %53, %cst_22 {dimension_numbers = #tpu.dot_dimension_numbers<[1], [1], [0], [0], [0, 0, 1, 0], [], []>} : vector<16x32xbf16>, vector<16x32xbf16>, vector<16x16xf32> -> vector<16x16xf32>
    %56 = arith.addf %55, %25 : vector<16x16xf32>
    %cst_23 = arith.constant dense<0xFF800000> : vector<16xf32>
    %57 = vector.multi_reduction <maximumf>, %56, %cst_23 [1] : vector<16x16xf32> to vector<16xf32>
    %58 = vector.shape_cast %57 : vector<16xf32> to vector<16x1xf32>
    %59 = vector.broadcast %58 : vector<16x1xf32> to vector<16x16xf32>
    %60 = arith.subf %56, %59 : vector<16x16xf32>
    %61 = math.exp %60 : vector<16x16xf32>
    %cst_24 = arith.constant dense<0.000000e+00> : vector<16xf32>
    %62 = vector.multi_reduction <add>, %61, %cst_24 [1] : vector<16x16xf32> to vector<16xf32>
    %63 = vector.shape_cast %62 : vector<16xf32> to vector<16x1xf32>
    %64 = tpu.reciprocal %63 {approx = true} : vector<16x1xf32> -> vector<16x1xf32>
    %65 = vector.broadcast %64 : vector<16x1xf32> to vector<16x16xf32>
    %66 = arith.mulf %61, %65 : vector<16x16xf32>
    %67 = arith.truncf %66 : vector<16x16xf32> to vector<16x16xbf16>
    %cst_25 = arith.constant dense<0.000000e+00> : vector<16x32xf32>
    %68 = tpu.matmul %67, %54, %cst_25 {dimension_numbers = #tpu.dot_dimension_numbers<[1], [0], [0], [1], [0, 0, 1, 1], [], []>} : vector<16x16xbf16>, vector<16x32xbf16>, vector<16x32xf32> -> vector<16x32xf32>
    %69 = vector.extract_strided_slice %34 {offsets = [0, 64], sizes = [16, 32], strides = [1, 1]} : vector<16x384xbf16> to vector<16x32xbf16>
    %70 = vector.extract_strided_slice %34 {offsets = [0, 192], sizes = [16, 32], strides = [1, 1]} : vector<16x384xbf16> to vector<16x32xbf16>
    %71 = vector.extract_strided_slice %34 {offsets = [0, 320], sizes = [16, 32], strides = [1, 1]} : vector<16x384xbf16> to vector<16x32xbf16>
    %cst_26 = arith.constant dense<0.000000e+00> : vector<16x16xf32>
    %72 = tpu.matmul %69, %70, %cst_26 {dimension_numbers = #tpu.dot_dimension_numbers<[1], [1], [0], [0], [0, 0, 1, 0], [], []>} : vector<16x32xbf16>, vector<16x32xbf16>, vector<16x16xf32> -> vector<16x16xf32>
    %73 = arith.addf %72, %25 : vector<16x16xf32>
    %cst_27 = arith.constant dense<0xFF800000> : vector<16xf32>
    %74 = vector.multi_reduction <maximumf>, %73, %cst_27 [1] : vector<16x16xf32> to vector<16xf32>
    %75 = vector.shape_cast %74 : vector<16xf32> to vector<16x1xf32>
    %76 = vector.broadcast %75 : vector<16x1xf32> to vector<16x16xf32>
    %77 = arith.subf %73, %76 : vector<16x16xf32>
    %78 = math.exp %77 : vector<16x16xf32>
    %cst_28 = arith.constant dense<0.000000e+00> : vector<16xf32>
    %79 = vector.multi_reduction <add>, %78, %cst_28 [1] : vector<16x16xf32> to vector<16xf32>
    %80 = vector.shape_cast %79 : vector<16xf32> to vector<16x1xf32>
    %81 = tpu.reciprocal %80 {approx = true} : vector<16x1xf32> -> vector<16x1xf32>
    %82 = vector.broadcast %81 : vector<16x1xf32> to vector<16x16xf32>
    %83 = arith.mulf %78, %82 : vector<16x16xf32>
    %84 = arith.truncf %83 : vector<16x16xf32> to vector<16x16xbf16>
    %cst_29 = arith.constant dense<0.000000e+00> : vector<16x32xf32>
    %85 = tpu.matmul %84, %71, %cst_29 {dimension_numbers = #tpu.dot_dimension_numbers<[1], [0], [0], [1], [0, 0, 1, 1], [], []>} : vector<16x16xbf16>, vector<16x32xbf16>, vector<16x32xf32> -> vector<16x32xf32>
    %86 = vector.extract_strided_slice %34 {offsets = [0, 96], sizes = [16, 32], strides = [1, 1]} : vector<16x384xbf16> to vector<16x32xbf16>
    %87 = vector.extract_strided_slice %34 {offsets = [0, 224], sizes = [16, 32], strides = [1, 1]} : vector<16x384xbf16> to vector<16x32xbf16>
    %88 = vector.extract_strided_slice %34 {offsets = [0, 352], sizes = [16, 32], strides = [1, 1]} : vector<16x384xbf16> to vector<16x32xbf16>
    %cst_30 = arith.constant dense<0.000000e+00> : vector<16x16xf32>
    %89 = tpu.matmul %86, %87, %cst_30 {dimension_numbers = #tpu.dot_dimension_numbers<[1], [1], [0], [0], [0, 0, 1, 0], [], []>} : vector<16x32xbf16>, vector<16x32xbf16>, vector<16x16xf32> -> vector<16x16xf32>
    %90 = arith.addf %89, %25 : vector<16x16xf32>
    %cst_31 = arith.constant dense<0xFF800000> : vector<16xf32>
    %91 = vector.multi_reduction <maximumf>, %90, %cst_31 [1] : vector<16x16xf32> to vector<16xf32>
    %92 = vector.shape_cast %91 : vector<16xf32> to vector<16x1xf32>
    %93 = vector.broadcast %92 : vector<16x1xf32> to vector<16x16xf32>
    %94 = arith.subf %90, %93 : vector<16x16xf32>
    %95 = math.exp %94 : vector<16x16xf32>
    %cst_32 = arith.constant dense<0.000000e+00> : vector<16xf32>
    %96 = vector.multi_reduction <add>, %95, %cst_32 [1] : vector<16x16xf32> to vector<16xf32>
    %97 = vector.shape_cast %96 : vector<16xf32> to vector<16x1xf32>
    %98 = tpu.reciprocal %97 {approx = true} : vector<16x1xf32> -> vector<16x1xf32>
    %99 = vector.broadcast %98 : vector<16x1xf32> to vector<16x16xf32>
    %100 = arith.mulf %95, %99 : vector<16x16xf32>
    %101 = arith.truncf %100 : vector<16x16xf32> to vector<16x16xbf16>
    %cst_33 = arith.constant dense<0.000000e+00> : vector<16x32xf32>
    %102 = tpu.matmul %101, %88, %cst_33 {dimension_numbers = #tpu.dot_dimension_numbers<[1], [0], [0], [1], [0, 0, 1, 1], [], []>} : vector<16x16xbf16>, vector<16x32xbf16>, vector<16x32xf32> -> vector<16x32xf32>
    %103 = tpu.concatenate %51, %68, %85, %102 in 1 : vector<16x32xf32>, vector<16x32xf32>, vector<16x32xf32>, vector<16x32xf32> -> vector<16x128xf32>
    %104 = arith.truncf %103 : vector<16x128xf32> to vector<16x128xbf16>
    %c0_34 = arith.constant 0 : index
    %c0_35 = arith.constant 0 : index
    %c0_36 = arith.constant 0 : index
    %105 = vector.load %arg6[%c0_34, %c0_35, %c0_36] : memref<2x128x128xbf16, #tpu.memory_space<vmem>>, vector<1x128x128xbf16>
    %106 = vector.shape_cast %105 : vector<1x128x128xbf16> to vector<128x128xbf16>
    %cst_37 = arith.constant dense<0.000000e+00> : vector<16x128xf32>
    %107 = tpu.matmul %104, %106, %cst_37 {dimension_numbers = #tpu.dot_dimension_numbers<[1], [0], [0], [1], [0, 0, 1, 1], [], []>} : vector<16x128xbf16>, vector<128x128xbf16>, vector<16x128xf32> -> vector<16x128xf32>
    %c0_38 = arith.constant 0 : index
    %c0_39 = arith.constant 0 : index
    %c0_40 = arith.constant 0 : index
    %108 = vector.load %arg7[%c0_38, %c0_39, %c0_40] : memref<2x1x128xf32, #tpu.memory_space<vmem>>, vector<1x1x128xf32>
    %109 = vector.shape_cast %108 : vector<1x1x128xf32> to vector<1x128xf32>
    %110 = vector.broadcast %109 : vector<1x128xf32> to vector<16x128xf32>
    %111 = arith.addf %107, %110 : vector<16x128xf32>
    %112 = arith.addf %111, %24 : vector<16x128xf32>
    %c0_41 = arith.constant 0 : index
    %c0_42 = arith.constant 0 : index
    %c0_43 = arith.constant 0 : index
    %113 = vector.load %arg8[%c0_41, %c0_42, %c0_43] : memref<2x1x128xf32, #tpu.memory_space<vmem>>, vector<1x1x128xf32>
    %114 = vector.shape_cast %113 : vector<1x1x128xf32> to vector<1x128xf32>
    %c0_44 = arith.constant 0 : index
    %c0_45 = arith.constant 0 : index
    %c0_46 = arith.constant 0 : index
    %115 = vector.load %arg9[%c0_44, %c0_45, %c0_46] : memref<2x1x128xf32, #tpu.memory_space<vmem>>, vector<1x1x128xf32>
    %116 = vector.shape_cast %115 : vector<1x1x128xf32> to vector<1x128xf32>
    %cst_47 = arith.constant dense<0.000000e+00> : vector<16xf32>
    %117 = vector.multi_reduction <add>, %112, %cst_47 [1] : vector<16x128xf32> to vector<16xf32>
    %118 = vector.shape_cast %117 : vector<16xf32> to vector<16x1xf32>
    %cst_48 = arith.constant 1.280000e+02 : f32
    %119 = vector.broadcast %cst_48 : f32 to vector<16x1xf32>
    %120 = arith.divf %118, %119 : vector<16x1xf32>
    %121 = vector.broadcast %120 : vector<16x1xf32> to vector<16x128xf32>
    %122 = arith.subf %112, %121 : vector<16x128xf32>
    %123 = arith.mulf %122, %122 : vector<16x128xf32>
    %cst_49 = arith.constant dense<0.000000e+00> : vector<16xf32>
    %124 = vector.multi_reduction <add>, %123, %cst_49 [1] : vector<16x128xf32> to vector<16xf32>
    %125 = vector.shape_cast %124 : vector<16xf32> to vector<16x1xf32>
    %cst_50 = arith.constant 1.280000e+02 : f32
    %126 = vector.broadcast %cst_50 : f32 to vector<16x1xf32>
    %127 = arith.divf %125, %126 : vector<16x1xf32>
    %128 = vector.broadcast %120 : vector<16x1xf32> to vector<16x128xf32>
    %129 = arith.subf %112, %128 : vector<16x128xf32>
    %cst_51 = arith.constant 9.99999996E-13 : f32
    %130 = vector.broadcast %cst_51 : f32 to vector<16x1xf32>
    %131 = arith.addf %127, %130 : vector<16x1xf32>
    %132 = math.rsqrt %131 : vector<16x1xf32>
    %133 = vector.broadcast %132 : vector<16x1xf32> to vector<16x128xf32>
    %134 = arith.mulf %129, %133 : vector<16x128xf32>
    %135 = vector.broadcast %114 : vector<1x128xf32> to vector<16x128xf32>
    %136 = arith.mulf %134, %135 : vector<16x128xf32>
    %137 = vector.broadcast %116 : vector<1x128xf32> to vector<16x128xf32>
    %138 = arith.addf %136, %137 : vector<16x128xf32>
    %139 = arith.truncf %138 : vector<16x128xf32> to vector<16x128xbf16>
    %c0_52 = arith.constant 0 : index
    %c0_53 = arith.constant 0 : index
    %c0_54 = arith.constant 0 : index
    %140 = vector.load %arg10[%c0_52, %c0_53, %c0_54] : memref<2x128x256xbf16, #tpu.memory_space<vmem>>, vector<1x128x256xbf16>
    %141 = vector.shape_cast %140 : vector<1x128x256xbf16> to vector<128x256xbf16>
    %cst_55 = arith.constant dense<0.000000e+00> : vector<16x256xf32>
    %142 = tpu.matmul %139, %141, %cst_55 {dimension_numbers = #tpu.dot_dimension_numbers<[1], [0], [0], [1], [0, 0, 1, 1], [], []>} : vector<16x128xbf16>, vector<128x256xbf16>, vector<16x256xf32> -> vector<16x256xf32>
    %c0_56 = arith.constant 0 : index
    %c0_57 = arith.constant 0 : index
    %c0_58 = arith.constant 0 : index
    %143 = vector.load %arg11[%c0_56, %c0_57, %c0_58] : memref<2x1x256xf32, #tpu.memory_space<vmem>>, vector<1x1x256xf32>
    %144 = vector.shape_cast %143 : vector<1x1x256xf32> to vector<1x256xf32>
    %145 = vector.broadcast %144 : vector<1x256xf32> to vector<16x256xf32>
    %146 = arith.addf %142, %145 : vector<16x256xf32>
    %147 = arith.mulf %146, %146 : vector<16x256xf32>
    %148 = arith.mulf %146, %147 : vector<16x256xf32>
    %cst_59 = arith.constant 4.471500e-02 : f32
    %149 = vector.broadcast %cst_59 : f32 to vector<16x256xf32>
    %150 = arith.mulf %149, %148 : vector<16x256xf32>
    %151 = arith.addf %146, %150 : vector<16x256xf32>
    %cst_60 = arith.constant 0.797884583 : f32
    %152 = vector.broadcast %cst_60 : f32 to vector<16x256xf32>
    %153 = arith.mulf %152, %151 : vector<16x256xf32>
    %154 = math.tanh %153 : vector<16x256xf32>
    %cst_61 = arith.constant 1.000000e+00 : f32
    %155 = vector.broadcast %cst_61 : f32 to vector<16x256xf32>
    %156 = arith.addf %155, %154 : vector<16x256xf32>
    %cst_62 = arith.constant 5.000000e-01 : f32
    %157 = vector.broadcast %cst_62 : f32 to vector<16x256xf32>
    %158 = arith.mulf %157, %156 : vector<16x256xf32>
    %159 = arith.mulf %146, %158 : vector<16x256xf32>
    %160 = arith.truncf %159 : vector<16x256xf32> to vector<16x256xbf16>
    %c0_63 = arith.constant 0 : index
    %c0_64 = arith.constant 0 : index
    %c0_65 = arith.constant 0 : index
    %161 = vector.load %arg12[%c0_63, %c0_64, %c0_65] : memref<2x256x128xbf16, #tpu.memory_space<vmem>>, vector<1x256x128xbf16>
    %162 = vector.shape_cast %161 : vector<1x256x128xbf16> to vector<256x128xbf16>
    %cst_66 = arith.constant dense<0.000000e+00> : vector<16x128xf32>
    %163 = tpu.matmul %160, %162, %cst_66 {dimension_numbers = #tpu.dot_dimension_numbers<[1], [0], [0], [1], [0, 0, 1, 1], [], []>} : vector<16x256xbf16>, vector<256x128xbf16>, vector<16x128xf32> -> vector<16x128xf32>
    %c0_67 = arith.constant 0 : index
    %c0_68 = arith.constant 0 : index
    %c0_69 = arith.constant 0 : index
    %164 = vector.load %arg13[%c0_67, %c0_68, %c0_69] : memref<2x1x128xf32, #tpu.memory_space<vmem>>, vector<1x1x128xf32>
    %165 = vector.shape_cast %164 : vector<1x1x128xf32> to vector<1x128xf32>
    %166 = vector.broadcast %165 : vector<1x128xf32> to vector<16x128xf32>
    %167 = arith.addf %163, %166 : vector<16x128xf32>
    %168 = arith.addf %167, %138 : vector<16x128xf32>
    %c0_70 = arith.constant 0 : index
    %c0_71 = arith.constant 0 : index
    %c0_72 = arith.constant 0 : index
    %169 = vector.load %arg14[%c0_70, %c0_71, %c0_72] : memref<2x1x128xf32, #tpu.memory_space<vmem>>, vector<1x1x128xf32>
    %170 = vector.shape_cast %169 : vector<1x1x128xf32> to vector<1x128xf32>
    %c0_73 = arith.constant 0 : index
    %c0_74 = arith.constant 0 : index
    %c0_75 = arith.constant 0 : index
    %171 = vector.load %arg15[%c0_73, %c0_74, %c0_75] : memref<2x1x128xf32, #tpu.memory_space<vmem>>, vector<1x1x128xf32>
    %172 = vector.shape_cast %171 : vector<1x1x128xf32> to vector<1x128xf32>
    %cst_76 = arith.constant dense<0.000000e+00> : vector<16xf32>
    %173 = vector.multi_reduction <add>, %168, %cst_76 [1] : vector<16x128xf32> to vector<16xf32>
    %174 = vector.shape_cast %173 : vector<16xf32> to vector<16x1xf32>
    %cst_77 = arith.constant 1.280000e+02 : f32
    %175 = vector.broadcast %cst_77 : f32 to vector<16x1xf32>
    %176 = arith.divf %174, %175 : vector<16x1xf32>
    %177 = vector.broadcast %176 : vector<16x1xf32> to vector<16x128xf32>
    %178 = arith.subf %168, %177 : vector<16x128xf32>
    %179 = arith.mulf %178, %178 : vector<16x128xf32>
    %cst_78 = arith.constant dense<0.000000e+00> : vector<16xf32>
    %180 = vector.multi_reduction <add>, %179, %cst_78 [1] : vector<16x128xf32> to vector<16xf32>
    %181 = vector.shape_cast %180 : vector<16xf32> to vector<16x1xf32>
    %cst_79 = arith.constant 1.280000e+02 : f32
    %182 = vector.broadcast %cst_79 : f32 to vector<16x1xf32>
    %183 = arith.divf %181, %182 : vector<16x1xf32>
    %184 = vector.broadcast %176 : vector<16x1xf32> to vector<16x128xf32>
    %185 = arith.subf %168, %184 : vector<16x128xf32>
    %cst_80 = arith.constant 9.99999996E-13 : f32
    %186 = vector.broadcast %cst_80 : f32 to vector<16x1xf32>
    %187 = arith.addf %183, %186 : vector<16x1xf32>
    %188 = math.rsqrt %187 : vector<16x1xf32>
    %189 = vector.broadcast %188 : vector<16x1xf32> to vector<16x128xf32>
    %190 = arith.mulf %185, %189 : vector<16x128xf32>
    %191 = vector.broadcast %170 : vector<1x128xf32> to vector<16x128xf32>
    %192 = arith.mulf %190, %191 : vector<16x128xf32>
    %193 = vector.broadcast %172 : vector<1x128xf32> to vector<16x128xf32>
    %194 = arith.addf %192, %193 : vector<16x128xf32>
    %195 = arith.truncf %194 : vector<16x128xf32> to vector<16x128xbf16>
    %c1 = arith.constant 1 : index
    %c0_81 = arith.constant 0 : index
    %c0_82 = arith.constant 0 : index
    %196 = vector.load %arg4[%c1, %c0_81, %c0_82] : memref<2x128x384xbf16, #tpu.memory_space<vmem>>, vector<1x128x384xbf16>
    %197 = vector.shape_cast %196 : vector<1x128x384xbf16> to vector<128x384xbf16>
    %cst_83 = arith.constant dense<0.000000e+00> : vector<16x384xf32>
    %198 = tpu.matmul %195, %197, %cst_83 {dimension_numbers = #tpu.dot_dimension_numbers<[1], [0], [0], [1], [0, 0, 1, 1], [], []>} : vector<16x128xbf16>, vector<128x384xbf16>, vector<16x384xf32> -> vector<16x384xf32>
    %c1_84 = arith.constant 1 : index
    %c0_85 = arith.constant 0 : index
    %c0_86 = arith.constant 0 : index
    %199 = vector.load %arg5[%c1_84, %c0_85, %c0_86] : memref<2x1x384xf32, #tpu.memory_space<vmem>>, vector<1x1x384xf32>
    %200 = vector.shape_cast %199 : vector<1x1x384xf32> to vector<1x384xf32>
    %201 = vector.broadcast %200 : vector<1x384xf32> to vector<16x384xf32>
    %202 = arith.addf %198, %201 : vector<16x384xf32>
    %203 = arith.truncf %202 : vector<16x384xf32> to vector<16x384xbf16>
    %204 = vector.extract_strided_slice %203 {offsets = [0, 0], sizes = [16, 32], strides = [1, 1]} : vector<16x384xbf16> to vector<16x32xbf16>
    %205 = vector.extract_strided_slice %203 {offsets = [0, 128], sizes = [16, 32], strides = [1, 1]} : vector<16x384xbf16> to vector<16x32xbf16>
    %206 = vector.extract_strided_slice %203 {offsets = [0, 256], sizes = [16, 32], strides = [1, 1]} : vector<16x384xbf16> to vector<16x32xbf16>
    %cst_87 = arith.constant dense<0.000000e+00> : vector<16x16xf32>
    %207 = tpu.matmul %204, %205, %cst_87 {dimension_numbers = #tpu.dot_dimension_numbers<[1], [1], [0], [0], [0, 0, 1, 0], [], []>} : vector<16x32xbf16>, vector<16x32xbf16>, vector<16x16xf32> -> vector<16x16xf32>
    %208 = arith.addf %207, %25 : vector<16x16xf32>
    %cst_88 = arith.constant dense<0xFF800000> : vector<16xf32>
    %209 = vector.multi_reduction <maximumf>, %208, %cst_88 [1] : vector<16x16xf32> to vector<16xf32>
    %210 = vector.shape_cast %209 : vector<16xf32> to vector<16x1xf32>
    %211 = vector.broadcast %210 : vector<16x1xf32> to vector<16x16xf32>
    %212 = arith.subf %208, %211 : vector<16x16xf32>
    %213 = math.exp %212 : vector<16x16xf32>
    %cst_89 = arith.constant dense<0.000000e+00> : vector<16xf32>
    %214 = vector.multi_reduction <add>, %213, %cst_89 [1] : vector<16x16xf32> to vector<16xf32>
    %215 = vector.shape_cast %214 : vector<16xf32> to vector<16x1xf32>
    %216 = tpu.reciprocal %215 {approx = true} : vector<16x1xf32> -> vector<16x1xf32>
    %217 = vector.broadcast %216 : vector<16x1xf32> to vector<16x16xf32>
    %218 = arith.mulf %213, %217 : vector<16x16xf32>
    %219 = arith.truncf %218 : vector<16x16xf32> to vector<16x16xbf16>
    %cst_90 = arith.constant dense<0.000000e+00> : vector<16x32xf32>
    %220 = tpu.matmul %219, %206, %cst_90 {dimension_numbers = #tpu.dot_dimension_numbers<[1], [0], [0], [1], [0, 0, 1, 1], [], []>} : vector<16x16xbf16>, vector<16x32xbf16>, vector<16x32xf32> -> vector<16x32xf32>
    %221 = vector.extract_strided_slice %203 {offsets = [0, 32], sizes = [16, 32], strides = [1, 1]} : vector<16x384xbf16> to vector<16x32xbf16>
    %222 = vector.extract_strided_slice %203 {offsets = [0, 160], sizes = [16, 32], strides = [1, 1]} : vector<16x384xbf16> to vector<16x32xbf16>
    %223 = vector.extract_strided_slice %203 {offsets = [0, 288], sizes = [16, 32], strides = [1, 1]} : vector<16x384xbf16> to vector<16x32xbf16>
    %cst_91 = arith.constant dense<0.000000e+00> : vector<16x16xf32>
    %224 = tpu.matmul %221, %222, %cst_91 {dimension_numbers = #tpu.dot_dimension_numbers<[1], [1], [0], [0], [0, 0, 1, 0], [], []>} : vector<16x32xbf16>, vector<16x32xbf16>, vector<16x16xf32> -> vector<16x16xf32>
    %225 = arith.addf %224, %25 : vector<16x16xf32>
    %cst_92 = arith.constant dense<0xFF800000> : vector<16xf32>
    %226 = vector.multi_reduction <maximumf>, %225, %cst_92 [1] : vector<16x16xf32> to vector<16xf32>
    %227 = vector.shape_cast %226 : vector<16xf32> to vector<16x1xf32>
    %228 = vector.broadcast %227 : vector<16x1xf32> to vector<16x16xf32>
    %229 = arith.subf %225, %228 : vector<16x16xf32>
    %230 = math.exp %229 : vector<16x16xf32>
    %cst_93 = arith.constant dense<0.000000e+00> : vector<16xf32>
    %231 = vector.multi_reduction <add>, %230, %cst_93 [1] : vector<16x16xf32> to vector<16xf32>
    %232 = vector.shape_cast %231 : vector<16xf32> to vector<16x1xf32>
    %233 = tpu.reciprocal %232 {approx = true} : vector<16x1xf32> -> vector<16x1xf32>
    %234 = vector.broadcast %233 : vector<16x1xf32> to vector<16x16xf32>
    %235 = arith.mulf %230, %234 : vector<16x16xf32>
    %236 = arith.truncf %235 : vector<16x16xf32> to vector<16x16xbf16>
    %cst_94 = arith.constant dense<0.000000e+00> : vector<16x32xf32>
    %237 = tpu.matmul %236, %223, %cst_94 {dimension_numbers = #tpu.dot_dimension_numbers<[1], [0], [0], [1], [0, 0, 1, 1], [], []>} : vector<16x16xbf16>, vector<16x32xbf16>, vector<16x32xf32> -> vector<16x32xf32>
    %238 = vector.extract_strided_slice %203 {offsets = [0, 64], sizes = [16, 32], strides = [1, 1]} : vector<16x384xbf16> to vector<16x32xbf16>
    %239 = vector.extract_strided_slice %203 {offsets = [0, 192], sizes = [16, 32], strides = [1, 1]} : vector<16x384xbf16> to vector<16x32xbf16>
    %240 = vector.extract_strided_slice %203 {offsets = [0, 320], sizes = [16, 32], strides = [1, 1]} : vector<16x384xbf16> to vector<16x32xbf16>
    %cst_95 = arith.constant dense<0.000000e+00> : vector<16x16xf32>
    %241 = tpu.matmul %238, %239, %cst_95 {dimension_numbers = #tpu.dot_dimension_numbers<[1], [1], [0], [0], [0, 0, 1, 0], [], []>} : vector<16x32xbf16>, vector<16x32xbf16>, vector<16x16xf32> -> vector<16x16xf32>
    %242 = arith.addf %241, %25 : vector<16x16xf32>
    %cst_96 = arith.constant dense<0xFF800000> : vector<16xf32>
    %243 = vector.multi_reduction <maximumf>, %242, %cst_96 [1] : vector<16x16xf32> to vector<16xf32>
    %244 = vector.shape_cast %243 : vector<16xf32> to vector<16x1xf32>
    %245 = vector.broadcast %244 : vector<16x1xf32> to vector<16x16xf32>
    %246 = arith.subf %242, %245 : vector<16x16xf32>
    %247 = math.exp %246 : vector<16x16xf32>
    %cst_97 = arith.constant dense<0.000000e+00> : vector<16xf32>
    %248 = vector.multi_reduction <add>, %247, %cst_97 [1] : vector<16x16xf32> to vector<16xf32>
    %249 = vector.shape_cast %248 : vector<16xf32> to vector<16x1xf32>
    %250 = tpu.reciprocal %249 {approx = true} : vector<16x1xf32> -> vector<16x1xf32>
    %251 = vector.broadcast %250 : vector<16x1xf32> to vector<16x16xf32>
    %252 = arith.mulf %247, %251 : vector<16x16xf32>
    %253 = arith.truncf %252 : vector<16x16xf32> to vector<16x16xbf16>
    %cst_98 = arith.constant dense<0.000000e+00> : vector<16x32xf32>
    %254 = tpu.matmul %253, %240, %cst_98 {dimension_numbers = #tpu.dot_dimension_numbers<[1], [0], [0], [1], [0, 0, 1, 1], [], []>} : vector<16x16xbf16>, vector<16x32xbf16>, vector<16x32xf32> -> vector<16x32xf32>
    %255 = vector.extract_strided_slice %203 {offsets = [0, 96], sizes = [16, 32], strides = [1, 1]} : vector<16x384xbf16> to vector<16x32xbf16>
    %256 = vector.extract_strided_slice %203 {offsets = [0, 224], sizes = [16, 32], strides = [1, 1]} : vector<16x384xbf16> to vector<16x32xbf16>
    %257 = vector.extract_strided_slice %203 {offsets = [0, 352], sizes = [16, 32], strides = [1, 1]} : vector<16x384xbf16> to vector<16x32xbf16>
    %cst_99 = arith.constant dense<0.000000e+00> : vector<16x16xf32>
    %258 = tpu.matmul %255, %256, %cst_99 {dimension_numbers = #tpu.dot_dimension_numbers<[1], [1], [0], [0], [0, 0, 1, 0], [], []>} : vector<16x32xbf16>, vector<16x32xbf16>, vector<16x16xf32> -> vector<16x16xf32>
    %259 = arith.addf %258, %25 : vector<16x16xf32>
    %cst_100 = arith.constant dense<0xFF800000> : vector<16xf32>
    %260 = vector.multi_reduction <maximumf>, %259, %cst_100 [1] : vector<16x16xf32> to vector<16xf32>
    %261 = vector.shape_cast %260 : vector<16xf32> to vector<16x1xf32>
    %262 = vector.broadcast %261 : vector<16x1xf32> to vector<16x16xf32>
    %263 = arith.subf %259, %262 : vector<16x16xf32>
    %264 = math.exp %263 : vector<16x16xf32>
    %cst_101 = arith.constant dense<0.000000e+00> : vector<16xf32>
    %265 = vector.multi_reduction <add>, %264, %cst_101 [1] : vector<16x16xf32> to vector<16xf32>
    %266 = vector.shape_cast %265 : vector<16xf32> to vector<16x1xf32>
    %267 = tpu.reciprocal %266 {approx = true} : vector<16x1xf32> -> vector<16x1xf32>
    %268 = vector.broadcast %267 : vector<16x1xf32> to vector<16x16xf32>
    %269 = arith.mulf %264, %268 : vector<16x16xf32>
    %270 = arith.truncf %269 : vector<16x16xf32> to vector<16x16xbf16>
    %cst_102 = arith.constant dense<0.000000e+00> : vector<16x32xf32>
    %271 = tpu.matmul %270, %257, %cst_102 {dimension_numbers = #tpu.dot_dimension_numbers<[1], [0], [0], [1], [0, 0, 1, 1], [], []>} : vector<16x16xbf16>, vector<16x32xbf16>, vector<16x32xf32> -> vector<16x32xf32>
    %272 = tpu.concatenate %220, %237, %254, %271 in 1 : vector<16x32xf32>, vector<16x32xf32>, vector<16x32xf32>, vector<16x32xf32> -> vector<16x128xf32>
    %273 = arith.truncf %272 : vector<16x128xf32> to vector<16x128xbf16>
    %c1_103 = arith.constant 1 : index
    %c0_104 = arith.constant 0 : index
    %c0_105 = arith.constant 0 : index
    %274 = vector.load %arg6[%c1_103, %c0_104, %c0_105] : memref<2x128x128xbf16, #tpu.memory_space<vmem>>, vector<1x128x128xbf16>
    %275 = vector.shape_cast %274 : vector<1x128x128xbf16> to vector<128x128xbf16>
    %cst_106 = arith.constant dense<0.000000e+00> : vector<16x128xf32>
    %276 = tpu.matmul %273, %275, %cst_106 {dimension_numbers = #tpu.dot_dimension_numbers<[1], [0], [0], [1], [0, 0, 1, 1], [], []>} : vector<16x128xbf16>, vector<128x128xbf16>, vector<16x128xf32> -> vector<16x128xf32>
    %c1_107 = arith.constant 1 : index
    %c0_108 = arith.constant 0 : index
    %c0_109 = arith.constant 0 : index
    %277 = vector.load %arg7[%c1_107, %c0_108, %c0_109] : memref<2x1x128xf32, #tpu.memory_space<vmem>>, vector<1x1x128xf32>
    %278 = vector.shape_cast %277 : vector<1x1x128xf32> to vector<1x128xf32>
    %279 = vector.broadcast %278 : vector<1x128xf32> to vector<16x128xf32>
    %280 = arith.addf %276, %279 : vector<16x128xf32>
    %281 = arith.addf %280, %194 : vector<16x128xf32>
    %c1_110 = arith.constant 1 : index
    %c0_111 = arith.constant 0 : index
    %c0_112 = arith.constant 0 : index
    %282 = vector.load %arg8[%c1_110, %c0_111, %c0_112] : memref<2x1x128xf32, #tpu.memory_space<vmem>>, vector<1x1x128xf32>
    %283 = vector.shape_cast %282 : vector<1x1x128xf32> to vector<1x128xf32>
    %c1_113 = arith.constant 1 : index
    %c0_114 = arith.constant 0 : index
    %c0_115 = arith.constant 0 : index
    %284 = vector.load %arg9[%c1_113, %c0_114, %c0_115] : memref<2x1x128xf32, #tpu.memory_space<vmem>>, vector<1x1x128xf32>
    %285 = vector.shape_cast %284 : vector<1x1x128xf32> to vector<1x128xf32>
    %cst_116 = arith.constant dense<0.000000e+00> : vector<16xf32>
    %286 = vector.multi_reduction <add>, %281, %cst_116 [1] : vector<16x128xf32> to vector<16xf32>
    %287 = vector.shape_cast %286 : vector<16xf32> to vector<16x1xf32>
    %cst_117 = arith.constant 1.280000e+02 : f32
    %288 = vector.broadcast %cst_117 : f32 to vector<16x1xf32>
    %289 = arith.divf %287, %288 : vector<16x1xf32>
    %290 = vector.broadcast %289 : vector<16x1xf32> to vector<16x128xf32>
    %291 = arith.subf %281, %290 : vector<16x128xf32>
    %292 = arith.mulf %291, %291 : vector<16x128xf32>
    %cst_118 = arith.constant dense<0.000000e+00> : vector<16xf32>
    %293 = vector.multi_reduction <add>, %292, %cst_118 [1] : vector<16x128xf32> to vector<16xf32>
    %294 = vector.shape_cast %293 : vector<16xf32> to vector<16x1xf32>
    %cst_119 = arith.constant 1.280000e+02 : f32
    %295 = vector.broadcast %cst_119 : f32 to vector<16x1xf32>
    %296 = arith.divf %294, %295 : vector<16x1xf32>
    %297 = vector.broadcast %289 : vector<16x1xf32> to vector<16x128xf32>
    %298 = arith.subf %281, %297 : vector<16x128xf32>
    %cst_120 = arith.constant 9.99999996E-13 : f32
    %299 = vector.broadcast %cst_120 : f32 to vector<16x1xf32>
    %300 = arith.addf %296, %299 : vector<16x1xf32>
    %301 = math.rsqrt %300 : vector<16x1xf32>
    %302 = vector.broadcast %301 : vector<16x1xf32> to vector<16x128xf32>
    %303 = arith.mulf %298, %302 : vector<16x128xf32>
    %304 = vector.broadcast %283 : vector<1x128xf32> to vector<16x128xf32>
    %305 = arith.mulf %303, %304 : vector<16x128xf32>
    %306 = vector.broadcast %285 : vector<1x128xf32> to vector<16x128xf32>
    %307 = arith.addf %305, %306 : vector<16x128xf32>
    %308 = arith.truncf %307 : vector<16x128xf32> to vector<16x128xbf16>
    %c1_121 = arith.constant 1 : index
    %c0_122 = arith.constant 0 : index
    %c0_123 = arith.constant 0 : index
    %309 = vector.load %arg10[%c1_121, %c0_122, %c0_123] : memref<2x128x256xbf16, #tpu.memory_space<vmem>>, vector<1x128x256xbf16>
    %310 = vector.shape_cast %309 : vector<1x128x256xbf16> to vector<128x256xbf16>
    %cst_124 = arith.constant dense<0.000000e+00> : vector<16x256xf32>
    %311 = tpu.matmul %308, %310, %cst_124 {dimension_numbers = #tpu.dot_dimension_numbers<[1], [0], [0], [1], [0, 0, 1, 1], [], []>} : vector<16x128xbf16>, vector<128x256xbf16>, vector<16x256xf32> -> vector<16x256xf32>
    %c1_125 = arith.constant 1 : index
    %c0_126 = arith.constant 0 : index
    %c0_127 = arith.constant 0 : index
    %312 = vector.load %arg11[%c1_125, %c0_126, %c0_127] : memref<2x1x256xf32, #tpu.memory_space<vmem>>, vector<1x1x256xf32>
    %313 = vector.shape_cast %312 : vector<1x1x256xf32> to vector<1x256xf32>
    %314 = vector.broadcast %313 : vector<1x256xf32> to vector<16x256xf32>
    %315 = arith.addf %311, %314 : vector<16x256xf32>
    %316 = arith.mulf %315, %315 : vector<16x256xf32>
    %317 = arith.mulf %315, %316 : vector<16x256xf32>
    %cst_128 = arith.constant 4.471500e-02 : f32
    %318 = vector.broadcast %cst_128 : f32 to vector<16x256xf32>
    %319 = arith.mulf %318, %317 : vector<16x256xf32>
    %320 = arith.addf %315, %319 : vector<16x256xf32>
    %cst_129 = arith.constant 0.797884583 : f32
    %321 = vector.broadcast %cst_129 : f32 to vector<16x256xf32>
    %322 = arith.mulf %321, %320 : vector<16x256xf32>
    %323 = math.tanh %322 : vector<16x256xf32>
    %cst_130 = arith.constant 1.000000e+00 : f32
    %324 = vector.broadcast %cst_130 : f32 to vector<16x256xf32>
    %325 = arith.addf %324, %323 : vector<16x256xf32>
    %cst_131 = arith.constant 5.000000e-01 : f32
    %326 = vector.broadcast %cst_131 : f32 to vector<16x256xf32>
    %327 = arith.mulf %326, %325 : vector<16x256xf32>
    %328 = arith.mulf %315, %327 : vector<16x256xf32>
    %329 = arith.truncf %328 : vector<16x256xf32> to vector<16x256xbf16>
    %c1_132 = arith.constant 1 : index
    %c0_133 = arith.constant 0 : index
    %c0_134 = arith.constant 0 : index
    %330 = vector.load %arg12[%c1_132, %c0_133, %c0_134] : memref<2x256x128xbf16, #tpu.memory_space<vmem>>, vector<1x256x128xbf16>
    %331 = vector.shape_cast %330 : vector<1x256x128xbf16> to vector<256x128xbf16>
    %cst_135 = arith.constant dense<0.000000e+00> : vector<16x128xf32>
    %332 = tpu.matmul %329, %331, %cst_135 {dimension_numbers = #tpu.dot_dimension_numbers<[1], [0], [0], [1], [0, 0, 1, 1], [], []>} : vector<16x256xbf16>, vector<256x128xbf16>, vector<16x128xf32> -> vector<16x128xf32>
    %c1_136 = arith.constant 1 : index
    %c0_137 = arith.constant 0 : index
    %c0_138 = arith.constant 0 : index
    %333 = vector.load %arg13[%c1_136, %c0_137, %c0_138] : memref<2x1x128xf32, #tpu.memory_space<vmem>>, vector<1x1x128xf32>
    %334 = vector.shape_cast %333 : vector<1x1x128xf32> to vector<1x128xf32>
    %335 = vector.broadcast %334 : vector<1x128xf32> to vector<16x128xf32>
    %336 = arith.addf %332, %335 : vector<16x128xf32>
    %337 = arith.addf %336, %307 : vector<16x128xf32>
    %c1_139 = arith.constant 1 : index
    %c0_140 = arith.constant 0 : index
    %c0_141 = arith.constant 0 : index
    %338 = vector.load %arg14[%c1_139, %c0_140, %c0_141] : memref<2x1x128xf32, #tpu.memory_space<vmem>>, vector<1x1x128xf32>
    %339 = vector.shape_cast %338 : vector<1x1x128xf32> to vector<1x128xf32>
    %c1_142 = arith.constant 1 : index
    %c0_143 = arith.constant 0 : index
    %c0_144 = arith.constant 0 : index
    %340 = vector.load %arg15[%c1_142, %c0_143, %c0_144] : memref<2x1x128xf32, #tpu.memory_space<vmem>>, vector<1x1x128xf32>
    %341 = vector.shape_cast %340 : vector<1x1x128xf32> to vector<1x128xf32>
    %cst_145 = arith.constant dense<0.000000e+00> : vector<16xf32>
    %342 = vector.multi_reduction <add>, %337, %cst_145 [1] : vector<16x128xf32> to vector<16xf32>
    %343 = vector.shape_cast %342 : vector<16xf32> to vector<16x1xf32>
    %cst_146 = arith.constant 1.280000e+02 : f32
    %344 = vector.broadcast %cst_146 : f32 to vector<16x1xf32>
    %345 = arith.divf %343, %344 : vector<16x1xf32>
    %346 = vector.broadcast %345 : vector<16x1xf32> to vector<16x128xf32>
    %347 = arith.subf %337, %346 : vector<16x128xf32>
    %348 = arith.mulf %347, %347 : vector<16x128xf32>
    %cst_147 = arith.constant dense<0.000000e+00> : vector<16xf32>
    %349 = vector.multi_reduction <add>, %348, %cst_147 [1] : vector<16x128xf32> to vector<16xf32>
    %350 = vector.shape_cast %349 : vector<16xf32> to vector<16x1xf32>
    %cst_148 = arith.constant 1.280000e+02 : f32
    %351 = vector.broadcast %cst_148 : f32 to vector<16x1xf32>
    %352 = arith.divf %350, %351 : vector<16x1xf32>
    %353 = vector.broadcast %345 : vector<16x1xf32> to vector<16x128xf32>
    %354 = arith.subf %337, %353 : vector<16x128xf32>
    %cst_149 = arith.constant 9.99999996E-13 : f32
    %355 = vector.broadcast %cst_149 : f32 to vector<16x1xf32>
    %356 = arith.addf %352, %355 : vector<16x1xf32>
    %357 = math.rsqrt %356 : vector<16x1xf32>
    %358 = vector.broadcast %357 : vector<16x1xf32> to vector<16x128xf32>
    %359 = arith.mulf %354, %358 : vector<16x128xf32>
    %360 = vector.broadcast %339 : vector<1x128xf32> to vector<16x128xf32>
    %361 = arith.mulf %359, %360 : vector<16x128xf32>
    %362 = vector.broadcast %341 : vector<1x128xf32> to vector<16x128xf32>
    %363 = arith.addf %361, %362 : vector<16x128xf32>
    %364 = tpu.iota {dimensions = array<i32: 1>} : vector<2x16xi32>
    %365 = tpu.iota {dimensions = array<i32: 0>} : vector<2x16xi32>
    %c8_i32 = arith.constant 8 : i32
    %366 = vector.broadcast %c8_i32 : i32 to vector<2x16xi32>
    %367 = arith.muli %365, %366 : vector<2x16xi32>
    %368 = arith.cmpi eq, %364, %367 : vector<2x16xi32>
    %369 = arith.extui %368 : vector<2x16xi1> to vector<2x16xi32>
    %370 = arith.sitofp %369 : vector<2x16xi32> to vector<2x16xf32>
    %cst_150 = arith.constant dense<0.000000e+00> : vector<2x128xf32>
    %371 = tpu.matmul %370, %363, %cst_150 {dimension_numbers = #tpu.dot_dimension_numbers<[1], [0], [0], [1], [0, 0, 1, 1], [], []>} : vector<2x16xf32>, vector<16x128xf32>, vector<2x128xf32> -> vector<2x128xf32>
    %372 = arith.truncf %371 : vector<2x128xf32> to vector<2x128xbf16>
    %c0_151 = arith.constant 0 : index
    %c0_152 = arith.constant 0 : index
    %373 = vector.load %arg16[%c0_151, %c0_152] : memref<128x128xbf16, #tpu.memory_space<vmem>>, vector<128x128xbf16>
    %cst_153 = arith.constant dense<0.000000e+00> : vector<2x128xf32>
    %374 = tpu.matmul %372, %373, %cst_153 {dimension_numbers = #tpu.dot_dimension_numbers<[1], [0], [0], [1], [0, 0, 1, 1], [], []>} : vector<2x128xbf16>, vector<128x128xbf16>, vector<2x128xf32> -> vector<2x128xf32>
    %c0_154 = arith.constant 0 : index
    %c0_155 = arith.constant 0 : index
    %375 = vector.load %arg17[%c0_154, %c0_155] : memref<1x128xf32, #tpu.memory_space<vmem>>, vector<1x128xf32>
    %376 = vector.broadcast %375 : vector<1x128xf32> to vector<2x128xf32>
    %377 = arith.addf %374, %376 : vector<2x128xf32>
    %378 = math.tanh %377 : vector<2x128xf32>
    %379 = arith.truncf %378 : vector<2x128xf32> to vector<2x128xbf16>
    %c0_156 = arith.constant 0 : index
    %c0_157 = arith.constant 0 : index
    %380 = vector.load %arg18[%c0_156, %c0_157] : memref<128x128xbf16, #tpu.memory_space<vmem>>, vector<128x128xbf16>
    %cst_158 = arith.constant dense<0.000000e+00> : vector<2x128xf32>
    %381 = tpu.matmul %379, %380, %cst_158 {dimension_numbers = #tpu.dot_dimension_numbers<[1], [0], [0], [1], [0, 0, 1, 1], [], []>} : vector<2x128xbf16>, vector<128x128xbf16>, vector<2x128xf32> -> vector<2x128xf32>
    %c0_159 = arith.constant 0 : index
    %c0_160 = arith.constant 0 : index
    %382 = vector.load %arg19[%c0_159, %c0_160] : memref<1x128xf32, #tpu.memory_space<vmem>>, vector<1x128xf32>
    %383 = vector.broadcast %382 : vector<1x128xf32> to vector<2x128xf32>
    %384 = arith.addf %381, %383 : vector<2x128xf32>
    %c0_161 = arith.constant 0 : index
    %c0_162 = arith.constant 0 : index
    %385 = vector.load %arg20[%c0_161, %c0_162] : memref<2x128xf32, #tpu.memory_space<vmem>>, vector<2x128xf32>
    tpu.vector_store %arg20[%c0_161, %c0_162], %384 {strides = array<i32>} : memref<2x128xf32, #tpu.memory_space<vmem>>, vector<2x128xf32>,
    return
  }
}

</mosaic_0001>

<llo_original>
// kernel: bert_classify_forward.1
$region0: #{bert_classify_forward.1}
  #allocation0 [shape = 'u32[]', space=smem, size = 0x4, offset = 0x4, fixed_abs, tag = 'smem constant byte address 0x4 - core index']
  #allocation1 [shape = 'u32[144,128]{1,0:T(1,128)}', space=vmem, size = 0x12000, scoped, tag = 'internal scratch']
  %s0 = inlined_call_operand.vmem [shape: f32[16,128], index: 0, kind: input, shape index: {}]
  %s1 = inlined_call_operand.vmem [shape: f32[16,16], index: 1, kind: input, shape index: {}]
  %s2 = inlined_call_operand.vmem [shape: f32[1,128], index: 2, kind: input, shape index: {}]
  %s3 = inlined_call_operand.vmem [shape: f32[1,128], index: 3, kind: input, shape index: {}, may-alias: {3,17,19}]
  %s4 = inlined_call_operand.vmem [shape: bf16[2,128,384], index: 4, kind: input, shape index: {}]
  %s5 = inlined_call_operand.vmem [shape: f32[2,1,384], index: 5, kind: input, shape index: {}]
  %s6 = inlined_call_operand.vmem [shape: bf16[2,128,128], index: 6, kind: input, shape index: {}]
  %s7 = inlined_call_operand.vmem [shape: f32[2,1,128], index: 7, kind: input, shape index: {}, may-alias: {7,9,13,15}]
  %s8 = inlined_call_operand.vmem [shape: f32[2,1,128], index: 8, kind: input, shape index: {}, may-alias: {8,14}]
  %s9 = inlined_call_operand.vmem [shape: f32[2,1,128], index: 9, kind: input, shape index: {}, may-alias: {7,9,13,15}]
  %s10 = inlined_call_operand.vmem [shape: bf16[2,128,256], index: 10, kind: input, shape index: {}]
  %s11 = inlined_call_operand.vmem [shape: f32[2,1,256], index: 11, kind: input, shape index: {}]
  %s12 = inlined_call_operand.vmem [shape: bf16[2,256,128], index: 12, kind: input, shape index: {}]
  %s13 = inlined_call_operand.vmem [shape: f32[2,1,128], index: 13, kind: input, shape index: {}, may-alias: {7,9,13,15}]
  %s14 = inlined_call_operand.vmem [shape: f32[2,1,128], index: 14, kind: input, shape index: {}, may-alias: {8,14}]
  %s15 = inlined_call_operand.vmem [shape: f32[2,1,128], index: 15, kind: input, shape index: {}, may-alias: {7,9,13,15}]
  %s16 = inlined_call_operand.vmem [shape: bf16[128,128], index: 16, kind: input, shape index: {}]
  %s17 = inlined_call_operand.vmem [shape: f32[1,128], index: 17, kind: input, shape index: {}, may-alias: {3,17,19}]
  %s18 = inlined_call_operand.vmem [shape: bf16[128,128], index: 18, kind: input, shape index: {}]
  %s19 = inlined_call_operand.vmem [shape: f32[1,128], index: 19, kind: input, shape index: {}, may-alias: {3,17,19}]
  %s20 = inlined_call_operand.hbm [shape: f32[2,128], index: 20, kind: output, shape index: {}]
  %s21 = sld [smem:[#allocation0]]
  $region90: #{bert_classify_forward.1} parent=0
    _
  %s23 = ssub.s32 1, %s21
  %s24 = scalar_select 0, %s23, %s21
  $region1: #{bert_classify_forward.1} parent=0
    #allocation2 [shape = 'u8[1024]{0}', space=vmem, size = 0x400, scoped, tag = 'output window, operand 0, single buffered']
    #allocation3 [shape = 's32[1]{0}', space=sflag, size = 0x4, scoped, tag = 'scoped memory for bert_classify_forward.1']
    %25 = vsyncpa [#allocation3], 0
    // Predicated region
    $region2: #{bert_classify_forward.1} parent=1 // pred_check
      _
    $region3: #{bert_classify_forward.1} parent=1 // pred_check_branch
      %27 = sbr.rel (0) target = $region5
    $region4: #{bert_classify_forward.1} parent=1 // pred_region
      _
    $region5: #{bert_classify_forward.1} parent=1 // pred_fallthru
      _
    // Predicated region
    $region6: #{bert_classify_forward.1} parent=1 // pred_check
      _
    $region7: #{bert_classify_forward.1} parent=1 // pred_check_branch
      %29 = sbr.rel (0) target = $region9
    $region8: #{bert_classify_forward.1} parent=1 // pred_region
      _
    $region9: #{bert_classify_forward.1} parent=1 // pred_fallthru
      _
    // Predicated region
    $region10: #{bert_classify_forward.1} parent=1 // pred_check
      _
    $region11: #{bert_classify_forward.1} parent=1 // pred_check_branch
      %31 = sbr.rel (0) target = $region13
    $region12: #{bert_classify_forward.1} parent=1 // pred_region
      _
    $region13: #{bert_classify_forward.1} parent=1 // pred_fallthru
      _
    // Predicated region
    $region14: #{bert_classify_forward.1} parent=1 // pred_check
      _
    $region15: #{bert_classify_forward.1} parent=1 // pred_check_branch
      %33 = sbr.rel (0) target = $region17
    $region16: #{bert_classify_forward.1} parent=1 // pred_region
      _
    $region17: #{bert_classify_forward.1} parent=1 // pred_fallthru
      _
    // Predicated region
    $region18: #{bert_classify_forward.1} parent=1 // pred_check
      _
    $region19: #{bert_classify_forward.1} parent=1 // pred_check_branch
      %35 = sbr.rel (0) target = $region21
    $region20: #{bert_classify_forward.1} parent=1 // pred_region
      _
    $region21: #{bert_classify_forward.1} parent=1 // pred_fallthru
      _
    // Predicated region
    $region22: #{bert_classify_forward.1} parent=1 // pred_check
      _
    $region23: #{bert_classify_forward.1} parent=1 // pred_check_branch
      %37 = sbr.rel (0) target = $region25
    $region24: #{bert_classify_forward.1} parent=1 // pred_region
      _
    $region25: #{bert_classify_forward.1} parent=1 // pred_fallthru
      _
    // Predicated region
    $region26: #{bert_classify_forward.1} parent=1 // pred_check
      _
    $region27: #{bert_classify_forward.1} parent=1 // pred_check_branch
      %39 = sbr.rel (0) target = $region29
    $region28: #{bert_classify_forward.1} parent=1 // pred_region
      _
    $region29: #{bert_classify_forward.1} parent=1 // pred_fallthru
      _
    // Predicated region
    $region30: #{bert_classify_forward.1} parent=1 // pred_check
      _
    $region31: #{bert_classify_forward.1} parent=1 // pred_check_branch
      %41 = sbr.rel (0) target = $region33
    $region32: #{bert_classify_forward.1} parent=1 // pred_region
      _
    $region33: #{bert_classify_forward.1} parent=1 // pred_fallthru
      _
    // Predicated region
    $region34: #{bert_classify_forward.1} parent=1 // pred_check
      _
    $region35: #{bert_classify_forward.1} parent=1 // pred_check_branch
      %43 = sbr.rel (0) target = $region37
    $region36: #{bert_classify_forward.1} parent=1 // pred_region
      _
    $region37: #{bert_classify_forward.1} parent=1 // pred_fallthru
      _
    // Predicated region
    $region38: #{bert_classify_forward.1} parent=1 // pred_check
      _
    $region39: #{bert_classify_forward.1} parent=1 // pred_check_branch
      %45 = sbr.rel (0) target = $region41
    $region40: #{bert_classify_forward.1} parent=1 // pred_region
      _
    $region41: #{bert_classify_forward.1} parent=1 // pred_fallthru
      _
    // Predicated region
    $region42: #{bert_classify_forward.1} parent=1 // pred_check
      _
    $region43: #{bert_classify_forward.1} parent=1 // pred_check_branch
      %47 = sbr.rel (0) target = $region45
    $region44: #{bert_classify_forward.1} parent=1 // pred_region
      _
    $region45: #{bert_classify_forward.1} parent=1 // pred_fallthru
      _
    // Predicated region
    $region46: #{bert_classify_forward.1} parent=1 // pred_check
      _
    $region47: #{bert_classify_forward.1} parent=1 // pred_check_branch
      %49 = sbr.rel (0) target = $region49
    $region48: #{bert_classify_forward.1} parent=1 // pred_region
      _
    $region49: #{bert_classify_forward.1} parent=1 // pred_fallthru
      _
    // Predicated region
    $region50: #{bert_classify_forward.1} parent=1 // pred_check
      _
    $region51: #{bert_classify_forward.1} parent=1 // pred_check_branch
      %51 = sbr.rel (0) target = $region53
    $region52: #{bert_classify_forward.1} parent=1 // pred_region
      _
    $region53: #{bert_classify_forward.1} parent=1 // pred_fallthru
      _
    // Predicated region
    $region54: #{bert_classify_forward.1} parent=1 // pred_check
      _
    $region55: #{bert_classify_forward.1} parent=1 // pred_check_branch
      %53 = sbr.rel (0) target = $region57
    $region56: #{bert_classify_forward.1} parent=1 // pred_region
      _
    $region57: #{bert_classify_forward.1} parent=1 // pred_fallthru
      _
    // Predicated region
    $region58: #{bert_classify_forward.1} parent=1 // pred_check
      _
    $region59: #{bert_classify_forward.1} parent=1 // pred_check_branch
      %55 = sbr.rel (0) target = $region61
    $region60: #{bert_classify_forward.1} parent=1 // pred_region
      _
    $region61: #{bert_classify_forward.1} parent=1 // pred_fallthru
      _
    // Predicated region
    $region62: #{bert_classify_forward.1} parent=1 // pred_check
      _
    $region63: #{bert_classify_forward.1} parent=1 // pred_check_branch
      %57 = sbr.rel (0) target = $region65
    $region64: #{bert_classify_forward.1} parent=1 // pred_region
      _
    $region65: #{bert_classify_forward.1} parent=1 // pred_fallthru
      _
    // Predicated region
    $region66: #{bert_classify_forward.1} parent=1 // pred_check
      _
    $region67: #{bert_classify_forward.1} parent=1 // pred_check_branch
      %59 = sbr.rel (0) target = $region69
    $region68: #{bert_classify_forward.1} parent=1 // pred_region
      _
    $region69: #{bert_classify_forward.1} parent=1 // pred_fallthru
      _
    // Predicated region
    $region70: #{bert_classify_forward.1} parent=1 // pred_check
      _
    $region71: #{bert_classify_forward.1} parent=1 // pred_check_branch
      %61 = sbr.rel (0) target = $region73
    $region72: #{bert_classify_forward.1} parent=1 // pred_region
      _
    $region73: #{bert_classify_forward.1} parent=1 // pred_fallthru
      _
    // Predicated region
    $region74: #{bert_classify_forward.1} parent=1 // pred_check
      _
    $region75: #{bert_classify_forward.1} parent=1 // pred_check_branch
      %63 = sbr.rel (0) target = $region77
    $region76: #{bert_classify_forward.1} parent=1 // pred_region
      _
    $region77: #{bert_classify_forward.1} parent=1 // pred_fallthru
      _
    // Predicated region
    $region78: #{bert_classify_forward.1} parent=1 // pred_check
      _
    $region79: #{bert_classify_forward.1} parent=1 // pred_check_branch
      %65 = sbr.rel (0) target = $region81
    $region80: #{bert_classify_forward.1} parent=1 // pred_region
      _
    $region81: #{bert_classify_forward.1} parent=1 // pred_fallthru
      _
    %v67 = vld [vmem:[%s0] sm:$0xff]
    %v68 = vld [vmem:[%s0 + $0x8] sm:$0xff]
    %v69 = vld [vmem:[%s2] sm:$0x1]
    %v70 = vld [vmem:[%s3] sm:$0x1]
    %71 = vadd.xlane.f32.xlu0 %v67
    %v72 = vpop.xlane.xlu0 %71
    %73 = vadd.xlane.f32.xlu0 %v68
    %v74 = vpop.xlane.xlu0 %73
    %v75 = vrcp.pop 128.0
    %v76 = vmul.f32 %v72, %v75
    %v77 = vmul.f32 %v74, %v75
    %v78 = vsub.f32 %v67, %v76
    %v79 = vsub.f32 %v68, %v77
    %v80 = vmul.f32 %v78, %v78
    %v81 = vmul.f32 %v79, %v79
    %82 = vadd.xlane.f32.xlu0 %v80
    %v83 = vpop.xlane.xlu0 %82
    %84 = vadd.xlane.f32.xlu0 %v81
    %v85 = vpop.xlane.xlu0 %84
    %v86 = vmul.f32 %v83, %v75
    %v87 = vmul.f32 %v85, %v75
    %v88 = vadd.f32 %v86, 1e-12
    %v89 = vadd.f32 %v87, 1e-12
    %v90 = vrsqrt.pop %v88
    %v91 = vrsqrt.pop %v89
    %v92 = vmul.f32 %v78, %v90
    %v93 = vmul.f32 %v79, %v91
    %v95 = vlaneseq
    %v96 = vshrl.u32 %v95, 7
    %v97 = vsub.s32 0, %v96
    %v98 = vrot.slane %v69, %v97
    %v100 = vmul.f32 %v92, %v98
    %v101 = vmul.f32 %v93, %v98
    %v103 = vlaneseq
    %v104 = vshrl.u32 %v103, 7
    %v105 = vsub.s32 0, %v104
    %v106 = vrot.slane %v70, %v105
    %v108 = vadd.f32 %v100, %v106
    %v109 = vadd.f32 %v101, %v106
    %v110 = vld [vmem:[%s1] sm:$0xff]
    %v111 = vld [vmem:[%s1 + $0x8] sm:$0xff]
    %v112 = vpack.c.bf16 %v109, %v108
    %v113 = vld [vmem:[%s4] sm:$0xff]
    %v114 = vld [vmem:[%s4 + $0x8] sm:$0xf]
    %v115 = vld [vmem:[%s4 + $0xc] sm:$0xff]
    %v116 = vld [vmem:[%s4 + $0x14] sm:$0xf]
    %v117 = vld [vmem:[%s4 + $0x18] sm:$0xff]
    %v118 = vld [vmem:[%s4 + $0x20] sm:$0xf]
    %v119 = vld [vmem:[%s4 + $0x24] sm:$0xff]
    %v120 = vld [vmem:[%s4 + $0x2c] sm:$0xf]
    %v121 = vld [vmem:[%s4 + $0x30] sm:$0xff]
    %v122 = vld [vmem:[%s4 + $0x38] sm:$0xf]
    %v123 = vld [vmem:[%s4 + $0x3c] sm:$0xff]
    %v124 = vld [vmem:[%s4 + $0x44] sm:$0xf]
    %v125 = vld [vmem:[%s4 + $0x48] sm:$0xff]
    %v126 = vld [vmem:[%s4 + $0x50] sm:$0xf]
    %v127 = vld [vmem:[%s4 + $0x54] sm:$0xff]
    %v128 = vld [vmem:[%s4 + $0x5c] sm:$0xf]
    %v129 = vld [vmem:[%s4 + $0x60] sm:$0xff]
    %v130 = vld [vmem:[%s4 + $0x68] sm:$0xf]
    %v131 = vld [vmem:[%s4 + $0x6c] sm:$0xff]
    %v132 = vld [vmem:[%s4 + $0x74] sm:$0xf]
    %v133 = vld [vmem:[%s4 + $0x78] sm:$0xff]
    %v134 = vld [vmem:[%s4 + $0x80] sm:$0xf]
    %v135 = vld [vmem:[%s4 + $0x84] sm:$0xff]
    %v136 = vld [vmem:[%s4 + $0x8c] sm:$0xf]
    %v137 = vld [vmem:[%s4 + $0x90] sm:$0xff]
    %v138 = vld [vmem:[%s4 + $0x98] sm:$0xf]
    %v139 = vld [vmem:[%s4 + $0x9c] sm:$0xff]
    %v140 = vld [vmem:[%s4 + $0xa4] sm:$0xf]
    %v141 = vld [vmem:[%s4 + $0xa8] sm:$0xff]
    %v142 = vld [vmem:[%s4 + $0xb0] sm:$0xf]
    %v143 = vld [vmem:[%s4 + $0xb4] sm:$0xff]
    %v144 = vld [vmem:[%s4 + $0xbc] sm:$0xf]
    %v145 = vld [vmem:[%s5] sm:$0x7]
    %v147 = vlaneseq
    %v148 = vshrl.u32 %v147, 7
    %v149 = vsub.s32 0, %v148
    %v150 = vrot.slane %v145, %v149
    %v151 = vlaneseq
    %v152 = vshrl.u32 %v151, 7
    %v153 = vsub.s32 1, %v152
    %v154 = vrot.slane %v145, %v153
    %v155 = vlaneseq
    %v156 = vshrl.u32 %v155, 7
    %v157 = vsub.s32 2, %v156
    %v158 = vrot.slane %v145, %v157
    %v194 = vunpack.c.l.b16 %v113
    %v195 = vunpack.c.h.b16 %v113
    %v196 = vunpack.c.l.b16 %v114
    %v197 = vunpack.c.l.b16 %v115
    %v198 = vunpack.c.h.b16 %v115
    %v199 = vunpack.c.l.b16 %v116
    %v200 = vunpack.c.l.b16 %v117
    %v201 = vunpack.c.h.b16 %v117
    %v202 = vunpack.c.l.b16 %v118
    %v203 = vunpack.c.l.b16 %v119
    %v204 = vunpack.c.h.b16 %v119
    %v205 = vunpack.c.l.b16 %v120
    %v206 = vunpack.c.l.b16 %v121
    %v207 = vunpack.c.h.b16 %v121
    %v208 = vunpack.c.l.b16 %v122
    %v209 = vunpack.c.l.b16 %v123
    %v210 = vunpack.c.h.b16 %v123
    %v211 = vunpack.c.l.b16 %v124
    %v212 = vunpack.c.l.b16 %v125
    %v213 = vunpack.c.h.b16 %v125
    %v214 = vunpack.c.l.b16 %v126
    %v215 = vunpack.c.l.b16 %v127
    %v216 = vunpack.c.h.b16 %v127
    %v217 = vunpack.c.l.b16 %v128
    %v218 = vunpack.c.l.b16 %v129
    %v219 = vunpack.c.h.b16 %v129
    %v220 = vunpack.c.l.b16 %v130
    %v221 = vunpack.c.l.b16 %v131
    %v222 = vunpack.c.h.b16 %v131
    %v223 = vunpack.c.l.b16 %v132
    %v224 = vunpack.c.l.b16 %v133
    %v225 = vunpack.c.h.b16 %v133
    %v226 = vunpack.c.l.b16 %v134
    %v227 = vunpack.c.l.b16 %v135
    %v228 = vunpack.c.h.b16 %v135
    %v229 = vunpack.c.l.b16 %v136
    %v230 = vunpack.c.l.b16 %v137
    %v231 = vunpack.c.h.b16 %v137
    %v232 = vunpack.c.l.b16 %v138
    %v233 = vunpack.c.l.b16 %v139
    %v234 = vunpack.c.h.b16 %v139
    %v235 = vunpack.c.l.b16 %v140
    %v236 = vunpack.c.l.b16 %v141
    %v237 = vunpack.c.h.b16 %v141
    %v238 = vunpack.c.l.b16 %v142
    %v239 = vunpack.c.l.b16 %v143
    %v240 = vunpack.c.h.b16 %v143
    %v241 = vunpack.c.l.b16 %v144
    %v242 = vpack.c.b16 %v197, %v194
    %v243 = vpack.c.b16 %v198, %v195
    %v244 = vpack.c.b16 %v199, %v196
    %v245 = vpack.c.b16 %v203, %v200
    %v246 = vpack.c.b16 %v204, %v201
    %v247 = vpack.c.b16 %v205, %v202
    %v248 = vpack.c.b16 %v209, %v206
    %v249 = vpack.c.b16 %v210, %v207
    %v250 = vpack.c.b16 %v211, %v208
    %v251 = vpack.c.b16 %v215, %v212
    %v252 = vpack.c.b16 %v216, %v213
    %v253 = vpack.c.b16 %v217, %v214
    %v254 = vpack.c.b16 %v221, %v218
    %v255 = vpack.c.b16 %v222, %v219
    %v256 = vpack.c.b16 %v223, %v220
    %v257 = vpack.c.b16 %v227, %v224
    %v258 = vpack.c.b16 %v228, %v225
    %v259 = vpack.c.b16 %v229, %v226
    %v260 = vpack.c.b16 %v233, %v230
    %v261 = vpack.c.b16 %v234, %v231
    %v262 = vpack.c.b16 %v235, %v232
    %v263 = vpack.c.b16 %v239, %v236
    %v264 = vpack.c.b16 %v240, %v237
    %v265 = vpack.c.b16 %v241, %v238
    %290 = vmatprep.subr.bf16.mxu0 %v243
    %291 = vmatpush1.bf16.msra.mxu0 %v242
    %292 = vmatprep.subr.bf16.mxu0 %v246
    %293 = vmatpush1.bf16.msra.mxu0 %v245
    %294 = vmatprep.subr.bf16.mxu0 %v249
    %295 = vmatpush1.bf16.msra.mxu0 %v248
    %296 = vmatprep.subr.bf16.mxu0 %v252
    %297 = vmatpush1.bf16.msra.mxu0 %v251
    %298 = vmatprep.subr.bf16.mxu0 %v255
    %299 = vmatpush1.bf16.msra.mxu0 %v254
    %300 = vmatprep.subr.bf16.mxu0 %v258
    %301 = vmatpush1.bf16.msra.mxu0 %v257
    %302 = vmatprep.subr.bf16.mxu0 %v261
    %303 = vmatpush1.bf16.msra.mxu0 %v260
    %304 = vmatprep.subr.bf16.mxu0 %v264
    %305 = vmatpush1.bf16.msra.mxu0 %v263
    %306 = vmatprep.subr.bf16.mxu0 0
    %307 = vmatpush1.bf16.msra.mxu0 0
    %308 = vmatprep.subr.bf16.mxu0 0
    %309 = vmatpush1.bf16.msra.mxu0 0
    %310 = vmatprep.subr.bf16.mxu0 0
    %311 = vmatpush1.bf16.msra.mxu0 0
    %312 = vmatprep.subr.bf16.mxu0 0
    %313 = vmatpush1.bf16.msra.mxu0 0
    %314 = vmatprep.subr.bf16.mxu0 0
    %315 = vmatpush1.bf16.msra.mxu0 0
    %316 = vmatprep.subr.bf16.mxu0 0
    %317 = vmatpush1.bf16.msra.mxu0 0
    %318 = vmatprep.subr.bf16.mxu0 0
    %319 = vmatpush1.bf16.msra.mxu0 0
    %320 = vmatprep.subr.bf16.mxu0 0
    %321 = vmatpush1.bf16.msra.mxu0 0
    %322 = vmatprep.mubr.bf16.mxu0 0
    %323 = vmatmul.mubr.bf16.gmra.mrb[0].mxu0 %v112
    %v324 = vpop.f32.mrb[0].mxu0
    %v325 = vadd.f32 %v150, %v324
    %v326 = vpop.f32.mrb[0].mxu0
    %v327 = vadd.f32 %v154, %v326
    %v328 = vpop.f32.mrb[0].mxu0
    %v329 = vadd.f32 %v150, %v328
    %v330 = vpop.f32.mrb[0].mxu0
    %v331 = vadd.f32 %v154, %v330
    %332 = vdwg.mxu0
    %333 = vmatprep.subr.bf16.mxu0 0
    %334 = vmatpush1.bf16.msra.mxu0 %v244
    %335 = vmatprep.subr.bf16.mxu0 0
    %336 = vmatpush1.bf16.msra.mxu0 %v247
    %337 = vmatprep.subr.bf16.mxu0 0
    %338 = vmatpush1.bf16.msra.mxu0 %v250
    %339 = vmatprep.subr.bf16.mxu0 0
    %340 = vmatpush1.bf16.msra.mxu0 %v253
    %341 = vmatprep.subr.bf16.mxu0 0
    %342 = vmatpush1.bf16.msra.mxu0 %v256
    %343 = vmatprep.subr.bf16.mxu0 0
    %344 = vmatpush1.bf16.msra.mxu0 %v259
    %345 = vmatprep.subr.bf16.mxu0 0
    %346 = vmatpush1.bf16.msra.mxu0 %v262
    %347 = vmatprep.subr.bf16.mxu0 0
    %348 = vmatpush1.bf16.msra.mxu0 %v265
    %349 = vmatprep.subr.bf16.mxu0 0
    %350 = vmatpush1.bf16.msra.mxu0 0
    %351 = vmatprep.subr.bf16.mxu0 0
    %352 = vmatpush1.bf16.msra.mxu0 0
    %353 = vmatprep.subr.bf16.mxu0 0
    %354 = vmatpush1.bf16.msra.mxu0 0
    %355 = vmatprep.subr.bf16.mxu0 0
    %356 = vmatpush1.bf16.msra.mxu0 0
    %357 = vmatprep.subr.bf16.mxu0 0
    %358 = vmatpush1.bf16.msra.mxu0 0
    %359 = vmatprep.subr.bf16.mxu0 0
    %360 = vmatpush1.bf16.msra.mxu0 0
    %361 = vmatprep.subr.bf16.mxu0 0
    %362 = vmatpush1.bf16.msra.mxu0 0
    %363 = vmatprep.subr.bf16.mxu0 0
    %364 = vmatpush1.bf16.msra.mxu0 0
    %365 = vmatprep.mubr.bf16.mxu0 0
    %366 = vmatmul.mubr.bf16.gmra.mrb[0].mxu0 %v112
    %v367 = vpop.f32.mrb[0].mxu0
    %v368 = vadd.f32 %v158, %v367
    %v369 = vpop.f32.mrb[0].mxu0
    %v370 = vpop.f32.mrb[0].mxu0
    %v371 = vadd.f32 %v158, %v370
    %v372 = vpop.f32.mrb[0].mxu0
    %373 = vdwg.mxu0
    %v374 = vpack.c.bf16 %v329, %v325
    %v375 = vpack.c.bf16 %v331, %v327
    %v376 = vpack.c.bf16 %v371, %v368
    %vm377 = vcmask 261120
    %v379 = vsel %vm377, %v374, 0
    %v382 = vsel %vm377, %v375, 0
    %384 = vmatprep.subr.bf16.mxu0 0
    %385 = vmatpush1.bf16.xpose.msra.mxu0 %v382
    %386 = vmatprep.subr.bf16.mxu0 0
    %387 = vmatpush1.bf16.xpose.msra.mxu0 0
    %388 = vmatprep.subr.bf16.mxu0 0
    %389 = vmatpush1.bf16.xpose.msra.mxu0 0
    %390 = vmatprep.subr.bf16.mxu0 0
    %391 = vmatpush1.bf16.xpose.msra.mxu0 0
    %392 = vmatprep.subr.bf16.mxu0 0
    %393 = vmatpush1.bf16.xpose.msra.mxu0 0
    %394 = vmatprep.subr.bf16.mxu0 0
    %395 = vmatpush1.bf16.xpose.msra.mxu0 0
    %396 = vmatprep.subr.bf16.mxu0 0
    %397 = vmatpush1.bf16.xpose.msra.mxu0 0
    %398 = vmatprep.subr.bf16.mxu0 0
    %399 = vmatpush1.bf16.xpose.msra.mxu0 0
    %400 = vmatprep.subr.bf16.mxu0 0
    %401 = vmatpush1.bf16.xpose.msra.mxu0 0
    %402 = vmatprep.subr.bf16.mxu0 0
    %403 = vmatpush1.bf16.xpose.msra.mxu0 0
    %404 = vmatprep.subr.bf16.mxu0 0
    %405 = vmatpush1.bf16.xpose.msra.mxu0 0
    %406 = vmatprep.subr.bf16.mxu0 0
    %407 = vmatpush1.bf16.xpose.msra.mxu0 0
    %408 = vmatprep.subr.bf16.mxu0 0
    %409 = vmatpush1.bf16.xpose.msra.mxu0 0
    %410 = vmatprep.subr.bf16.mxu0 0
    %411 = vmatpush1.bf16.xpose.msra.mxu0 0
    %412 = vmatprep.subr.bf16.mxu0 0
    %413 = vmatpush1.bf16.xpose.msra.mxu0 0
    %414 = vmatprep.subr.bf16.mxu0 0
    %415 = vmatpush1.bf16.xpose.msra.mxu0 0
    %416 = vmatprep.mubr.bf16.mxu0 0
    %417 = vmatmul.mubr.bf16.gmra.mrb[0].mxu0 %v379
    %v418 = vpop.f32.mrb[0].mxu0
    %v419 = vadd.f32 %v110, %v418
    %v420 = vpop.f32.mrb[0].mxu0
    %v421 = vpop.f32.mrb[0].mxu0
    %v422 = vadd.f32 %v111, %v421
    %v423 = vpop.f32.mrb[0].mxu0
    %424 = vdwg.mxu0
    %vm425 = vcmask 130048
    %v426 = vsel %vm425, %v419, -inf
    %427 = vmax.xlane.f32.xlu0 %v426
    %v428 = vpop.xlane.xlu0 %427
    %v429 = vsel %vm425, %v422, -inf
    %430 = vmax.xlane.f32.xlu0 %v429
    %v431 = vpop.xlane.xlu0 %430
    %v432 = vsub.f32 %v419, %v428
    %v433 = vsub.f32 %v422, %v431
    %v434 = vmul.f32 %v432, 1.442695
    %v435 = vpow.pop %v434
    %v436 = vmul.f32 %v433, 1.442695
    %v437 = vpow.pop %v436
    %v438 = vsel %vm425, %v435, 0.0
    %439 = vadd.xlane.f32.xlu0 %v438
    %v440 = vpop.xlane.xlu0 %439
    %v441 = vsel %vm425, %v437, 0.0
    %442 = vadd.xlane.f32.xlu0 %v441
    %v443 = vpop.xlane.xlu0 %442
    %v444 = vrcp.pop %v440
    %v445 = vrcp.pop %v443
    %v446 = vmul.f32 %v435, %v444
    %v447 = vmul.f32 %v437, %v445
    %v448 = vpack.c.bf16 %v447, %v446
    %v450 = vsel %vm425, %v448, 0
    %452 = vmatprep.subr.bf16.mxu0 0
    %453 = vmatpush1.bf16.msra.mxu0 %v376
    %454 = vmatprep.subr.bf16.mxu0 0
    %455 = vmatpush1.bf16.msra.mxu0 0
    %456 = vmatprep.subr.bf16.mxu0 0
    %457 = vmatpush1.bf16.msra.mxu0 0
    %458 = vmatprep.subr.bf16.mxu0 0
    %459 = vmatpush1.bf16.msra.mxu0 0
    %460 = vmatprep.subr.bf16.mxu0 0
    %461 = vmatpush1.bf16.msra.mxu0 0
    %462 = vmatprep.subr.bf16.mxu0 0
    %463 = vmatpush1.bf16.msra.mxu0 0
    %464 = vmatprep.subr.bf16.mxu0 0
    %465 = vmatpush1.bf16.msra.mxu0 0
    %466 = vmatprep.subr.bf16.mxu0 0
    %467 = vmatpush1.bf16.msra.mxu0 0
    %468 = vmatprep.subr.bf16.mxu0 0
    %469 = vmatpush1.bf16.msra.mxu0 0
    %470 = vmatprep.subr.bf16.mxu0 0
    %471 = vmatpush1.bf16.msra.mxu0 0
    %472 = vmatprep.subr.bf16.mxu0 0
    %473 = vmatpush1.bf16.msra.mxu0 0
    %474 = vmatprep.subr.bf16.mxu0 0
    %475 = vmatpush1.bf16.msra.mxu0 0
    %476 = vmatprep.subr.bf16.mxu0 0
    %477 = vmatpush1.bf16.msra.mxu0 0
    %478 = vmatprep.subr.bf16.mxu0 0
    %479 = vmatpush1.bf16.msra.mxu0 0
    %480 = vmatprep.subr.bf16.mxu0 0
    %481 = vmatpush1.bf16.msra.mxu0 0
    %482 = vmatprep.subr.bf16.mxu0 0
    %483 = vmatpush1.bf16.msra.mxu0 0
    %484 = vmatprep.mubr.bf16.mxu0 0
    %485 = vmatmul.mubr.bf16.gmra.mrb[0].mxu0 %v450
    %v486 = vpop.f32.mrb[0].mxu0
    %v487 = vadd.f32 0.0, %v486
    %v488 = vpop.f32.mrb[0].mxu0
    %v489 = vpop.f32.mrb[0].mxu0
    %v490 = vadd.f32 0.0, %v489
    %v491 = vpop.f32.mrb[0].mxu0
    %492 = vdwg.mxu0
    %494 = vrot.lane.b32.xlu0 %v374, 96
    %v495 = vpop.permute.xlu0 %494
    %497 = vrot.lane.b32.xlu0 %v375, 96
    %v498 = vpop.permute.xlu0 %497
    %v500 = vsel %vm377, %v495, 0
    %v503 = vsel %vm377, %v498, 0
    %505 = vmatprep.subr.bf16.mxu0 0
    %506 = vmatpush1.bf16.xpose.msra.mxu0 %v503
    %507 = vmatprep.subr.bf16.mxu0 0
    %508 = vmatpush1.bf16.xpose.msra.mxu0 0
    %509 = vmatprep.subr.bf16.mxu0 0
    %510 = vmatpush1.bf16.xpose.msra.mxu0 0
    %511 = vmatprep.subr.bf16.mxu0 0
    %512 = vmatpush1.bf16.xpose.msra.mxu0 0
    %513 = vmatprep.subr.bf16.mxu0 0
    %514 = vmatpush1.bf16.xpose.msra.mxu0 0
    %515 = vmatprep.subr.bf16.mxu0 0
    %516 = vmatpush1.bf16.xpose.msra.mxu0 0
    %517 = vmatprep.subr.bf16.mxu0 0
    %518 = vmatpush1.bf16.xpose.msra.mxu0 0
    %519 = vmatprep.subr.bf16.mxu0 0
    %520 = vmatpush1.bf16.xpose.msra.mxu0 0
    %521 = vmatprep.subr.bf16.mxu0 0
    %522 = vmatpush1.bf16.xpose.msra.mxu0 0
    %523 = vmatprep.subr.bf16.mxu0 0
    %524 = vmatpush1.bf16.xpose.msra.mxu0 0
    %525 = vmatprep.subr.bf16.mxu0 0
    %526 = vmatpush1.bf16.xpose.msra.mxu0 0
    %527 = vmatprep.subr.bf16.mxu0 0
    %528 = vmatpush1.bf16.xpose.msra.mxu0 0
    %529 = vmatprep.subr.bf16.mxu0 0
    %530 = vmatpush1.bf16.xpose.msra.mxu0 0
    %531 = vmatprep.subr.bf16.mxu0 0
    %532 = vmatpush1.bf16.xpose.msra.mxu0 0
    %533 = vmatprep.subr.bf16.mxu0 0
    %534 = vmatpush1.bf16.xpose.msra.mxu0 0
    %535 = vmatprep.subr.bf16.mxu0 0
    %536 = vmatpush1.bf16.xpose.msra.mxu0 0
    %537 = vmatprep.mubr.bf16.mxu0 0
    %538 = vmatmul.mubr.bf16.gmra.mrb[0].mxu0 %v500
    %v539 = vpop.f32.mrb[0].mxu0
    %v540 = vadd.f32 %v110, %v539
    %v541 = vpop.f32.mrb[0].mxu0
    %v542 = vpop.f32.mrb[0].mxu0
    %v543 = vadd.f32 %v111, %v542
    %v544 = vpop.f32.mrb[0].mxu0
    %545 = vdwg.mxu0
    %v546 = vsel %vm425, %v540, -inf
    %547 = vmax.xlane.f32.xlu0 %v546
    %v548 = vpop.xlane.xlu0 %547
    %v549 = vsel %vm425, %v543, -inf
    %550 = vmax.xlane.f32.xlu0 %v549
    %v551 = vpop.xlane.xlu0 %550
    %v552 = vsub.f32 %v540, %v548
    %v553 = vsub.f32 %v543, %v551
    %v554 = vmul.f32 %v552, 1.442695
    %v555 = vpow.pop %v554
    %v556 = vmul.f32 %v553, 1.442695
    %v557 = vpow.pop %v556
    %v558 = vsel %vm425, %v555, 0.0
    %559 = vadd.xlane.f32.xlu0 %v558
    %v560 = vpop.xlane.xlu0 %559
    %v561 = vsel %vm425, %v557, 0.0
    %562 = vadd.xlane.f32.xlu0 %v561
    %v563 = vpop.xlane.xlu0 %562
    %v564 = vrcp.pop %v560
    %v565 = vrcp.pop %v563
    %v566 = vmul.f32 %v555, %v564
    %v567 = vmul.f32 %v557, %v565
    %v568 = vpack.c.bf16 %v567, %v566
    %570 = vrot.lane.b32.xlu0 %v376, 96
    %v571 = vpop.permute.xlu0 %570
    %v574 = vsel %vm425, %v568, 0
    %576 = vmatprep.subr.bf16.mxu0 0
    %577 = vmatpush1.bf16.msra.mxu0 %v571
    %578 = vmatprep.subr.bf16.mxu0 0
    %579 = vmatpush1.bf16.msra.mxu0 0
    %580 = vmatprep.subr.bf16.mxu0 0
    %581 = vmatpush1.bf16.msra.mxu0 0
    %582 = vmatprep.subr.bf16.mxu0 0
    %583 = vmatpush1.bf16.msra.mxu0 0
    %584 = vmatprep.subr.bf16.mxu0 0
    %585 = vmatpush1.bf16.msra.mxu0 0
    %586 = vmatprep.subr.bf16.mxu0 0
    %587 = vmatpush1.bf16.msra.mxu0 0
    %588 = vmatprep.subr.bf16.mxu0 0
    %589 = vmatpush1.bf16.msra.mxu0 0
    %590 = vmatprep.subr.bf16.mxu0 0
    %591 = vmatpush1.bf16.msra.mxu0 0
    %592 = vmatprep.subr.bf16.mxu0 0
    %593 = vmatpush1.bf16.msra.mxu0 0
    %594 = vmatprep.subr.bf16.mxu0 0
    %595 = vmatpush1.bf16.msra.mxu0 0
    %596 = vmatprep.subr.bf16.mxu0 0
    %597 = vmatpush1.bf16.msra.mxu0 0
    %598 = vmatprep.subr.bf16.mxu0 0
    %599 = vmatpush1.bf16.msra.mxu0 0
    %600 = vmatprep.subr.bf16.mxu0 0
    %601 = vmatpush1.bf16.msra.mxu0 0
    %602 = vmatprep.subr.bf16.mxu0 0
    %603 = vmatpush1.bf16.msra.mxu0 0
    %604 = vmatprep.subr.bf16.mxu0 0
    %605 = vmatpush1.bf16.msra.mxu0 0
    %606 = vmatprep.subr.bf16.mxu0 0
    %607 = vmatpush1.bf16.msra.mxu0 0
    %608 = vmatprep.mubr.bf16.mxu0 0
    %609 = vmatmul.mubr.bf16.gmra.mrb[0].mxu0 %v574
    %v610 = vpop.f32.mrb[0].mxu0
    %v611 = vadd.f32 0.0, %v610
    %v612 = vpop.f32.mrb[0].mxu0
    %v613 = vpop.f32.mrb[0].mxu0
    %v614 = vadd.f32 0.0, %v613
    %v615 = vpop.f32.mrb[0].mxu0
    %616 = vdwg.mxu0
    %617 = vrot.lane.b32.xlu0 %v374, 64
    %v618 = vpop.permute.xlu0 %617
    %619 = vrot.lane.b32.xlu0 %v375, 64
    %v620 = vpop.permute.xlu0 %619
    %v622 = vsel %vm377, %v618, 0
    %v625 = vsel %vm377, %v620, 0
    %627 = vmatprep.subr.bf16.mxu0 0
    %628 = vmatpush1.bf16.xpose.msra.mxu0 %v625
    %629 = vmatprep.subr.bf16.mxu0 0
    %630 = vmatpush1.bf16.xpose.msra.mxu0 0
    %631 = vmatprep.subr.bf16.mxu0 0
    %632 = vmatpush1.bf16.xpose.msra.mxu0 0
    %633 = vmatprep.subr.bf16.mxu0 0
    %634 = vmatpush1.bf16.xpose.msra.mxu0 0
    %635 = vmatprep.subr.bf16.mxu0 0
    %636 = vmatpush1.bf16.xpose.msra.mxu0 0
    %637 = vmatprep.subr.bf16.mxu0 0
    %638 = vmatpush1.bf16.xpose.msra.mxu0 0
    %639 = vmatprep.subr.bf16.mxu0 0
    %640 = vmatpush1.bf16.xpose.msra.mxu0 0
    %641 = vmatprep.subr.bf16.mxu0 0
    %642 = vmatpush1.bf16.xpose.msra.mxu0 0
    %643 = vmatprep.subr.bf16.mxu0 0
    %644 = vmatpush1.bf16.xpose.msra.mxu0 0
    %645 = vmatprep.subr.bf16.mxu0 0
    %646 = vmatpush1.bf16.xpose.msra.mxu0 0
    %647 = vmatprep.subr.bf16.mxu0 0
    %648 = vmatpush1.bf16.xpose.msra.mxu0 0
    %649 = vmatprep.subr.bf16.mxu0 0
    %650 = vmatpush1.bf16.xpose.msra.mxu0 0
    %651 = vmatprep.subr.bf16.mxu0 0
    %652 = vmatpush1.bf16.xpose.msra.mxu0 0
    %653 = vmatprep.subr.bf16.mxu0 0
    %654 = vmatpush1.bf16.xpose.msra.mxu0 0
    %655 = vmatprep.subr.bf16.mxu0 0
    %656 = vmatpush1.bf16.xpose.msra.mxu0 0
    %657 = vmatprep.subr.bf16.mxu0 0
    %658 = vmatpush1.bf16.xpose.msra.mxu0 0
    %659 = vmatprep.mubr.bf16.mxu0 0
    %660 = vmatmul.mubr.bf16.gmra.mrb[0].mxu0 %v622
    %v661 = vpop.f32.mrb[0].mxu0
    %v662 = vadd.f32 %v110, %v661
    %v663 = vpop.f32.mrb[0].mxu0
    %v664 = vpop.f32.mrb[0].mxu0
    %v665 = vadd.f32 %v111, %v664
    %v666 = vpop.f32.mrb[0].mxu0
    %667 = vdwg.mxu0
    %v668 = vsel %vm425, %v662, -inf
    %669 = vmax.xlane.f32.xlu0 %v668
    %v670 = vpop.xlane.xlu0 %669
    %v671 = vsel %vm425, %v665, -inf
    %672 = vmax.xlane.f32.xlu0 %v671
    %v673 = vpop.xlane.xlu0 %672
    %v674 = vsub.f32 %v662, %v670
    %v675 = vsub.f32 %v665, %v673
    %v676 = vmul.f32 %v674, 1.442695
    %v677 = vpow.pop %v676
    %v678 = vmul.f32 %v675, 1.442695
    %v679 = vpow.pop %v678
    %v680 = vsel %vm425, %v677, 0.0
    %681 = vadd.xlane.f32.xlu0 %v680
    %v682 = vpop.xlane.xlu0 %681
    %v683 = vsel %vm425, %v679, 0.0
    %684 = vadd.xlane.f32.xlu0 %v683
    %v685 = vpop.xlane.xlu0 %684
    %v686 = vrcp.pop %v682
    %v687 = vrcp.pop %v685
    %v688 = vmul.f32 %v677, %v686
    %v689 = vmul.f32 %v679, %v687
    %v690 = vpack.c.bf16 %v689, %v688
    %691 = vrot.lane.b32.xlu0 %v376, 64
    %v692 = vpop.permute.xlu0 %691
    %v695 = vsel %vm425, %v690, 0
    %697 = vmatprep.subr.bf16.mxu0 0
    %698 = vmatpush1.bf16.msra.mxu0 %v692
    %699 = vmatprep.subr.bf16.mxu0 0
    %700 = vmatpush1.bf16.msra.mxu0 0
    %701 = vmatprep.subr.bf16.mxu0 0
    %702 = vmatpush1.bf16.msra.mxu0 0
    %703 = vmatprep.subr.bf16.mxu0 0
    %704 = vmatpush1.bf16.msra.mxu0 0
    %705 = vmatprep.subr.bf16.mxu0 0
    %706 = vmatpush1.bf16.msra.mxu0 0
    %707 = vmatprep.subr.bf16.mxu0 0
    %708 = vmatpush1.bf16.msra.mxu0 0
    %709 = vmatprep.subr.bf16.mxu0 0
    %710 = vmatpush1.bf16.msra.mxu0 0
    %711 = vmatprep.subr.bf16.mxu0 0
    %712 = vmatpush1.bf16.msra.mxu0 0
    %713 = vmatprep.subr.bf16.mxu0 0
    %714 = vmatpush1.bf16.msra.mxu0 0
    %715 = vmatprep.subr.bf16.mxu0 0
    %716 = vmatpush1.bf16.msra.mxu0 0
    %717 = vmatprep.subr.bf16.mxu0 0
    %718 = vmatpush1.bf16.msra.mxu0 0
    %719 = vmatprep.subr.bf16.mxu0 0
    %720 = vmatpush1.bf16.msra.mxu0 0
    %721 = vmatprep.subr.bf16.mxu0 0
    %722 = vmatpush1.bf16.msra.mxu0 0
    %723 = vmatprep.subr.bf16.mxu0 0
    %724 = vmatpush1.bf16.msra.mxu0 0
    %725 = vmatprep.subr.bf16.mxu0 0
    %726 = vmatpush1.bf16.msra.mxu0 0
    %727 = vmatprep.subr.bf16.mxu0 0
    %728 = vmatpush1.bf16.msra.mxu0 0
    %729 = vmatprep.mubr.bf16.mxu0 0
    %730 = vmatmul.mubr.bf16.gmra.mrb[0].mxu0 %v695
    %v731 = vpop.f32.mrb[0].mxu0
    %v732 = vadd.f32 0.0, %v731
    %v733 = vpop.f32.mrb[0].mxu0
    %v734 = vpop.f32.mrb[0].mxu0
    %v735 = vadd.f32 0.0, %v734
    %v736 = vpop.f32.mrb[0].mxu0
    %737 = vdwg.mxu0
    %738 = vrot.lane.b32.xlu0 %v374, 32
    %v739 = vpop.permute.xlu0 %738
    %740 = vrot.lane.b32.xlu0 %v375, 32
    %v741 = vpop.permute.xlu0 %740
    %v743 = vsel %vm377, %v739, 0
    %v746 = vsel %vm377, %v741, 0
    %748 = vmatprep.subr.bf16.mxu0 0
    %749 = vmatpush1.bf16.xpose.msra.mxu0 %v746
    %750 = vmatprep.subr.bf16.mxu0 0
    %751 = vmatpush1.bf16.xpose.msra.mxu0 0
    %752 = vmatprep.subr.bf16.mxu0 0
    %753 = vmatpush1.bf16.xpose.msra.mxu0 0
    %754 = vmatprep.subr.bf16.mxu0 0
    %755 = vmatpush1.bf16.xpose.msra.mxu0 0
    %756 = vmatprep.subr.bf16.mxu0 0
    %757 = vmatpush1.bf16.xpose.msra.mxu0 0
    %758 = vmatprep.subr.bf16.mxu0 0
    %759 = vmatpush1.bf16.xpose.msra.mxu0 0
    %760 = vmatprep.subr.bf16.mxu0 0
    %761 = vmatpush1.bf16.xpose.msra.mxu0 0
    %762 = vmatprep.subr.bf16.mxu0 0
    %763 = vmatpush1.bf16.xpose.msra.mxu0 0
    %764 = vmatprep.subr.bf16.mxu0 0
    %765 = vmatpush1.bf16.xpose.msra.mxu0 0
    %766 = vmatprep.subr.bf16.mxu0 0
    %767 = vmatpush1.bf16.xpose.msra.mxu0 0
    %768 = vmatprep.subr.bf16.mxu0 0
    %769 = vmatpush1.bf16.xpose.msra.mxu0 0
    %770 = vmatprep.subr.bf16.mxu0 0
    %771 = vmatpush1.bf16.xpose.msra.mxu0 0
    %772 = vmatprep.subr.bf16.mxu0 0
    %773 = vmatpush1.bf16.xpose.msra.mxu0 0
    %774 = vmatprep.subr.bf16.mxu0 0
    %775 = vmatpush1.bf16.xpose.msra.mxu0 0
    %776 = vmatprep.subr.bf16.mxu0 0
    %777 = vmatpush1.bf16.xpose.msra.mxu0 0
    %778 = vmatprep.subr.bf16.mxu0 0
    %779 = vmatpush1.bf16.xpose.msra.mxu0 0
    %780 = vmatprep.mubr.bf16.mxu0 0
    %781 = vmatmul.mubr.bf16.gmra.mrb[0].mxu0 %v743
    %v782 = vpop.f32.mrb[0].mxu0
    %v783 = vadd.f32 %v110, %v782
    %v784 = vpop.f32.mrb[0].mxu0
    %v785 = vpop.f32.mrb[0].mxu0
    %v786 = vadd.f32 %v111, %v785
    %v787 = vpop.f32.mrb[0].mxu0
    %788 = vdwg.mxu0
    %v789 = vsel %vm425, %v783, -inf
    %790 = vmax.xlane.f32.xlu0 %v789
    %v791 = vpop.xlane.xlu0 %790
    %v792 = vsel %vm425, %v786, -inf
    %793 = vmax.xlane.f32.xlu0 %v792
    %v794 = vpop.xlane.xlu0 %793
    %v795 = vsub.f32 %v783, %v791
    %v796 = vsub.f32 %v786, %v794
    %v797 = vmul.f32 %v795, 1.442695
    %v798 = vpow.pop %v797
    %v799 = vmul.f32 %v796, 1.442695
    %v800 = vpow.pop %v799
    %v801 = vsel %vm425, %v798, 0.0
    %802 = vadd.xlane.f32.xlu0 %v801
    %v803 = vpop.xlane.xlu0 %802
    %v804 = vsel %vm425, %v800, 0.0
    %805 = vadd.xlane.f32.xlu0 %v804
    %v806 = vpop.xlane.xlu0 %805
    %v807 = vrcp.pop %v803
    %v808 = vrcp.pop %v806
    %v809 = vmul.f32 %v798, %v807
    %v810 = vmul.f32 %v800, %v808
    %v811 = vpack.c.bf16 %v810, %v809
    %812 = vrot.lane.b32.xlu0 %v376, 32
    %v813 = vpop.permute.xlu0 %812
    %v816 = vsel %vm425, %v811, 0
    %818 = vmatprep.subr.bf16.mxu0 0
    %819 = vmatpush1.bf16.msra.mxu0 %v813
    %820 = vmatprep.subr.bf16.mxu0 0
    %821 = vmatpush1.bf16.msra.mxu0 0
    %822 = vmatprep.subr.bf16.mxu0 0
    %823 = vmatpush1.bf16.msra.mxu0 0
    %824 = vmatprep.subr.bf16.mxu0 0
    %825 = vmatpush1.bf16.msra.mxu0 0
    %826 = vmatprep.subr.bf16.mxu0 0
    %827 = vmatpush1.bf16.msra.mxu0 0
    %828 = vmatprep.subr.bf16.mxu0 0
    %829 = vmatpush1.bf16.msra.mxu0 0
    %830 = vmatprep.subr.bf16.mxu0 0
    %831 = vmatpush1.bf16.msra.mxu0 0
    %832 = vmatprep.subr.bf16.mxu0 0
    %833 = vmatpush1.bf16.msra.mxu0 0
    %834 = vmatprep.subr.bf16.mxu0 0
    %835 = vmatpush1.bf16.msra.mxu0 0
    %836 = vmatprep.subr.bf16.mxu0 0
    %837 = vmatpush1.bf16.msra.mxu0 0
    %838 = vmatprep.subr.bf16.mxu0 0
    %839 = vmatpush1.bf16.msra.mxu0 0
    %840 = vmatprep.subr.bf16.mxu0 0
    %841 = vmatpush1.bf16.msra.mxu0 0
    %842 = vmatprep.subr.bf16.mxu0 0
    %843 = vmatpush1.bf16.msra.mxu0 0
    %844 = vmatprep.subr.bf16.mxu0 0
    %845 = vmatpush1.bf16.msra.mxu0 0
    %846 = vmatprep.subr.bf16.mxu0 0
    %847 = vmatpush1.bf16.msra.mxu0 0
    %848 = vmatprep.subr.bf16.mxu0 0
    %849 = vmatpush1.bf16.msra.mxu0 0
    %850 = vmatprep.mubr.bf16.mxu0 0
    %851 = vmatmul.mubr.bf16.gmra.mrb[0].mxu0 %v816
    %v852 = vpop.f32.mrb[0].mxu0
    %v853 = vadd.f32 0.0, %v852
    %v854 = vpop.f32.mrb[0].mxu0
    %v855 = vpop.f32.mrb[0].mxu0
    %v856 = vadd.f32 0.0, %v855
    %v857 = vpop.f32.mrb[0].mxu0
    %858 = vdwg.mxu0
    %861 = vrot.lane.b32.xlu0 %v611, 32
    %v862 = vpop.permute.xlu0 %861
    %863 = vrot.lane.b32.xlu0 %v614, 32
    %v864 = vpop.permute.xlu0 %863
    %869 = vrot.lane.b32.xlu0 %v732, 64
    %v870 = vpop.permute.xlu0 %869
    %871 = vrot.lane.b32.xlu0 %v735, 64
    %v872 = vpop.permute.xlu0 %871
    %877 = vrot.lane.b32.xlu0 %v853, 96
    %v878 = vpop.permute.xlu0 %877
    %879 = vrot.lane.b32.xlu0 %v856, 96
    %v880 = vpop.permute.xlu0 %879
    %v883 = vsel %vm377, %v487, %v862
    %v884 = vsel %vm377, %v490, %v864
    %vm885 = vcmask 523264
    %v886 = vsel %vm885, %v883, %v870
    %v887 = vsel %vm885, %v884, %v872
    %vm888 = vcmask 785408
    %v889 = vsel %vm888, %v886, %v878
    %v890 = vsel %vm888, %v887, %v880
    %v891 = vpack.c.bf16 %v890, %v889
    %v892 = vld [vmem:[%s6] sm:$0xf]
    %v893 = vld [vmem:[%s6 + $0x4] sm:$0xf]
    %v894 = vld [vmem:[%s6 + $0x8] sm:$0xf]
    %v895 = vld [vmem:[%s6 + $0xc] sm:$0xf]
    %v896 = vld [vmem:[%s6 + $0x10] sm:$0xf]
    %v897 = vld [vmem:[%s6 + $0x14] sm:$0xf]
    %v898 = vld [vmem:[%s6 + $0x18] sm:$0xf]
    %v899 = vld [vmem:[%s6 + $0x1c] sm:$0xf]
    %v900 = vld [vmem:[%s6 + $0x20] sm:$0xf]
    %v901 = vld [vmem:[%s6 + $0x24] sm:$0xf]
    %v902 = vld [vmem:[%s6 + $0x28] sm:$0xf]
    %v903 = vld [vmem:[%s6 + $0x2c] sm:$0xf]
    %v904 = vld [vmem:[%s6 + $0x30] sm:$0xf]
    %v905 = vld [vmem:[%s6 + $0x34] sm:$0xf]
    %v906 = vld [vmem:[%s6 + $0x38] sm:$0xf]
    %v907 = vld [vmem:[%s6 + $0x3c] sm:$0xf]
    %v908 = vld [vmem:[%s7] sm:$0x1]
    %v910 = vlaneseq
    %v911 = vshrl.u32 %v910, 7
    %v912 = vsub.s32 0, %v911
    %v913 = vrot.slane %v908, %v912
    %v931 = vunpack.c.l.b16 %v892
    %v932 = vunpack.c.l.b16 %v893
    %v933 = vunpack.c.l.b16 %v894
    %v934 = vunpack.c.l.b16 %v895
    %v935 = vunpack.c.l.b16 %v896
    %v936 = vunpack.c.l.b16 %v897
    %v937 = vunpack.c.l.b16 %v898
    %v938 = vunpack.c.l.b16 %v899
    %v939 = vunpack.c.l.b16 %v900
    %v940 = vunpack.c.l.b16 %v901
    %v941 = vunpack.c.l.b16 %v902
    %v942 = vunpack.c.l.b16 %v903
    %v943 = vunpack.c.l.b16 %v904
    %v944 = vunpack.c.l.b16 %v905
    %v945 = vunpack.c.l.b16 %v906
    %v946 = vunpack.c.l.b16 %v907
    %v947 = vpack.c.b16 %v932, %v931
    %v948 = vpack.c.b16 %v934, %v933
    %v949 = vpack.c.b16 %v936, %v935
    %v950 = vpack.c.b16 %v938, %v937
    %v951 = vpack.c.b16 %v940, %v939
    %v952 = vpack.c.b16 %v942, %v941
    %v953 = vpack.c.b16 %v944, %v943
    %v954 = vpack.c.b16 %v946, %v945
    %963 = vmatprep.subr.bf16.mxu0 0
    %964 = vmatpush1.bf16.msra.mxu0 %v947
    %965 = vmatprep.subr.bf16.mxu0 0
    %966 = vmatpush1.bf16.msra.mxu0 %v948
    %967 = vmatprep.subr.bf16.mxu0 0
    %968 = vmatpush1.bf16.msra.mxu0 %v949
    %969 = vmatprep.subr.bf16.mxu0 0
    %970 = vmatpush1.bf16.msra.mxu0 %v950
    %971 = vmatprep.subr.bf16.mxu0 0
    %972 = vmatpush1.bf16.msra.mxu0 %v951
    %973 = vmatprep.subr.bf16.mxu0 0
    %974 = vmatpush1.bf16.msra.mxu0 %v952
    %975 = vmatprep.subr.bf16.mxu0 0
    %976 = vmatpush1.bf16.msra.mxu0 %v953
    %977 = vmatprep.subr.bf16.mxu0 0
    %978 = vmatpush1.bf16.msra.mxu0 %v954
    %979 = vmatprep.subr.bf16.mxu0 0
    %980 = vmatpush1.bf16.msra.mxu0 0
    %981 = vmatprep.subr.bf16.mxu0 0
    %982 = vmatpush1.bf16.msra.mxu0 0
    %983 = vmatprep.subr.bf16.mxu0 0
    %984 = vmatpush1.bf16.msra.mxu0 0
    %985 = vmatprep.subr.bf16.mxu0 0
    %986 = vmatpush1.bf16.msra.mxu0 0
    %987 = vmatprep.subr.bf16.mxu0 0
    %988 = vmatpush1.bf16.msra.mxu0 0
    %989 = vmatprep.subr.bf16.mxu0 0
    %990 = vmatpush1.bf16.msra.mxu0 0
    %991 = vmatprep.subr.bf16.mxu0 0
    %992 = vmatpush1.bf16.msra.mxu0 0
    %993 = vmatprep.subr.bf16.mxu0 0
    %994 = vmatpush1.bf16.msra.mxu0 0
    %995 = vmatprep.mubr.bf16.mxu0 0
    %996 = vmatmul.mubr.bf16.gmra.mrb[0].mxu0 %v891
    %v997 = vpop.f32.mrb[0].mxu0
    %v998 = vadd.f32 %v913, %v997
    %v999 = vpop.f32.mrb[0].mxu0
    %v1000 = vpop.f32.mrb[0].mxu0
    %v1001 = vadd.f32 %v913, %v1000
    %v1002 = vpop.f32.mrb[0].mxu0
    %1003 = vdwg.mxu0
    %v1004 = vadd.f32 %v998, %v108
    %v1005 = vadd.f32 %v1001, %v109
    %v1006 = vld [vmem:[%s8] sm:$0x1]
    %v1007 = vld [vmem:[%s9] sm:$0x1]
    %1008 = vadd.xlane.f32.xlu0 %v1004
    %v1009 = vpop.xlane.xlu0 %1008
    %1010 = vadd.xlane.f32.xlu0 %v1005
    %v1011 = vpop.xlane.xlu0 %1010
    %v1012 = vmul.f32 %v1009, %v75
    %v1013 = vmul.f32 %v1011, %v75
    %v1014 = vsub.f32 %v1004, %v1012
    %v1015 = vsub.f32 %v1005, %v1013
    %v1016 = vmul.f32 %v1014, %v1014
    %v1017 = vmul.f32 %v1015, %v1015
    %1018 = vadd.xlane.f32.xlu0 %v1016
    %v1019 = vpop.xlane.xlu0 %1018
    %1020 = vadd.xlane.f32.xlu0 %v1017
    %v1021 = vpop.xlane.xlu0 %1020
    %v1022 = vmul.f32 %v1019, %v75
    %v1023 = vmul.f32 %v1021, %v75
    %v1024 = vadd.f32 %v1022, 1e-12
    %v1025 = vadd.f32 %v1023, 1e-12
    %v1026 = vrsqrt.pop %v1024
    %v1027 = vrsqrt.pop %v1025
    %v1028 = vmul.f32 %v1014, %v1026
    %v1029 = vmul.f32 %v1015, %v1027
    %v1031 = vlaneseq
    %v1032 = vshrl.u32 %v1031, 7
    %v1033 = vsub.s32 0, %v1032
    %v1034 = vrot.slane %v1006, %v1033
    %v1036 = vmul.f32 %v1028, %v1034
    %v1037 = vmul.f32 %v1029, %v1034
    %v1039 = vlaneseq
    %v1040 = vshrl.u32 %v1039, 7
    %v1041 = vsub.s32 0, %v1040
    %v1042 = vrot.slane %v1007, %v1041
    %v1044 = vadd.f32 %v1036, %v1042
    %v1045 = vadd.f32 %v1037, %v1042
    %v1046 = vpack.c.bf16 %v1045, %v1044
    %v1047 = vld [vmem:[%s10] sm:$0xff]
    %v1048 = vld [vmem:[%s10 + $0x8] sm:$0xff]
    %v1049 = vld [vmem:[%s10 + $0x10] sm:$0xff]
    %v1050 = vld [vmem:[%s10 + $0x18] sm:$0xff]
    %v1051 = vld [vmem:[%s10 + $0x20] sm:$0xff]
    %v1052 = vld [vmem:[%s10 + $0x28] sm:$0xff]
    %v1053 = vld [vmem:[%s10 + $0x30] sm:$0xff]
    %v1054 = vld [vmem:[%s10 + $0x38] sm:$0xff]
    %v1055 = vld [vmem:[%s10 + $0x40] sm:$0xff]
    %v1056 = vld [vmem:[%s10 + $0x48] sm:$0xff]
    %v1057 = vld [vmem:[%s10 + $0x50] sm:$0xff]
    %v1058 = vld [vmem:[%s10 + $0x58] sm:$0xff]
    %v1059 = vld [vmem:[%s10 + $0x60] sm:$0xff]
    %v1060 = vld [vmem:[%s10 + $0x68] sm:$0xff]
    %v1061 = vld [vmem:[%s10 + $0x70] sm:$0xff]
    %v1062 = vld [vmem:[%s10 + $0x78] sm:$0xff]
    %v1063 = vld [vmem:[%s11] sm:$0x3]
    %v1065 = vlaneseq
    %v1066 = vshrl.u32 %v1065, 7
    %v1067 = vsub.s32 0, %v1066
    %v1068 = vrot.slane %v1063, %v1067
    %v1069 = vlaneseq
    %v1070 = vshrl.u32 %v1069, 7
    %v1071 = vsub.s32 1, %v1070
    %v1072 = vrot.slane %v1063, %v1071
    %v1091 = vunpack.c.l.b16 %v1047
    %v1092 = vunpack.c.h.b16 %v1047
    %v1093 = vunpack.c.l.b16 %v1048
    %v1094 = vunpack.c.h.b16 %v1048
    %v1095 = vunpack.c.l.b16 %v1049
    %v1096 = vunpack.c.h.b16 %v1049
    %v1097 = vunpack.c.l.b16 %v1050
    %v1098 = vunpack.c.h.b16 %v1050
    %v1099 = vunpack.c.l.b16 %v1051
    %v1100 = vunpack.c.h.b16 %v1051
    %v1101 = vunpack.c.l.b16 %v1052
    %v1102 = vunpack.c.h.b16 %v1052
    %v1103 = vunpack.c.l.b16 %v1053
    %v1104 = vunpack.c.h.b16 %v1053
    %v1105 = vunpack.c.l.b16 %v1054
    %v1106 = vunpack.c.h.b16 %v1054
    %v1107 = vunpack.c.l.b16 %v1055
    %v1108 = vunpack.c.h.b16 %v1055
    %v1109 = vunpack.c.l.b16 %v1056
    %v1110 = vunpack.c.h.b16 %v1056
    %v1111 = vunpack.c.l.b16 %v1057
    %v1112 = vunpack.c.h.b16 %v1057
    %v1113 = vunpack.c.l.b16 %v1058
    %v1114 = vunpack.c.h.b16 %v1058
    %v1115 = vunpack.c.l.b16 %v1059
    %v1116 = vunpack.c.h.b16 %v1059
    %v1117 = vunpack.c.l.b16 %v1060
    %v1118 = vunpack.c.h.b16 %v1060
    %v1119 = vunpack.c.l.b16 %v1061
    %v1120 = vunpack.c.h.b16 %v1061
    %v1121 = vunpack.c.l.b16 %v1062
    %v1122 = vunpack.c.h.b16 %v1062
    %v1123 = vpack.c.b16 %v1093, %v1091
    %v1124 = vpack.c.b16 %v1094, %v1092
    %v1125 = vpack.c.b16 %v1097, %v1095
    %v1126 = vpack.c.b16 %v1098, %v1096
    %v1127 = vpack.c.b16 %v1101, %v1099
    %v1128 = vpack.c.b16 %v1102, %v1100
    %v1129 = vpack.c.b16 %v1105, %v1103
    %v1130 = vpack.c.b16 %v1106, %v1104
    %v1131 = vpack.c.b16 %v1109, %v1107
    %v1132 = vpack.c.b16 %v1110, %v1108
    %v1133 = vpack.c.b16 %v1113, %v1111
    %v1134 = vpack.c.b16 %v1114, %v1112
    %v1135 = vpack.c.b16 %v1117, %v1115
    %v1136 = vpack.c.b16 %v1118, %v1116
    %v1137 = vpack.c.b16 %v1121, %v1119
    %v1138 = vpack.c.b16 %v1122, %v1120
    %1155 = vmatprep.subr.bf16.mxu0 %v1124
    %1156 = vmatpush1.bf16.msra.mxu0 %v1123
    %1157 = vmatprep.subr.bf16.mxu0 %v1126
    %1158 = vmatpush1.bf16.msra.mxu0 %v1125
    %1159 = vmatprep.subr.bf16.mxu0 %v1128
    %1160 = vmatpush1.bf16.msra.mxu0 %v1127
    %1161 = vmatprep.subr.bf16.mxu0 %v1130
    %1162 = vmatpush1.bf16.msra.mxu0 %v1129
    %1163 = vmatprep.subr.bf16.mxu0 %v1132
    %1164 = vmatpush1.bf16.msra.mxu0 %v1131
    %1165 = vmatprep.subr.bf16.mxu0 %v1134
    %1166 = vmatpush1.bf16.msra.mxu0 %v1133
    %1167 = vmatprep.subr.bf16.mxu0 %v1136
    %1168 = vmatpush1.bf16.msra.mxu0 %v1135
    %1169 = vmatprep.subr.bf16.mxu0 %v1138
    %1170 = vmatpush1.bf16.msra.mxu0 %v1137
    %1171 = vmatprep.subr.bf16.mxu0 0
    %1172 = vmatpush1.bf16.msra.mxu0 0
    %1173 = vmatprep.subr.bf16.mxu0 0
    %1174 = vmatpush1.bf16.msra.mxu0 0
    %1175 = vmatprep.subr.bf16.mxu0 0
    %1176 = vmatpush1.bf16.msra.mxu0 0
    %1177 = vmatprep.subr.bf16.mxu0 0
    %1178 = vmatpush1.bf16.msra.mxu0 0
    %1179 = vmatprep.subr.bf16.mxu0 0
    %1180 = vmatpush1.bf16.msra.mxu0 0
    %1181 = vmatprep.subr.bf16.mxu0 0
    %1182 = vmatpush1.bf16.msra.mxu0 0
    %1183 = vmatprep.subr.bf16.mxu0 0
    %1184 = vmatpush1.bf16.msra.mxu0 0
    %1185 = vmatprep.subr.bf16.mxu0 0
    %1186 = vmatpush1.bf16.msra.mxu0 0
    %1187 = vmatprep.mubr.bf16.mxu0 0
    %1188 = vmatmul.mubr.bf16.gmra.mrb[0].mxu0 %v1046
    %v1189 = vpop.f32.mrb[0].mxu0
    %v1190 = vadd.f32 %v1068, %v1189
    %v1191 = vpop.f32.mrb[0].mxu0
    %v1192 = vadd.f32 %v1072, %v1191
    %v1193 = vpop.f32.mrb[0].mxu0
    %v1194 = vadd.f32 %v1068, %v1193
    %v1195 = vpop.f32.mrb[0].mxu0
    %v1196 = vadd.f32 %v1072, %v1195
    %1197 = vdwg.mxu0
    %v1198 = vmul.f32 %v1190, %v1190
    %v1199 = vmul.f32 %v1192, %v1192
    %v1200 = vmul.f32 %v1194, %v1194
    %v1201 = vmul.f32 %v1196, %v1196
    %v1202 = vmul.f32 %v1190, %v1198
    %v1203 = vmul.f32 %v1192, %v1199
    %v1204 = vmul.f32 %v1194, %v1200
    %v1205 = vmul.f32 %v1196, %v1201
    %v1206 = vmul.f32 %v1202, 0.044715
    %v1207 = vmul.f32 %v1203, 0.044715
    %v1208 = vmul.f32 %v1204, 0.044715
    %v1209 = vmul.f32 %v1205, 0.044715
    %v1210 = vadd.f32 %v1190, %v1206
    %v1211 = vadd.f32 %v1192, %v1207
    %v1212 = vadd.f32 %v1194, %v1208
    %v1213 = vadd.f32 %v1196, %v1209
    %v1214 = vmul.f32 %v1210, 0.7978846
    %v1215 = vmul.f32 %v1211, 0.7978846
    %v1216 = vmul.f32 %v1212, 0.7978846
    %v1217 = vmul.f32 %v1213, 0.7978846
    %v1218 = vtanh.pop %v1214
    %v1219 = vtanh.pop %v1215
    %v1220 = vtanh.pop %v1216
    %v1221 = vtanh.pop %v1217
    %v1222 = vadd.f32 %v1218, 1.0
    %v1223 = vadd.f32 %v1219, 1.0
    %v1224 = vadd.f32 %v1220, 1.0
    %v1225 = vadd.f32 %v1221, 1.0
    %v1226 = vmul.f32 %v1222, 0.5
    %v1227 = vmul.f32 %v1223, 0.5
    %v1228 = vmul.f32 %v1224, 0.5
    %v1229 = vmul.f32 %v1225, 0.5
    %v1230 = vmul.f32 %v1190, %v1226
    %v1231 = vmul.f32 %v1192, %v1227
    %v1232 = vmul.f32 %v1194, %v1228
    %v1233 = vmul.f32 %v1196, %v1229
    %v1234 = vpack.c.bf16 %v1232, %v1230
    %v1235 = vpack.c.bf16 %v1233, %v1231
    %v1236 = vld [vmem:[%s12] sm:$0xf]
    %v1237 = vld [vmem:[%s12 + $0x4] sm:$0xf]
    %v1238 = vld [vmem:[%s12 + $0x8] sm:$0xf]
    %v1239 = vld [vmem:[%s12 + $0xc] sm:$0xf]
    %v1240 = vld [vmem:[%s12 + $0x10] sm:$0xf]
    %v1241 = vld [vmem:[%s12 + $0x14] sm:$0xf]
    %v1242 = vld [vmem:[%s12 + $0x18] sm:$0xf]
    %v1243 = vld [vmem:[%s12 + $0x1c] sm:$0xf]
    %v1244 = vld [vmem:[%s12 + $0x20] sm:$0xf]
    %v1245 = vld [vmem:[%s12 + $0x24] sm:$0xf]
    %v1246 = vld [vmem:[%s12 + $0x28] sm:$0xf]
    %v1247 = vld [vmem:[%s12 + $0x2c] sm:$0xf]
    %v1248 = vld [vmem:[%s12 + $0x30] sm:$0xf]
    %v1249 = vld [vmem:[%s12 + $0x34] sm:$0xf]
    %v1250 = vld [vmem:[%s12 + $0x38] sm:$0xf]
    %v1251 = vld [vmem:[%s12 + $0x3c] sm:$0xf]
    %v1252 = vld [vmem:[%s12 + $0x40] sm:$0xf]
    %v1253 = vld [vmem:[%s12 + $0x44] sm:$0xf]
    %v1254 = vld [vmem:[%s12 + $0x48] sm:$0xf]
    %v1255 = vld [vmem:[%s12 + $0x4c] sm:$0xf]
    %v1256 = vld [vmem:[%s12 + $0x50] sm:$0xf]
    %v1257 = vld [vmem:[%s12 + $0x54] sm:$0xf]
    %v1258 = vld [vmem:[%s12 + $0x58] sm:$0xf]
    %v1259 = vld [vmem:[%s12 + $0x5c] sm:$0xf]
    %v1260 = vld [vmem:[%s12 + $0x60] sm:$0xf]
    %v1261 = vld [vmem:[%s12 + $0x64] sm:$0xf]
    %v1262 = vld [vmem:[%s12 + $0x68] sm:$0xf]
    %v1263 = vld [vmem:[%s12 + $0x6c] sm:$0xf]
    %v1264 = vld [vmem:[%s12 + $0x70] sm:$0xf]
    %v1265 = vld [vmem:[%s12 + $0x74] sm:$0xf]
    %v1266 = vld [vmem:[%s12 + $0x78] sm:$0xf]
    %v1267 = vld [vmem:[%s12 + $0x7c] sm:$0xf]
    %v1268 = vld [vmem:[%s13] sm:$0x1]
    %v1270 = vlaneseq
    %v1271 = vshrl.u32 %v1270, 7
    %v1272 = vsub.s32 0, %v1271
    %v1273 = vrot.slane %v1268, %v1272
    %v1307 = vunpack.c.l.b16 %v1236
    %v1308 = vunpack.c.l.b16 %v1237
    %v1309 = vunpack.c.l.b16 %v1238
    %v1310 = vunpack.c.l.b16 %v1239
    %v1311 = vunpack.c.l.b16 %v1240
    %v1312 = vunpack.c.l.b16 %v1241
    %v1313 = vunpack.c.l.b16 %v1242
    %v1314 = vunpack.c.l.b16 %v1243
    %v1315 = vunpack.c.l.b16 %v1244
    %v1316 = vunpack.c.l.b16 %v1245
    %v1317 = vunpack.c.l.b16 %v1246
    %v1318 = vunpack.c.l.b16 %v1247
    %v1319 = vunpack.c.l.b16 %v1248
    %v1320 = vunpack.c.l.b16 %v1249
    %v1321 = vunpack.c.l.b16 %v1250
    %v1322 = vunpack.c.l.b16 %v1251
    %v1323 = vunpack.c.l.b16 %v1252
    %v1324 = vunpack.c.l.b16 %v1253
    %v1325 = vunpack.c.l.b16 %v1254
    %v1326 = vunpack.c.l.b16 %v1255
    %v1327 = vunpack.c.l.b16 %v1256
    %v1328 = vunpack.c.l.b16 %v1257
    %v1329 = vunpack.c.l.b16 %v1258
    %v1330 = vunpack.c.l.b16 %v1259
    %v1331 = vunpack.c.l.b16 %v1260
    %v1332 = vunpack.c.l.b16 %v1261
    %v1333 = vunpack.c.l.b16 %v1262
    %v1334 = vunpack.c.l.b16 %v1263
    %v1335 = vunpack.c.l.b16 %v1264
    %v1336 = vunpack.c.l.b16 %v1265
    %v1337 = vunpack.c.l.b16 %v1266
    %v1338 = vunpack.c.l.b16 %v1267
    %v1339 = vpack.c.b16 %v1308, %v1307
    %v1340 = vpack.c.b16 %v1310, %v1309
    %v1341 = vpack.c.b16 %v1312, %v1311
    %v1342 = vpack.c.b16 %v1314, %v1313
    %v1343 = vpack.c.b16 %v1316, %v1315
    %v1344 = vpack.c.b16 %v1318, %v1317
    %v1345 = vpack.c.b16 %v1320, %v1319
    %v1346 = vpack.c.b16 %v1322, %v1321
    %v1347 = vpack.c.b16 %v1324, %v1323
    %v1348 = vpack.c.b16 %v1326, %v1325
    %v1349 = vpack.c.b16 %v1328, %v1327
    %v1350 = vpack.c.b16 %v1330, %v1329
    %v1351 = vpack.c.b16 %v1332, %v1331
    %v1352 = vpack.c.b16 %v1334, %v1333
    %v1353 = vpack.c.b16 %v1336, %v1335
    %v1354 = vpack.c.b16 %v1338, %v1337
    %1371 = vmatprep.subr.bf16.mxu0 0
    %1372 = vmatpush1.bf16.msra.mxu0 %v1339
    %1373 = vmatprep.subr.bf16.mxu0 0
    %1374 = vmatpush1.bf16.msra.mxu0 %v1340
    %1375 = vmatprep.subr.bf16.mxu0 0
    %1376 = vmatpush1.bf16.msra.mxu0 %v1341
    %1377 = vmatprep.subr.bf16.mxu0 0
    %1378 = vmatpush1.bf16.msra.mxu0 %v1342
    %1379 = vmatprep.subr.bf16.mxu0 0
    %1380 = vmatpush1.bf16.msra.mxu0 %v1343
    %1381 = vmatprep.subr.bf16.mxu0 0
    %1382 = vmatpush1.bf16.msra.mxu0 %v1344
    %1383 = vmatprep.subr.bf16.mxu0 0
    %1384 = vmatpush1.bf16.msra.mxu0 %v1345
    %1385 = vmatprep.subr.bf16.mxu0 0
    %1386 = vmatpush1.bf16.msra.mxu0 %v1346
    %1387 = vmatprep.subr.bf16.mxu0 0
    %1388 = vmatpush1.bf16.msra.mxu0 %v1347
    %1389 = vmatprep.subr.bf16.mxu0 0
    %1390 = vmatpush1.bf16.msra.mxu0 %v1348
    %1391 = vmatprep.subr.bf16.mxu0 0
    %1392 = vmatpush1.bf16.msra.mxu0 %v1349
    %1393 = vmatprep.subr.bf16.mxu0 0
    %1394 = vmatpush1.bf16.msra.mxu0 %v1350
    %1395 = vmatprep.subr.bf16.mxu0 0
    %1396 = vmatpush1.bf16.msra.mxu0 %v1351
    %1397 = vmatprep.subr.bf16.mxu0 0
    %1398 = vmatpush1.bf16.msra.mxu0 %v1352
    %1399 = vmatprep.subr.bf16.mxu0 0
    %1400 = vmatpush1.bf16.msra.mxu0 %v1353
    %1401 = vmatprep.subr.bf16.mxu0 0
    %1402 = vmatpush1.bf16.msra.mxu0 %v1354
    %1403 = vmatprep.mubr.bf16.mxu0 %v1235
    %1404 = vmatmul.mubr.bf16.gmra.mrb[0].mxu0 %v1234
    %v1405 = vpop.f32.mrb[0].mxu0
    %v1406 = vadd.f32 %v1273, %v1405
    %v1407 = vpop.f32.mrb[0].mxu0
    %v1408 = vpop.f32.mrb[0].mxu0
    %v1409 = vadd.f32 %v1273, %v1408
    %v1410 = vpop.f32.mrb[0].mxu0
    %1411 = vdwg.mxu0
    %v1412 = vadd.f32 %v1406, %v1044
    %v1413 = vadd.f32 %v1409, %v1045
    %v1414 = vld [vmem:[%s14] sm:$0x1]
    %v1415 = vld [vmem:[%s15] sm:$0x1]
    %1416 = vadd.xlane.f32.xlu0 %v1412
    %v1417 = vpop.xlane.xlu0 %1416
    %1418 = vadd.xlane.f32.xlu0 %v1413
    %v1419 = vpop.xlane.xlu0 %1418
    %v1420 = vmul.f32 %v1417, %v75
    %v1421 = vmul.f32 %v1419, %v75
    %v1422 = vsub.f32 %v1412, %v1420
    %v1423 = vsub.f32 %v1413, %v1421
    %v1424 = vmul.f32 %v1422, %v1422
    %v1425 = vmul.f32 %v1423, %v1423
    %1426 = vadd.xlane.f32.xlu0 %v1424
    %v1427 = vpop.xlane.xlu0 %1426
    %1428 = vadd.xlane.f32.xlu0 %v1425
    %v1429 = vpop.xlane.xlu0 %1428
    %v1430 = vmul.f32 %v1427, %v75
    %v1431 = vmul.f32 %v1429, %v75
    %v1432 = vadd.f32 %v1430, 1e-12
    %v1433 = vadd.f32 %v1431, 1e-12
    %v1434 = vrsqrt.pop %v1432
    %v1435 = vrsqrt.pop %v1433
    %v1436 = vmul.f32 %v1422, %v1434
    %v1437 = vmul.f32 %v1423, %v1435
    %v1439 = vlaneseq
    %v1440 = vshrl.u32 %v1439, 7
    %v1441 = vsub.s32 0, %v1440
    %v1442 = vrot.slane %v1414, %v1441
    %v1444 = vmul.f32 %v1436, %v1442
    %v1445 = vmul.f32 %v1437, %v1442
    %v1447 = vlaneseq
    %v1448 = vshrl.u32 %v1447, 7
    %v1449 = vsub.s32 0, %v1448
    %v1450 = vrot.slane %v1415, %v1449
    %v1452 = vadd.f32 %v1444, %v1450
    %v1453 = vadd.f32 %v1445, %v1450
    %v1454 = vpack.c.bf16 %v1453, %v1452
    %s1455 = scalar_lea.vmem %s4, 192
    %v1456 = vld [vmem:[%s1455] sm:$0xff]
    %v1457 = vld [vmem:[%s1455 + $0x8] sm:$0xf]
    %v1458 = vld [vmem:[%s1455 + $0xc] sm:$0xff]
    %v1459 = vld [vmem:[%s1455 + $0x14] sm:$0xf]
    %v1460 = vld [vmem:[%s1455 + $0x18] sm:$0xff]
    %v1461 = vld [vmem:[%s1455 + $0x20] sm:$0xf]
    %v1462 = vld [vmem:[%s1455 + $0x24] sm:$0xff]
    %v1463 = vld [vmem:[%s1455 + $0x2c] sm:$0xf]
    %v1464 = vld [vmem:[%s1455 + $0x30] sm:$0xff]
    %v1465 = vld [vmem:[%s1455 + $0x38] sm:$0xf]
    %v1466 = vld [vmem:[%s1455 + $0x3c] sm:$0xff]
    %v1467 = vld [vmem:[%s1455 + $0x44] sm:$0xf]
    %v1468 = vld [vmem:[%s1455 + $0x48] sm:$0xff]
    %v1469 = vld [vmem:[%s1455 + $0x50] sm:$0xf]
    %v1470 = vld [vmem:[%s1455 + $0x54] sm:$0xff]
    %v1471 = vld [vmem:[%s1455 + $0x5c] sm:$0xf]
    %v1472 = vld [vmem:[%s1455 + $0x60] sm:$0xff]
    %v1473 = vld [vmem:[%s1455 + $0x68] sm:$0xf]
    %v1474 = vld [vmem:[%s1455 + $0x6c] sm:$0xff]
    %v1475 = vld [vmem:[%s1455 + $0x74] sm:$0xf]
    %v1476 = vld [vmem:[%s1455 + $0x78] sm:$0xff]
    %v1477 = vld [vmem:[%s1455 + $0x80] sm:$0xf]
    %v1478 = vld [vmem:[%s1455 + $0x84] sm:$0xff]
    %v1479 = vld [vmem:[%s1455 + $0x8c] sm:$0xf]
    %v1480 = vld [vmem:[%s1455 + $0x90] sm:$0xff]
    %v1481 = vld [vmem:[%s1455 + $0x98] sm:$0xf]
    %v1482 = vld [vmem:[%s1455 + $0x9c] sm:$0xff]
    %v1483 = vld [vmem:[%s1455 + $0xa4] sm:$0xf]
    %v1484 = vld [vmem:[%s1455 + $0xa8] sm:$0xff]
    %v1485 = vld [vmem:[%s1455 + $0xb0] sm:$0xf]
    %v1486 = vld [vmem:[%s1455 + $0xb4] sm:$0xff]
    %v1487 = vld [vmem:[%s1455 + $0xbc] sm:$0xf]
    %s1488 = scalar_lea.vmem %s5, 3
    %v1489 = vld [vmem:[%s1488] sm:$0x7]
    %v1491 = vlaneseq
    %v1492 = vshrl.u32 %v1491, 7
    %v1493 = vsub.s32 0, %v1492
    %v1494 = vrot.slane %v1489, %v1493
    %v1495 = vlaneseq
    %v1496 = vshrl.u32 %v1495, 7
    %v1497 = vsub.s32 1, %v1496
    %v1498 = vrot.slane %v1489, %v1497
    %v1499 = vlaneseq
    %v1500 = vshrl.u32 %v1499, 7
    %v1501 = vsub.s32 2, %v1500
    %v1502 = vrot.slane %v1489, %v1501
    %v1538 = vunpack.c.l.b16 %v1456
    %v1539 = vunpack.c.h.b16 %v1456
    %v1540 = vunpack.c.l.b16 %v1457
    %v1541 = vunpack.c.l.b16 %v1458
    %v1542 = vunpack.c.h.b16 %v1458
    %v1543 = vunpack.c.l.b16 %v1459
    %v1544 = vunpack.c.l.b16 %v1460
    %v1545 = vunpack.c.h.b16 %v1460
    %v1546 = vunpack.c.l.b16 %v1461
    %v1547 = vunpack.c.l.b16 %v1462
    %v1548 = vunpack.c.h.b16 %v1462
    %v1549 = vunpack.c.l.b16 %v1463
    %v1550 = vunpack.c.l.b16 %v1464
    %v1551 = vunpack.c.h.b16 %v1464
    %v1552 = vunpack.c.l.b16 %v1465
    %v1553 = vunpack.c.l.b16 %v1466
    %v1554 = vunpack.c.h.b16 %v1466
    %v1555 = vunpack.c.l.b16 %v1467
    %v1556 = vunpack.c.l.b16 %v1468
    %v1557 = vunpack.c.h.b16 %v1468
    %v1558 = vunpack.c.l.b16 %v1469
    %v1559 = vunpack.c.l.b16 %v1470
    %v1560 = vunpack.c.h.b16 %v1470
    %v1561 = vunpack.c.l.b16 %v1471
    %v1562 = vunpack.c.l.b16 %v1472
    %v1563 = vunpack.c.h.b16 %v1472
    %v1564 = vunpack.c.l.b16 %v1473
    %v1565 = vunpack.c.l.b16 %v1474
    %v1566 = vunpack.c.h.b16 %v1474
    %v1567 = vunpack.c.l.b16 %v1475
    %v1568 = vunpack.c.l.b16 %v1476
    %v1569 = vunpack.c.h.b16 %v1476
    %v1570 = vunpack.c.l.b16 %v1477
    %v1571 = vunpack.c.l.b16 %v1478
    %v1572 = vunpack.c.h.b16 %v1478
    %v1573 = vunpack.c.l.b16 %v1479
    %v1574 = vunpack.c.l.b16 %v1480
    %v1575 = vunpack.c.h.b16 %v1480
    %v1576 = vunpack.c.l.b16 %v1481
    %v1577 = vunpack.c.l.b16 %v1482
    %v1578 = vunpack.c.h.b16 %v1482
    %v1579 = vunpack.c.l.b16 %v1483
    %v1580 = vunpack.c.l.b16 %v1484
    %v1581 = vunpack.c.h.b16 %v1484
    %v1582 = vunpack.c.l.b16 %v1485
    %v1583 = vunpack.c.l.b16 %v1486
    %v1584 = vunpack.c.h.b16 %v1486
    %v1585 = vunpack.c.l.b16 %v1487
    %v1586 = vpack.c.b16 %v1541, %v1538
    %v1587 = vpack.c.b16 %v1542, %v1539
    %v1588 = vpack.c.b16 %v1543, %v1540
    %v1589 = vpack.c.b16 %v1547, %v1544
    %v1590 = vpack.c.b16 %v1548, %v1545
    %v1591 = vpack.c.b16 %v1549, %v1546
    %v1592 = vpack.c.b16 %v1553, %v1550
    %v1593 = vpack.c.b16 %v1554, %v1551
    %v1594 = vpack.c.b16 %v1555, %v1552
    %v1595 = vpack.c.b16 %v1559, %v1556
    %v1596 = vpack.c.b16 %v1560, %v1557
    %v1597 = vpack.c.b16 %v1561, %v1558
    %v1598 = vpack.c.b16 %v1565, %v1562
    %v1599 = vpack.c.b16 %v1566, %v1563
    %v1600 = vpack.c.b16 %v1567, %v1564
    %v1601 = vpack.c.b16 %v1571, %v1568
    %v1602 = vpack.c.b16 %v1572, %v1569
    %v1603 = vpack.c.b16 %v1573, %v1570
    %v1604 = vpack.c.b16 %v1577, %v1574
    %v1605 = vpack.c.b16 %v1578, %v1575
    %v1606 = vpack.c.b16 %v1579, %v1576
    %v1607 = vpack.c.b16 %v1583, %v1580
    %v1608 = vpack.c.b16 %v1584, %v1581
    %v1609 = vpack.c.b16 %v1585, %v1582
    %1634 = vmatprep.subr.bf16.mxu0 %v1587
    %1635 = vmatpush1.bf16.msra.mxu0 %v1586
    %1636 = vmatprep.subr.bf16.mxu0 %v1590
    %1637 = vmatpush1.bf16.msra.mxu0 %v1589
    %1638 = vmatprep.subr.bf16.mxu0 %v1593
    %1639 = vmatpush1.bf16.msra.mxu0 %v1592
    %1640 = vmatprep.subr.bf16.mxu0 %v1596
    %1641 = vmatpush1.bf16.msra.mxu0 %v1595
    %1642 = vmatprep.subr.bf16.mxu0 %v1599
    %1643 = vmatpush1.bf16.msra.mxu0 %v1598
    %1644 = vmatprep.subr.bf16.mxu0 %v1602
    %1645 = vmatpush1.bf16.msra.mxu0 %v1601
    %1646 = vmatprep.subr.bf16.mxu0 %v1605
    %1647 = vmatpush1.bf16.msra.mxu0 %v1604
    %1648 = vmatprep.subr.bf16.mxu0 %v1608
    %1649 = vmatpush1.bf16.msra.mxu0 %v1607
    %1650 = vmatprep.subr.bf16.mxu0 0
    %1651 = vmatpush1.bf16.msra.mxu0 0
    %1652 = vmatprep.subr.bf16.mxu0 0
    %1653 = vmatpush1.bf16.msra.mxu0 0
    %1654 = vmatprep.subr.bf16.mxu0 0
    %1655 = vmatpush1.bf16.msra.mxu0 0
    %1656 = vmatprep.subr.bf16.mxu0 0
    %1657 = vmatpush1.bf16.msra.mxu0 0
    %1658 = vmatprep.subr.bf16.mxu0 0
    %1659 = vmatpush1.bf16.msra.mxu0 0
    %1660 = vmatprep.subr.bf16.mxu0 0
    %1661 = vmatpush1.bf16.msra.mxu0 0
    %1662 = vmatprep.subr.bf16.mxu0 0
    %1663 = vmatpush1.bf16.msra.mxu0 0
    %1664 = vmatprep.subr.bf16.mxu0 0
    %1665 = vmatpush1.bf16.msra.mxu0 0
    %1666 = vmatprep.mubr.bf16.mxu0 0
    %1667 = vmatmul.mubr.bf16.gmra.mrb[0].mxu0 %v1454
    %v1668 = vpop.f32.mrb[0].mxu0
    %v1669 = vadd.f32 %v1494, %v1668
    %v1670 = vpop.f32.mrb[0].mxu0
    %v1671 = vadd.f32 %v1498, %v1670
    %v1672 = vpop.f32.mrb[0].mxu0
    %v1673 = vadd.f32 %v1494, %v1672
    %v1674 = vpop.f32.mrb[0].mxu0
    %v1675 = vadd.f32 %v1498, %v1674
    %1676 = vdwg.mxu0
    %1677 = vmatprep.subr.bf16.mxu0 0
    %1678 = vmatpush1.bf16.msra.mxu0 %v1588
    %1679 = vmatprep.subr.bf16.mxu0 0
    %1680 = vmatpush1.bf16.msra.mxu0 %v1591
    %1681 = vmatprep.subr.bf16.mxu0 0
    %1682 = vmatpush1.bf16.msra.mxu0 %v1594
    %1683 = vmatprep.subr.bf16.mxu0 0
    %1684 = vmatpush1.bf16.msra.mxu0 %v1597
    %1685 = vmatprep.subr.bf16.mxu0 0
    %1686 = vmatpush1.bf16.msra.mxu0 %v1600
    %1687 = vmatprep.subr.bf16.mxu0 0
    %1688 = vmatpush1.bf16.msra.mxu0 %v1603
    %1689 = vmatprep.subr.bf16.mxu0 0
    %1690 = vmatpush1.bf16.msra.mxu0 %v1606
    %1691 = vmatprep.subr.bf16.mxu0 0
    %1692 = vmatpush1.bf16.msra.mxu0 %v1609
    %1693 = vmatprep.subr.bf16.mxu0 0
    %1694 = vmatpush1.bf16.msra.mxu0 0
    %1695 = vmatprep.subr.bf16.mxu0 0
    %1696 = vmatpush1.bf16.msra.mxu0 0
    %1697 = vmatprep.subr.bf16.mxu0 0
    %1698 = vmatpush1.bf16.msra.mxu0 0
    %1699 = vmatprep.subr.bf16.mxu0 0
    %1700 = vmatpush1.bf16.msra.mxu0 0
    %1701 = vmatprep.subr.bf16.mxu0 0
    %1702 = vmatpush1.bf16.msra.mxu0 0
    %1703 = vmatprep.subr.bf16.mxu0 0
    %1704 = vmatpush1.bf16.msra.mxu0 0
    %1705 = vmatprep.subr.bf16.mxu0 0
    %1706 = vmatpush1.bf16.msra.mxu0 0
    %1707 = vmatprep.subr.bf16.mxu0 0
    %1708 = vmatpush1.bf16.msra.mxu0 0
    %1709 = vmatprep.mubr.bf16.mxu0 0
    %1710 = vmatmul.mubr.bf16.gmra.mrb[0].mxu0 %v1454
    %v1711 = vpop.f32.mrb[0].mxu0
    %v1712 = vadd.f32 %v1502, %v1711
    %v1713 = vpop.f32.mrb[0].mxu0
    %v1714 = vpop.f32.mrb[0].mxu0
    %v1715 = vadd.f32 %v1502, %v1714
    %v1716 = vpop.f32.mrb[0].mxu0
    %1717 = vdwg.mxu0
    %v1718 = vpack.c.bf16 %v1673, %v1669
    %v1719 = vpack.c.bf16 %v1675, %v1671
    %v1720 = vpack.c.bf16 %v1715, %v1712
    %v1722 = vsel %vm377, %v1718, 0
    %v1725 = vsel %vm377, %v1719, 0
    %1727 = vmatprep.subr.bf16.mxu0 0
    %1728 = vmatpush1.bf16.xpose.msra.mxu0 %v1725
    %1729 = vmatprep.subr.bf16.mxu0 0
    %1730 = vmatpush1.bf16.xpose.msra.mxu0 0
    %1731 = vmatprep.subr.bf16.mxu0 0
    %1732 = vmatpush1.bf16.xpose.msra.mxu0 0
    %1733 = vmatprep.subr.bf16.mxu0 0
    %1734 = vmatpush1.bf16.xpose.msra.mxu0 0
    %1735 = vmatprep.subr.bf16.mxu0 0
    %1736 = vmatpush1.bf16.xpose.msra.mxu0 0
    %1737 = vmatprep.subr.bf16.mxu0 0
    %1738 = vmatpush1.bf16.xpose.msra.mxu0 0
    %1739 = vmatprep.subr.bf16.mxu0 0
    %1740 = vmatpush1.bf16.xpose.msra.mxu0 0
    %1741 = vmatprep.subr.bf16.mxu0 0
    %1742 = vmatpush1.bf16.xpose.msra.mxu0 0
    %1743 = vmatprep.subr.bf16.mxu0 0
    %1744 = vmatpush1.bf16.xpose.msra.mxu0 0
    %1745 = vmatprep.subr.bf16.mxu0 0
    %1746 = vmatpush1.bf16.xpose.msra.mxu0 0
    %1747 = vmatprep.subr.bf16.mxu0 0
    %1748 = vmatpush1.bf16.xpose.msra.mxu0 0
    %1749 = vmatprep.subr.bf16.mxu0 0
    %1750 = vmatpush1.bf16.xpose.msra.mxu0 0
    %1751 = vmatprep.subr.bf16.mxu0 0
    %1752 = vmatpush1.bf16.xpose.msra.mxu0 0
    %1753 = vmatprep.subr.bf16.mxu0 0
    %1754 = vmatpush1.bf16.xpose.msra.mxu0 0
    %1755 = vmatprep.subr.bf16.mxu0 0
    %1756 = vmatpush1.bf16.xpose.msra.mxu0 0
    %1757 = vmatprep.subr.bf16.mxu0 0
    %1758 = vmatpush1.bf16.xpose.msra.mxu0 0
    %1759 = vmatprep.mubr.bf16.mxu0 0
    %1760 = vmatmul.mubr.bf16.gmra.mrb[0].mxu0 %v1722
    %v1761 = vpop.f32.mrb[0].mxu0
    %v1762 = vadd.f32 %v110, %v1761
    %v1763 = vpop.f32.mrb[0].mxu0
    %v1764 = vpop.f32.mrb[0].mxu0
    %v1765 = vadd.f32 %v111, %v1764
    %v1766 = vpop.f32.mrb[0].mxu0
    %1767 = vdwg.mxu0
    %v1768 = vsel %vm425, %v1762, -inf
    %1769 = vmax.xlane.f32.xlu0 %v1768
    %v1770 = vpop.xlane.xlu0 %1769
    %v1771 = vsel %vm425, %v1765, -inf
    %1772 = vmax.xlane.f32.xlu0 %v1771
    %v1773 = vpop.xlane.xlu0 %1772
    %v1774 = vsub.f32 %v1762, %v1770
    %v1775 = vsub.f32 %v1765, %v1773
    %v1776 = vmul.f32 %v1774, 1.442695
    %v1777 = vpow.pop %v1776
    %v1778 = vmul.f32 %v1775, 1.442695
    %v1779 = vpow.pop %v1778
    %v1780 = vsel %vm425, %v1777, 0.0
    %1781 = vadd.xlane.f32.xlu0 %v1780
    %v1782 = vpop.xlane.xlu0 %1781
    %v1783 = vsel %vm425, %v1779, 0.0
    %1784 = vadd.xlane.f32.xlu0 %v1783
    %v1785 = vpop.xlane.xlu0 %1784
    %v1786 = vrcp.pop %v1782
    %v1787 = vrcp.pop %v1785
    %v1788 = vmul.f32 %v1777, %v1786
    %v1789 = vmul.f32 %v1779, %v1787
    %v1790 = vpack.c.bf16 %v1789, %v1788
    %v1792 = vsel %vm425, %v1790, 0
    %1794 = vmatprep.subr.bf16.mxu0 0
    %1795 = vmatpush1.bf16.msra.mxu0 %v1720
    %1796 = vmatprep.subr.bf16.mxu0 0
    %1797 = vmatpush1.bf16.msra.mxu0 0
    %1798 = vmatprep.subr.bf16.mxu0 0
    %1799 = vmatpush1.bf16.msra.mxu0 0
    %1800 = vmatprep.subr.bf16.mxu0 0
    %1801 = vmatpush1.bf16.msra.mxu0 0
    %1802 = vmatprep.subr.bf16.mxu0 0
    %1803 = vmatpush1.bf16.msra.mxu0 0
    %1804 = vmatprep.subr.bf16.mxu0 0
    %1805 = vmatpush1.bf16.msra.mxu0 0
    %1806 = vmatprep.subr.bf16.mxu0 0
    %1807 = vmatpush1.bf16.msra.mxu0 0
    %1808 = vmatprep.subr.bf16.mxu0 0
    %1809 = vmatpush1.bf16.msra.mxu0 0
    %1810 = vmatprep.subr.bf16.mxu0 0
    %1811 = vmatpush1.bf16.msra.mxu0 0
    %1812 = vmatprep.subr.bf16.mxu0 0
    %1813 = vmatpush1.bf16.msra.mxu0 0
    %1814 = vmatprep.subr.bf16.mxu0 0
    %1815 = vmatpush1.bf16.msra.mxu0 0
    %1816 = vmatprep.subr.bf16.mxu0 0
    %1817 = vmatpush1.bf16.msra.mxu0 0
    %1818 = vmatprep.subr.bf16.mxu0 0
    %1819 = vmatpush1.bf16.msra.mxu0 0
    %1820 = vmatprep.subr.bf16.mxu0 0
    %1821 = vmatpush1.bf16.msra.mxu0 0
    %1822 = vmatprep.subr.bf16.mxu0 0
    %1823 = vmatpush1.bf16.msra.mxu0 0
    %1824 = vmatprep.subr.bf16.mxu0 0
    %1825 = vmatpush1.bf16.msra.mxu0 0
    %1826 = vmatprep.mubr.bf16.mxu0 0
    %1827 = vmatmul.mubr.bf16.gmra.mrb[0].mxu0 %v1792
    %v1828 = vpop.f32.mrb[0].mxu0
    %v1829 = vadd.f32 0.0, %v1828
    %v1830 = vpop.f32.mrb[0].mxu0
    %v1831 = vpop.f32.mrb[0].mxu0
    %v1832 = vadd.f32 0.0, %v1831
    %v1833 = vpop.f32.mrb[0].mxu0
    %1834 = vdwg.mxu0
    %1836 = vrot.lane.b32.xlu0 %v1718, 96
    %v1837 = vpop.permute.xlu0 %1836
    %1839 = vrot.lane.b32.xlu0 %v1719, 96
    %v1840 = vpop.permute.xlu0 %1839
    %v1842 = vsel %vm377, %v1837, 0
    %v1845 = vsel %vm377, %v1840, 0
    %1847 = vmatprep.subr.bf16.mxu0 0
    %1848 = vmatpush1.bf16.xpose.msra.mxu0 %v1845
    %1849 = vmatprep.subr.bf16.mxu0 0
    %1850 = vmatpush1.bf16.xpose.msra.mxu0 0
    %1851 = vmatprep.subr.bf16.mxu0 0
    %1852 = vmatpush1.bf16.xpose.msra.mxu0 0
    %1853 = vmatprep.subr.bf16.mxu0 0
    %1854 = vmatpush1.bf16.xpose.msra.mxu0 0
    %1855 = vmatprep.subr.bf16.mxu0 0
    %1856 = vmatpush1.bf16.xpose.msra.mxu0 0
    %1857 = vmatprep.subr.bf16.mxu0 0
    %1858 = vmatpush1.bf16.xpose.msra.mxu0 0
    %1859 = vmatprep.subr.bf16.mxu0 0
    %1860 = vmatpush1.bf16.xpose.msra.mxu0 0
    %1861 = vmatprep.subr.bf16.mxu0 0
    %1862 = vmatpush1.bf16.xpose.msra.mxu0 0
    %1863 = vmatprep.subr.bf16.mxu0 0
    %1864 = vmatpush1.bf16.xpose.msra.mxu0 0
    %1865 = vmatprep.subr.bf16.mxu0 0
    %1866 = vmatpush1.bf16.xpose.msra.mxu0 0
    %1867 = vmatprep.subr.bf16.mxu0 0
    %1868 = vmatpush1.bf16.xpose.msra.mxu0 0
    %1869 = vmatprep.subr.bf16.mxu0 0
    %1870 = vmatpush1.bf16.xpose.msra.mxu0 0
    %1871 = vmatprep.subr.bf16.mxu0 0
    %1872 = vmatpush1.bf16.xpose.msra.mxu0 0
    %1873 = vmatprep.subr.bf16.mxu0 0
    %1874 = vmatpush1.bf16.xpose.msra.mxu0 0
    %1875 = vmatprep.subr.bf16.mxu0 0
    %1876 = vmatpush1.bf16.xpose.msra.mxu0 0
    %1877 = vmatprep.subr.bf16.mxu0 0
    %1878 = vmatpush1.bf16.xpose.msra.mxu0 0
    %1879 = vmatprep.mubr.bf16.mxu0 0
    %1880 = vmatmul.mubr.bf16.gmra.mrb[0].mxu0 %v1842
    %v1881 = vpop.f32.mrb[0].mxu0
    %v1882 = vadd.f32 %v110, %v1881
    %v1883 = vpop.f32.mrb[0].mxu0
    %v1884 = vpop.f32.mrb[0].mxu0
    %v1885 = vadd.f32 %v111, %v1884
    %v1886 = vpop.f32.mrb[0].mxu0
    %1887 = vdwg.mxu0
    %v1888 = vsel %vm425, %v1882, -inf
    %1889 = vmax.xlane.f32.xlu0 %v1888
    %v1890 = vpop.xlane.xlu0 %1889
    %v1891 = vsel %vm425, %v1885, -inf
    %1892 = vmax.xlane.f32.xlu0 %v1891
    %v1893 = vpop.xlane.xlu0 %1892
    %v1894 = vsub.f32 %v1882, %v1890
    %v1895 = vsub.f32 %v1885, %v1893
    %v1896 = vmul.f32 %v1894, 1.442695
    %v1897 = vpow.pop %v1896
    %v1898 = vmul.f32 %v1895, 1.442695
    %v1899 = vpow.pop %v1898
    %v1900 = vsel %vm425, %v1897, 0.0
    %1901 = vadd.xlane.f32.xlu0 %v1900
    %v1902 = vpop.xlane.xlu0 %1901
    %v1903 = vsel %vm425, %v1899, 0.0
    %1904 = vadd.xlane.f32.xlu0 %v1903
    %v1905 = vpop.xlane.xlu0 %1904
    %v1906 = vrcp.pop %v1902
    %v1907 = vrcp.pop %v1905
    %v1908 = vmul.f32 %v1897, %v1906
    %v1909 = vmul.f32 %v1899, %v1907
    %v1910 = vpack.c.bf16 %v1909, %v1908
    %1912 = vrot.lane.b32.xlu0 %v1720, 96
    %v1913 = vpop.permute.xlu0 %1912
    %v1916 = vsel %vm425, %v1910, 0
    %1918 = vmatprep.subr.bf16.mxu0 0
    %1919 = vmatpush1.bf16.msra.mxu0 %v1913
    %1920 = vmatprep.subr.bf16.mxu0 0
    %1921 = vmatpush1.bf16.msra.mxu0 0
    %1922 = vmatprep.subr.bf16.mxu0 0
    %1923 = vmatpush1.bf16.msra.mxu0 0
    %1924 = vmatprep.subr.bf16.mxu0 0
    %1925 = vmatpush1.bf16.msra.mxu0 0
    %1926 = vmatprep.subr.bf16.mxu0 0
    %1927 = vmatpush1.bf16.msra.mxu0 0
    %1928 = vmatprep.subr.bf16.mxu0 0
    %1929 = vmatpush1.bf16.msra.mxu0 0
    %1930 = vmatprep.subr.bf16.mxu0 0
    %1931 = vmatpush1.bf16.msra.mxu0 0
    %1932 = vmatprep.subr.bf16.mxu0 0
    %1933 = vmatpush1.bf16.msra.mxu0 0
    %1934 = vmatprep.subr.bf16.mxu0 0
    %1935 = vmatpush1.bf16.msra.mxu0 0
    %1936 = vmatprep.subr.bf16.mxu0 0
    %1937 = vmatpush1.bf16.msra.mxu0 0
    %1938 = vmatprep.subr.bf16.mxu0 0
    %1939 = vmatpush1.bf16.msra.mxu0 0
    %1940 = vmatprep.subr.bf16.mxu0 0
    %1941 = vmatpush1.bf16.msra.mxu0 0
    %1942 = vmatprep.subr.bf16.mxu0 0
    %1943 = vmatpush1.bf16.msra.mxu0 0
    %1944 = vmatprep.subr.bf16.mxu0 0
    %1945 = vmatpush1.bf16.msra.mxu0 0
    %1946 = vmatprep.subr.bf16.mxu0 0
    %1947 = vmatpush1.bf16.msra.mxu0 0
    %1948 = vmatprep.subr.bf16.mxu0 0
    %1949 = vmatpush1.bf16.msra.mxu0 0
    %1950 = vmatprep.mubr.bf16.mxu0 0
    %1951 = vmatmul.mubr.bf16.gmra.mrb[0].mxu0 %v1916
    %v1952 = vpop.f32.mrb[0].mxu0
    %v1953 = vadd.f32 0.0, %v1952
    %v1954 = vpop.f32.mrb[0].mxu0
    %v1955 = vpop.f32.mrb[0].mxu0
    %v1956 = vadd.f32 0.0, %v1955
    %v1957 = vpop.f32.mrb[0].mxu0
    %1958 = vdwg.mxu0
    %1959 = vrot.lane.b32.xlu0 %v1718, 64
    %v1960 = vpop.permute.xlu0 %1959
    %1961 = vrot.lane.b32.xlu0 %v1719, 64
    %v1962 = vpop.permute.xlu0 %1961
    %v1964 = vsel %vm377, %v1960, 0
    %v1967 = vsel %vm377, %v1962, 0
    %1969 = vmatprep.subr.bf16.mxu0 0
    %1970 = vmatpush1.bf16.xpose.msra.mxu0 %v1967
    %1971 = vmatprep.subr.bf16.mxu0 0
    %1972 = vmatpush1.bf16.xpose.msra.mxu0 0
    %1973 = vmatprep.subr.bf16.mxu0 0
    %1974 = vmatpush1.bf16.xpose.msra.mxu0 0
    %1975 = vmatprep.subr.bf16.mxu0 0
    %1976 = vmatpush1.bf16.xpose.msra.mxu0 0
    %1977 = vmatprep.subr.bf16.mxu0 0
    %1978 = vmatpush1.bf16.xpose.msra.mxu0 0
    %1979 = vmatprep.subr.bf16.mxu0 0
    %1980 = vmatpush1.bf16.xpose.msra.mxu0 0
    %1981 = vmatprep.subr.bf16.mxu0 0
    %1982 = vmatpush1.bf16.xpose.msra.mxu0 0
    %1983 = vmatprep.subr.bf16.mxu0 0
    %1984 = vmatpush1.bf16.xpose.msra.mxu0 0
    %1985 = vmatprep.subr.bf16.mxu0 0
    %1986 = vmatpush1.bf16.xpose.msra.mxu0 0
    %1987 = vmatprep.subr.bf16.mxu0 0
    %1988 = vmatpush1.bf16.xpose.msra.mxu0 0
    %1989 = vmatprep.subr.bf16.mxu0 0
    %1990 = vmatpush1.bf16.xpose.msra.mxu0 0
    %1991 = vmatprep.subr.bf16.mxu0 0
    %1992 = vmatpush1.bf16.xpose.msra.mxu0 0
    %1993 = vmatprep.subr.bf16.mxu0 0
    %1994 = vmatpush1.bf16.xpose.msra.mxu0 0
    %1995 = vmatprep.subr.bf16.mxu0 0
    %1996 = vmatpush1.bf16.xpose.msra.mxu0 0
    %1997 = vmatprep.subr.bf16.mxu0 0
    %1998 = vmatpush1.bf16.xpose.msra.mxu0 0
    %1999 = vmatprep.subr.bf16.mxu0 0
    %2000 = vmatpush1.bf16.xpose.msra.mxu0 0
    %2001 = vmatprep.mubr.bf16.mxu0 0
    %2002 = vmatmul.mubr.bf16.gmra.mrb[0].mxu0 %v1964
    %v2003 = vpop.f32.mrb[0].mxu0
    %v2004 = vadd.f32 %v110, %v2003
    %v2005 = vpop.f32.mrb[0].mxu0
    %v2006 = vpop.f32.mrb[0].mxu0
    %v2007 = vadd.f32 %v111, %v2006
    %v2008 = vpop.f32.mrb[0].mxu0
    %2009 = vdwg.mxu0
    %v2010 = vsel %vm425, %v2004, -inf
    %2011 = vmax.xlane.f32.xlu0 %v2010
    %v2012 = vpop.xlane.xlu0 %2011
    %v2013 = vsel %vm425, %v2007, -inf
    %2014 = vmax.xlane.f32.xlu0 %v2013
    %v2015 = vpop.xlane.xlu0 %2014
    %v2016 = vsub.f32 %v2004, %v2012
    %v2017 = vsub.f32 %v2007, %v2015
    %v2018 = vmul.f32 %v2016, 1.442695
    %v2019 = vpow.pop %v2018
    %v2020 = vmul.f32 %v2017, 1.442695
    %v2021 = vpow.pop %v2020
    %v2022 = vsel %vm425, %v2019, 0.0
    %2023 = vadd.xlane.f32.xlu0 %v2022
    %v2024 = vpop.xlane.xlu0 %2023
    %v2025 = vsel %vm425, %v2021, 0.0
    %2026 = vadd.xlane.f32.xlu0 %v2025
    %v2027 = vpop.xlane.xlu0 %2026
    %v2028 = vrcp.pop %v2024
    %v2029 = vrcp.pop %v2027
    %v2030 = vmul.f32 %v2019, %v2028
    %v2031 = vmul.f32 %v2021, %v2029
    %v2032 = vpack.c.bf16 %v2031, %v2030
    %2033 = vrot.lane.b32.xlu0 %v1720, 64
    %v2034 = vpop.permute.xlu0 %2033
    %v2037 = vsel %vm425, %v2032, 0
    %2039 = vmatprep.subr.bf16.mxu0 0
    %2040 = vmatpush1.bf16.msra.mxu0 %v2034
    %2041 = vmatprep.subr.bf16.mxu0 0
    %2042 = vmatpush1.bf16.msra.mxu0 0
    %2043 = vmatprep.subr.bf16.mxu0 0
    %2044 = vmatpush1.bf16.msra.mxu0 0
    %2045 = vmatprep.subr.bf16.mxu0 0
    %2046 = vmatpush1.bf16.msra.mxu0 0
    %2047 = vmatprep.subr.bf16.mxu0 0
    %2048 = vmatpush1.bf16.msra.mxu0 0
    %2049 = vmatprep.subr.bf16.mxu0 0
    %2050 = vmatpush1.bf16.msra.mxu0 0
    %2051 = vmatprep.subr.bf16.mxu0 0
    %2052 = vmatpush1.bf16.msra.mxu0 0
    %2053 = vmatprep.subr.bf16.mxu0 0
    %2054 = vmatpush1.bf16.msra.mxu0 0
    %2055 = vmatprep.subr.bf16.mxu0 0
    %2056 = vmatpush1.bf16.msra.mxu0 0
    %2057 = vmatprep.subr.bf16.mxu0 0
    %2058 = vmatpush1.bf16.msra.mxu0 0
    %2059 = vmatprep.subr.bf16.mxu0 0
    %2060 = vmatpush1.bf16.msra.mxu0 0
    %2061 = vmatprep.subr.bf16.mxu0 0
    %2062 = vmatpush1.bf16.msra.mxu0 0
    %2063 = vmatprep.subr.bf16.mxu0 0
    %2064 = vmatpush1.bf16.msra.mxu0 0
    %2065 = vmatprep.subr.bf16.mxu0 0
    %2066 = vmatpush1.bf16.msra.mxu0 0
    %2067 = vmatprep.subr.bf16.mxu0 0
    %2068 = vmatpush1.bf16.msra.mxu0 0
    %2069 = vmatprep.subr.bf16.mxu0 0
    %2070 = vmatpush1.bf16.msra.mxu0 0
    %2071 = vmatprep.mubr.bf16.mxu0 0
    %2072 = vmatmul.mubr.bf16.gmra.mrb[0].mxu0 %v2037
    %v2073 = vpop.f32.mrb[0].mxu0
    %v2074 = vadd.f32 0.0, %v2073
    %v2075 = vpop.f32.mrb[0].mxu0
    %v2076 = vpop.f32.mrb[0].mxu0
    %v2077 = vadd.f32 0.0, %v2076
    %v2078 = vpop.f32.mrb[0].mxu0
    %2079 = vdwg.mxu0
    %2080 = vrot.lane.b32.xlu0 %v1718, 32
    %v2081 = vpop.permute.xlu0 %2080
    %2082 = vrot.lane.b32.xlu0 %v1719, 32
    %v2083 = vpop.permute.xlu0 %2082
    %v2085 = vsel %vm377, %v2081, 0
    %v2088 = vsel %vm377, %v2083, 0
    %2090 = vmatprep.subr.bf16.mxu0 0
    %2091 = vmatpush1.bf16.xpose.msra.mxu0 %v2088
    %2092 = vmatprep.subr.bf16.mxu0 0
    %2093 = vmatpush1.bf16.xpose.msra.mxu0 0
    %2094 = vmatprep.subr.bf16.mxu0 0
    %2095 = vmatpush1.bf16.xpose.msra.mxu0 0
    %2096 = vmatprep.subr.bf16.mxu0 0
    %2097 = vmatpush1.bf16.xpose.msra.mxu0 0
    %2098 = vmatprep.subr.bf16.mxu0 0
    %2099 = vmatpush1.bf16.xpose.msra.mxu0 0
    %2100 = vmatprep.subr.bf16.mxu0 0
    %2101 = vmatpush1.bf16.xpose.msra.mxu0 0
    %2102 = vmatprep.subr.bf16.mxu0 0
    %2103 = vmatpush1.bf16.xpose.msra.mxu0 0
    %2104 = vmatprep.subr.bf16.mxu0 0
    %2105 = vmatpush1.bf16.xpose.msra.mxu0 0
    %2106 = vmatprep.subr.bf16.mxu0 0
    %2107 = vmatpush1.bf16.xpose.msra.mxu0 0
    %2108 = vmatprep.subr.bf16.mxu0 0
    %2109 = vmatpush1.bf16.xpose.msra.mxu0 0
    %2110 = vmatprep.subr.bf16.mxu0 0
    %2111 = vmatpush1.bf16.xpose.msra.mxu0 0
    %2112 = vmatprep.subr.bf16.mxu0 0
    %2113 = vmatpush1.bf16.xpose.msra.mxu0 0
    %2114 = vmatprep.subr.bf16.mxu0 0
    %2115 = vmatpush1.bf16.xpose.msra.mxu0 0
    %2116 = vmatprep.subr.bf16.mxu0 0
    %2117 = vmatpush1.bf16.xpose.msra.mxu0 0
    %2118 = vmatprep.subr.bf16.mxu0 0
    %2119 = vmatpush1.bf16.xpose.msra.mxu0 0
    %2120 = vmatprep.subr.bf16.mxu0 0
    %2121 = vmatpush1.bf16.xpose.msra.mxu0 0
    %2122 = vmatprep.mubr.bf16.mxu0 0
    %2123 = vmatmul.mubr.bf16.gmra.mrb[0].mxu0 %v2085
    %v2124 = vpop.f32.mrb[0].mxu0
    %v2125 = vadd.f32 %v110, %v2124
    %v2126 = vpop.f32.mrb[0].mxu0
    %v2127 = vpop.f32.mrb[0].mxu0
    %v2128 = vadd.f32 %v111, %v2127
    %v2129 = vpop.f32.mrb[0].mxu0
    %2130 = vdwg.mxu0
    %v2131 = vsel %vm425, %v2125, -inf
    %2132 = vmax.xlane.f32.xlu0 %v2131
    %v2133 = vpop.xlane.xlu0 %2132
    %v2134 = vsel %vm425, %v2128, -inf
    %2135 = vmax.xlane.f32.xlu0 %v2134
    %v2136 = vpop.xlane.xlu0 %2135
    %v2137 = vsub.f32 %v2125, %v2133
    %v2138 = vsub.f32 %v2128, %v2136
    %v2139 = vmul.f32 %v2137, 1.442695
    %v2140 = vpow.pop %v2139
    %v2141 = vmul.f32 %v2138, 1.442695
    %v2142 = vpow.pop %v2141
    %v2143 = vsel %vm425, %v2140, 0.0
    %2144 = vadd.xlane.f32.xlu0 %v2143
    %v2145 = vpop.xlane.xlu0 %2144
    %v2146 = vsel %vm425, %v2142, 0.0
    %2147 = vadd.xlane.f32.xlu0 %v2146
    %v2148 = vpop.xlane.xlu0 %2147
    %v2149 = vrcp.pop %v2145
    %v2150 = vrcp.pop %v2148
    %v2151 = vmul.f32 %v2140, %v2149
    %v2152 = vmul.f32 %v2142, %v2150
    %v2153 = vpack.c.bf16 %v2152, %v2151
    %2154 = vrot.lane.b32.xlu0 %v1720, 32
    %v2155 = vpop.permute.xlu0 %2154
    %v2158 = vsel %vm425, %v2153, 0
    %2160 = vmatprep.subr.bf16.mxu0 0
    %2161 = vmatpush1.bf16.msra.mxu0 %v2155
    %2162 = vmatprep.subr.bf16.mxu0 0
    %2163 = vmatpush1.bf16.msra.mxu0 0
    %2164 = vmatprep.subr.bf16.mxu0 0
    %2165 = vmatpush1.bf16.msra.mxu0 0
    %2166 = vmatprep.subr.bf16.mxu0 0
    %2167 = vmatpush1.bf16.msra.mxu0 0
    %2168 = vmatprep.subr.bf16.mxu0 0
    %2169 = vmatpush1.bf16.msra.mxu0 0
    %2170 = vmatprep.subr.bf16.mxu0 0
    %2171 = vmatpush1.bf16.msra.mxu0 0
    %2172 = vmatprep.subr.bf16.mxu0 0
    %2173 = vmatpush1.bf16.msra.mxu0 0
    %2174 = vmatprep.subr.bf16.mxu0 0
    %2175 = vmatpush1.bf16.msra.mxu0 0
    %2176 = vmatprep.subr.bf16.mxu0 0
    %2177 = vmatpush1.bf16.msra.mxu0 0
    %2178 = vmatprep.subr.bf16.mxu0 0
    %2179 = vmatpush1.bf16.msra.mxu0 0
    %2180 = vmatprep.subr.bf16.mxu0 0
    %2181 = vmatpush1.bf16.msra.mxu0 0
    %2182 = vmatprep.subr.bf16.mxu0 0
    %2183 = vmatpush1.bf16.msra.mxu0 0
    %2184 = vmatprep.subr.bf16.mxu0 0
    %2185 = vmatpush1.bf16.msra.mxu0 0
    %2186 = vmatprep.subr.bf16.mxu0 0
    %2187 = vmatpush1.bf16.msra.mxu0 0
    %2188 = vmatprep.subr.bf16.mxu0 0
    %2189 = vmatpush1.bf16.msra.mxu0 0
    %2190 = vmatprep.subr.bf16.mxu0 0
    %2191 = vmatpush1.bf16.msra.mxu0 0
    %2192 = vmatprep.mubr.bf16.mxu0 0
    %2193 = vmatmul.mubr.bf16.gmra.mrb[0].mxu0 %v2158
    %v2194 = vpop.f32.mrb[0].mxu0
    %v2195 = vadd.f32 0.0, %v2194
    %v2196 = vpop.f32.mrb[0].mxu0
    %v2197 = vpop.f32.mrb[0].mxu0
    %v2198 = vadd.f32 0.0, %v2197
    %v2199 = vpop.f32.mrb[0].mxu0
    %2200 = vdwg.mxu0
    %2203 = vrot.lane.b32.xlu0 %v1953, 32
    %v2204 = vpop.permute.xlu0 %2203
    %2205 = vrot.lane.b32.xlu0 %v1956, 32
    %v2206 = vpop.permute.xlu0 %2205
    %2211 = vrot.lane.b32.xlu0 %v2074, 64
    %v2212 = vpop.permute.xlu0 %2211
    %2213 = vrot.lane.b32.xlu0 %v2077, 64
    %v2214 = vpop.permute.xlu0 %2213
    %2219 = vrot.lane.b32.xlu0 %v2195, 96
    %v2220 = vpop.permute.xlu0 %2219
    %2221 = vrot.lane.b32.xlu0 %v2198, 96
    %v2222 = vpop.permute.xlu0 %2221
    %v2225 = vsel %vm377, %v1829, %v2204
    %v2226 = vsel %vm377, %v1832, %v2206
    %v2227 = vsel %vm885, %v2225, %v2212
    %v2228 = vsel %vm885, %v2226, %v2214
    %v2229 = vsel %vm888, %v2227, %v2220
    %v2230 = vsel %vm888, %v2228, %v2222
    %v2231 = vpack.c.bf16 %v2230, %v2229
    %s2232 = scalar_lea.vmem %s6, 64
    %v2233 = vld [vmem:[%s2232] sm:$0xf]
    %v2234 = vld [vmem:[%s2232 + $0x4] sm:$0xf]
    %v2235 = vld [vmem:[%s2232 + $0x8] sm:$0xf]
    %v2236 = vld [vmem:[%s2232 + $0xc] sm:$0xf]
    %v2237 = vld [vmem:[%s2232 + $0x10] sm:$0xf]
    %v2238 = vld [vmem:[%s2232 + $0x14] sm:$0xf]
    %v2239 = vld [vmem:[%s2232 + $0x18] sm:$0xf]
    %v2240 = vld [vmem:[%s2232 + $0x1c] sm:$0xf]
    %v2241 = vld [vmem:[%s2232 + $0x20] sm:$0xf]
    %v2242 = vld [vmem:[%s2232 + $0x24] sm:$0xf]
    %v2243 = vld [vmem:[%s2232 + $0x28] sm:$0xf]
    %v2244 = vld [vmem:[%s2232 + $0x2c] sm:$0xf]
    %v2245 = vld [vmem:[%s2232 + $0x30] sm:$0xf]
    %v2246 = vld [vmem:[%s2232 + $0x34] sm:$0xf]
    %v2247 = vld [vmem:[%s2232 + $0x38] sm:$0xf]
    %v2248 = vld [vmem:[%s2232 + $0x3c] sm:$0xf]
    %s2249 = scalar_lea.vmem %s7, 1
    %v2250 = vld [vmem:[%s2249] sm:$0x1]
    %v2252 = vlaneseq
    %v2253 = vshrl.u32 %v2252, 7
    %v2254 = vsub.s32 0, %v2253
    %v2255 = vrot.slane %v2250, %v2254
    %v2273 = vunpack.c.l.b16 %v2233
    %v2274 = vunpack.c.l.b16 %v2234
    %v2275 = vunpack.c.l.b16 %v2235
    %v2276 = vunpack.c.l.b16 %v2236
    %v2277 = vunpack.c.l.b16 %v2237
    %v2278 = vunpack.c.l.b16 %v2238
    %v2279 = vunpack.c.l.b16 %v2239
    %v2280 = vunpack.c.l.b16 %v2240
    %v2281 = vunpack.c.l.b16 %v2241
    %v2282 = vunpack.c.l.b16 %v2242
    %v2283 = vunpack.c.l.b16 %v2243
    %v2284 = vunpack.c.l.b16 %v2244
    %v2285 = vunpack.c.l.b16 %v2245
    %v2286 = vunpack.c.l.b16 %v2246
    %v2287 = vunpack.c.l.b16 %v2247
    %v2288 = vunpack.c.l.b16 %v2248
    %v2289 = vpack.c.b16 %v2274, %v2273
    %v2290 = vpack.c.b16 %v2276, %v2275
    %v2291 = vpack.c.b16 %v2278, %v2277
    %v2292 = vpack.c.b16 %v2280, %v2279
    %v2293 = vpack.c.b16 %v2282, %v2281
    %v2294 = vpack.c.b16 %v2284, %v2283
    %v2295 = vpack.c.b16 %v2286, %v2285
    %v2296 = vpack.c.b16 %v2288, %v2287
    %2305 = vmatprep.subr.bf16.mxu0 0
    %2306 = vmatpush1.bf16.msra.mxu0 %v2289
    %2307 = vmatprep.subr.bf16.mxu0 0
    %2308 = vmatpush1.bf16.msra.mxu0 %v2290
    %2309 = vmatprep.subr.bf16.mxu0 0
    %2310 = vmatpush1.bf16.msra.mxu0 %v2291
    %2311 = vmatprep.subr.bf16.mxu0 0
    %2312 = vmatpush1.bf16.msra.mxu0 %v2292
    %2313 = vmatprep.subr.bf16.mxu0 0
    %2314 = vmatpush1.bf16.msra.mxu0 %v2293
    %2315 = vmatprep.subr.bf16.mxu0 0
    %2316 = vmatpush1.bf16.msra.mxu0 %v2294
    %2317 = vmatprep.subr.bf16.mxu0 0
    %2318 = vmatpush1.bf16.msra.mxu0 %v2295
    %2319 = vmatprep.subr.bf16.mxu0 0
    %2320 = vmatpush1.bf16.msra.mxu0 %v2296
    %2321 = vmatprep.subr.bf16.mxu0 0
    %2322 = vmatpush1.bf16.msra.mxu0 0
    %2323 = vmatprep.subr.bf16.mxu0 0
    %2324 = vmatpush1.bf16.msra.mxu0 0
    %2325 = vmatprep.subr.bf16.mxu0 0
    %2326 = vmatpush1.bf16.msra.mxu0 0
    %2327 = vmatprep.subr.bf16.mxu0 0
    %2328 = vmatpush1.bf16.msra.mxu0 0
    %2329 = vmatprep.subr.bf16.mxu0 0
    %2330 = vmatpush1.bf16.msra.mxu0 0
    %2331 = vmatprep.subr.bf16.mxu0 0
    %2332 = vmatpush1.bf16.msra.mxu0 0
    %2333 = vmatprep.subr.bf16.mxu0 0
    %2334 = vmatpush1.bf16.msra.mxu0 0
    %2335 = vmatprep.subr.bf16.mxu0 0
    %2336 = vmatpush1.bf16.msra.mxu0 0
    %2337 = vmatprep.mubr.bf16.mxu0 0
    %2338 = vmatmul.mubr.bf16.gmra.mrb[0].mxu0 %v2231
    %v2339 = vpop.f32.mrb[0].mxu0
    %v2340 = vadd.f32 %v2255, %v2339
    %v2341 = vpop.f32.mrb[0].mxu0
    %v2342 = vpop.f32.mrb[0].mxu0
    %v2343 = vadd.f32 %v2255, %v2342
    %v2344 = vpop.f32.mrb[0].mxu0
    %2345 = vdwg.mxu0
    %v2346 = vadd.f32 %v2340, %v1452
    %v2347 = vadd.f32 %v2343, %v1453
    %s2348 = scalar_lea.vmem %s8, 1
    %v2349 = vld [vmem:[%s2348] sm:$0x1]
    %s2350 = scalar_lea.vmem %s9, 1
    %v2351 = vld [vmem:[%s2350] sm:$0x1]
    %2352 = vadd.xlane.f32.xlu0 %v2346
    %v2353 = vpop.xlane.xlu0 %2352
    %2354 = vadd.xlane.f32.xlu0 %v2347
    %v2355 = vpop.xlane.xlu0 %2354
    %v2356 = vmul.f32 %v2353, %v75
    %v2357 = vmul.f32 %v2355, %v75
    %v2358 = vsub.f32 %v2346, %v2356
    %v2359 = vsub.f32 %v2347, %v2357
    %v2360 = vmul.f32 %v2358, %v2358
    %v2361 = vmul.f32 %v2359, %v2359
    %2362 = vadd.xlane.f32.xlu0 %v2360
    %v2363 = vpop.xlane.xlu0 %2362
    %2364 = vadd.xlane.f32.xlu0 %v2361
    %v2365 = vpop.xlane.xlu0 %2364
    %v2366 = vmul.f32 %v2363, %v75
    %v2367 = vmul.f32 %v2365, %v75
    %v2368 = vadd.f32 %v2366, 1e-12
    %v2369 = vadd.f32 %v2367, 1e-12
    %v2370 = vrsqrt.pop %v2368
    %v2371 = vrsqrt.pop %v2369
    %v2372 = vmul.f32 %v2358, %v2370
    %v2373 = vmul.f32 %v2359, %v2371
    %v2375 = vlaneseq
    %v2376 = vshrl.u32 %v2375, 7
    %v2377 = vsub.s32 0, %v2376
    %v2378 = vrot.slane %v2349, %v2377
    %v2380 = vmul.f32 %v2372, %v2378
    %v2381 = vmul.f32 %v2373, %v2378
    %v2383 = vlaneseq
    %v2384 = vshrl.u32 %v2383, 7
    %v2385 = vsub.s32 0, %v2384
    %v2386 = vrot.slane %v2351, %v2385
    %v2388 = vadd.f32 %v2380, %v2386
    %v2389 = vadd.f32 %v2381, %v2386
    %v2390 = vpack.c.bf16 %v2389, %v2388
    %s2391 = scalar_lea.vmem %s10, 128
    %v2392 = vld [vmem:[%s2391] sm:$0xff]
    %v2393 = vld [vmem:[%s2391 + $0x8] sm:$0xff]
    %v2394 = vld [vmem:[%s2391 + $0x10] sm:$0xff]
    %v2395 = vld [vmem:[%s2391 + $0x18] sm:$0xff]
    %v2396 = vld [vmem:[%s2391 + $0x20] sm:$0xff]
    %v2397 = vld [vmem:[%s2391 + $0x28] sm:$0xff]
    %v2398 = vld [vmem:[%s2391 + $0x30] sm:$0xff]
    %v2399 = vld [vmem:[%s2391 + $0x38] sm:$0xff]
    %v2400 = vld [vmem:[%s2391 + $0x40] sm:$0xff]
    %v2401 = vld [vmem:[%s2391 + $0x48] sm:$0xff]
    %v2402 = vld [vmem:[%s2391 + $0x50] sm:$0xff]
    %v2403 = vld [vmem:[%s2391 + $0x58] sm:$0xff]
    %v2404 = vld [vmem:[%s2391 + $0x60] sm:$0xff]
    %v2405 = vld [vmem:[%s2391 + $0x68] sm:$0xff]
    %v2406 = vld [vmem:[%s2391 + $0x70] sm:$0xff]
    %v2407 = vld [vmem:[%s2391 + $0x78] sm:$0xff]
    %s2408 = scalar_lea.vmem %s11, 2
    %v2409 = vld [vmem:[%s2408] sm:$0x3]
    %v2411 = vlaneseq
    %v2412 = vshrl.u32 %v2411, 7
    %v2413 = vsub.s32 0, %v2412
    %v2414 = vrot.slane %v2409, %v2413
    %v2415 = vlaneseq
    %v2416 = vshrl.u32 %v2415, 7
    %v2417 = vsub.s32 1, %v2416
    %v2418 = vrot.slane %v2409, %v2417
    %v2437 = vunpack.c.l.b16 %v2392
    %v2438 = vunpack.c.h.b16 %v2392
    %v2439 = vunpack.c.l.b16 %v2393
    %v2440 = vunpack.c.h.b16 %v2393
    %v2441 = vunpack.c.l.b16 %v2394
    %v2442 = vunpack.c.h.b16 %v2394
    %v2443 = vunpack.c.l.b16 %v2395
    %v2444 = vunpack.c.h.b16 %v2395
    %v2445 = vunpack.c.l.b16 %v2396
    %v2446 = vunpack.c.h.b16 %v2396
    %v2447 = vunpack.c.l.b16 %v2397
    %v2448 = vunpack.c.h.b16 %v2397
    %v2449 = vunpack.c.l.b16 %v2398
    %v2450 = vunpack.c.h.b16 %v2398
    %v2451 = vunpack.c.l.b16 %v2399
    %v2452 = vunpack.c.h.b16 %v2399
    %v2453 = vunpack.c.l.b16 %v2400
    %v2454 = vunpack.c.h.b16 %v2400
    %v2455 = vunpack.c.l.b16 %v2401
    %v2456 = vunpack.c.h.b16 %v2401
    %v2457 = vunpack.c.l.b16 %v2402
    %v2458 = vunpack.c.h.b16 %v2402
    %v2459 = vunpack.c.l.b16 %v2403
    %v2460 = vunpack.c.h.b16 %v2403
    %v2461 = vunpack.c.l.b16 %v2404
    %v2462 = vunpack.c.h.b16 %v2404
    %v2463 = vunpack.c.l.b16 %v2405
    %v2464 = vunpack.c.h.b16 %v2405
    %v2465 = vunpack.c.l.b16 %v2406
    %v2466 = vunpack.c.h.b16 %v2406
    %v2467 = vunpack.c.l.b16 %v2407
    %v2468 = vunpack.c.h.b16 %v2407
    %v2469 = vpack.c.b16 %v2439, %v2437
    %v2470 = vpack.c.b16 %v2440, %v2438
    %v2471 = vpack.c.b16 %v2443, %v2441
    %v2472 = vpack.c.b16 %v2444, %v2442
    %v2473 = vpack.c.b16 %v2447, %v2445
    %v2474 = vpack.c.b16 %v2448, %v2446
    %v2475 = vpack.c.b16 %v2451, %v2449
    %v2476 = vpack.c.b16 %v2452, %v2450
    %v2477 = vpack.c.b16 %v2455, %v2453
    %v2478 = vpack.c.b16 %v2456, %v2454
    %v2479 = vpack.c.b16 %v2459, %v2457
    %v2480 = vpack.c.b16 %v2460, %v2458
    %v2481 = vpack.c.b16 %v2463, %v2461
    %v2482 = vpack.c.b16 %v2464, %v2462
    %v2483 = vpack.c.b16 %v2467, %v2465
    %v2484 = vpack.c.b16 %v2468, %v2466
    %2501 = vmatprep.subr.bf16.mxu0 %v2470
    %2502 = vmatpush1.bf16.msra.mxu0 %v2469
    %2503 = vmatprep.subr.bf16.mxu0 %v2472
    %2504 = vmatpush1.bf16.msra.mxu0 %v2471
    %2505 = vmatprep.subr.bf16.mxu0 %v2474
    %2506 = vmatpush1.bf16.msra.mxu0 %v2473
    %2507 = vmatprep.subr.bf16.mxu0 %v2476
    %2508 = vmatpush1.bf16.msra.mxu0 %v2475
    %2509 = vmatprep.subr.bf16.mxu0 %v2478
    %2510 = vmatpush1.bf16.msra.mxu0 %v2477
    %2511 = vmatprep.subr.bf16.mxu0 %v2480
    %2512 = vmatpush1.bf16.msra.mxu0 %v2479
    %2513 = vmatprep.subr.bf16.mxu0 %v2482
    %2514 = vmatpush1.bf16.msra.mxu0 %v2481
    %2515 = vmatprep.subr.bf16.mxu0 %v2484
    %2516 = vmatpush1.bf16.msra.mxu0 %v2483
    %2517 = vmatprep.subr.bf16.mxu0 0
    %2518 = vmatpush1.bf16.msra.mxu0 0
    %2519 = vmatprep.subr.bf16.mxu0 0
    %2520 = vmatpush1.bf16.msra.mxu0 0
    %2521 = vmatprep.subr.bf16.mxu0 0
    %2522 = vmatpush1.bf16.msra.mxu0 0
    %2523 = vmatprep.subr.bf16.mxu0 0
    %2524 = vmatpush1.bf16.msra.mxu0 0
    %2525 = vmatprep.subr.bf16.mxu0 0
    %2526 = vmatpush1.bf16.msra.mxu0 0
    %2527 = vmatprep.subr.bf16.mxu0 0
    %2528 = vmatpush1.bf16.msra.mxu0 0
    %2529 = vmatprep.subr.bf16.mxu0 0
    %2530 = vmatpush1.bf16.msra.mxu0 0
    %2531 = vmatprep.subr.bf16.mxu0 0
    %2532 = vmatpush1.bf16.msra.mxu0 0
    %2533 = vmatprep.mubr.bf16.mxu0 0
    %2534 = vmatmul.mubr.bf16.gmra.mrb[0].mxu0 %v2390
    %v2535 = vpop.f32.mrb[0].mxu0
    %v2536 = vadd.f32 %v2414, %v2535
    %v2537 = vpop.f32.mrb[0].mxu0
    %v2538 = vadd.f32 %v2418, %v2537
    %v2539 = vpop.f32.mrb[0].mxu0
    %v2540 = vadd.f32 %v2414, %v2539
    %v2541 = vpop.f32.mrb[0].mxu0
    %v2542 = vadd.f32 %v2418, %v2541
    %2543 = vdwg.mxu0
    %v2544 = vmul.f32 %v2536, %v2536
    %v2545 = vmul.f32 %v2538, %v2538
    %v2546 = vmul.f32 %v2540, %v2540
    %v2547 = vmul.f32 %v2542, %v2542
    %v2548 = vmul.f32 %v2536, %v2544
    %v2549 = vmul.f32 %v2538, %v2545
    %v2550 = vmul.f32 %v2540, %v2546
    %v2551 = vmul.f32 %v2542, %v2547
    %v2552 = vmul.f32 %v2548, 0.044715
    %v2553 = vmul.f32 %v2549, 0.044715
    %v2554 = vmul.f32 %v2550, 0.044715
    %v2555 = vmul.f32 %v2551, 0.044715
    %v2556 = vadd.f32 %v2536, %v2552
    %v2557 = vadd.f32 %v2538, %v2553
    %v2558 = vadd.f32 %v2540, %v2554
    %v2559 = vadd.f32 %v2542, %v2555
    %v2560 = vmul.f32 %v2556, 0.7978846
    %v2561 = vmul.f32 %v2557, 0.7978846
    %v2562 = vmul.f32 %v2558, 0.7978846
    %v2563 = vmul.f32 %v2559, 0.7978846
    %v2564 = vtanh.pop %v2560
    %v2565 = vtanh.pop %v2561
    %v2566 = vtanh.pop %v2562
    %v2567 = vtanh.pop %v2563
    %v2568 = vadd.f32 %v2564, 1.0
    %v2569 = vadd.f32 %v2565, 1.0
    %v2570 = vadd.f32 %v2566, 1.0
    %v2571 = vadd.f32 %v2567, 1.0
    %v2572 = vmul.f32 %v2568, 0.5
    %v2573 = vmul.f32 %v2569, 0.5
    %v2574 = vmul.f32 %v2570, 0.5
    %v2575 = vmul.f32 %v2571, 0.5
    %v2576 = vmul.f32 %v2536, %v2572
    %v2577 = vmul.f32 %v2538, %v2573
    %v2578 = vmul.f32 %v2540, %v2574
    %v2579 = vmul.f32 %v2542, %v2575
    %v2580 = vpack.c.bf16 %v2578, %v2576
    %v2581 = vpack.c.bf16 %v2579, %v2577
    %s2582 = scalar_lea.vmem %s12, 128
    %v2583 = vld [vmem:[%s2582] sm:$0xf]
    %v2584 = vld [vmem:[%s2582 + $0x4] sm:$0xf]
    %v2585 = vld [vmem:[%s2582 + $0x8] sm:$0xf]
    %v2586 = vld [vmem:[%s2582 + $0xc] sm:$0xf]
    %v2587 = vld [vmem:[%s2582 + $0x10] sm:$0xf]
    %v2588 = vld [vmem:[%s2582 + $0x14] sm:$0xf]
    %v2589 = vld [vmem:[%s2582 + $0x18] sm:$0xf]
    %v2590 = vld [vmem:[%s2582 + $0x1c] sm:$0xf]
    %v2591 = vld [vmem:[%s2582 + $0x20] sm:$0xf]
    %v2592 = vld [vmem:[%s2582 + $0x24] sm:$0xf]
    %v2593 = vld [vmem:[%s2582 + $0x28] sm:$0xf]
    %v2594 = vld [vmem:[%s2582 + $0x2c] sm:$0xf]
    %v2595 = vld [vmem:[%s2582 + $0x30] sm:$0xf]
    %v2596 = vld [vmem:[%s2582 + $0x34] sm:$0xf]
    %v2597 = vld [vmem:[%s2582 + $0x38] sm:$0xf]
    %v2598 = vld [vmem:[%s2582 + $0x3c] sm:$0xf]
    %v2599 = vld [vmem:[%s2582 + $0x40] sm:$0xf]
    %v2600 = vld [vmem:[%s2582 + $0x44] sm:$0xf]
    %v2601 = vld [vmem:[%s2582 + $0x48] sm:$0xf]
    %v2602 = vld [vmem:[%s2582 + $0x4c] sm:$0xf]
    %v2603 = vld [vmem:[%s2582 + $0x50] sm:$0xf]
    %v2604 = vld [vmem:[%s2582 + $0x54] sm:$0xf]
    %v2605 = vld [vmem:[%s2582 + $0x58] sm:$0xf]
    %v2606 = vld [vmem:[%s2582 + $0x5c] sm:$0xf]
    %v2607 = vld [vmem:[%s2582 + $0x60] sm:$0xf]
    %v2608 = vld [vmem:[%s2582 + $0x64] sm:$0xf]
    %v2609 = vld [vmem:[%s2582 + $0x68] sm:$0xf]
    %v2610 = vld [vmem:[%s2582 + $0x6c] sm:$0xf]
    %v2611 = vld [vmem:[%s2582 + $0x70] sm:$0xf]
    %v2612 = vld [vmem:[%s2582 + $0x74] sm:$0xf]
    %v2613 = vld [vmem:[%s2582 + $0x78] sm:$0xf]
    %v2614 = vld [vmem:[%s2582 + $0x7c] sm:$0xf]
    %s2615 = scalar_lea.vmem %s13, 1
    %v2616 = vld [vmem:[%s2615] sm:$0x1]
    %v2618 = vlaneseq
    %v2619 = vshrl.u32 %v2618, 7
    %v2620 = vsub.s32 0, %v2619
    %v2621 = vrot.slane %v2616, %v2620
    %v2655 = vunpack.c.l.b16 %v2583
    %v2656 = vunpack.c.l.b16 %v2584
    %v2657 = vunpack.c.l.b16 %v2585
    %v2658 = vunpack.c.l.b16 %v2586
    %v2659 = vunpack.c.l.b16 %v2587
    %v2660 = vunpack.c.l.b16 %v2588
    %v2661 = vunpack.c.l.b16 %v2589
    %v2662 = vunpack.c.l.b16 %v2590
    %v2663 = vunpack.c.l.b16 %v2591
    %v2664 = vunpack.c.l.b16 %v2592
    %v2665 = vunpack.c.l.b16 %v2593
    %v2666 = vunpack.c.l.b16 %v2594
    %v2667 = vunpack.c.l.b16 %v2595
    %v2668 = vunpack.c.l.b16 %v2596
    %v2669 = vunpack.c.l.b16 %v2597
    %v2670 = vunpack.c.l.b16 %v2598
    %v2671 = vunpack.c.l.b16 %v2599
    %v2672 = vunpack.c.l.b16 %v2600
    %v2673 = vunpack.c.l.b16 %v2601
    %v2674 = vunpack.c.l.b16 %v2602
    %v2675 = vunpack.c.l.b16 %v2603
    %v2676 = vunpack.c.l.b16 %v2604
    %v2677 = vunpack.c.l.b16 %v2605
    %v2678 = vunpack.c.l.b16 %v2606
    %v2679 = vunpack.c.l.b16 %v2607
    %v2680 = vunpack.c.l.b16 %v2608
    %v2681 = vunpack.c.l.b16 %v2609
    %v2682 = vunpack.c.l.b16 %v2610
    %v2683 = vunpack.c.l.b16 %v2611
    %v2684 = vunpack.c.l.b16 %v2612
    %v2685 = vunpack.c.l.b16 %v2613
    %v2686 = vunpack.c.l.b16 %v2614
    %v2687 = vpack.c.b16 %v2656, %v2655
    %v2688 = vpack.c.b16 %v2658, %v2657
    %v2689 = vpack.c.b16 %v2660, %v2659
    %v2690 = vpack.c.b16 %v2662, %v2661
    %v2691 = vpack.c.b16 %v2664, %v2663
    %v2692 = vpack.c.b16 %v2666, %v2665
    %v2693 = vpack.c.b16 %v2668, %v2667
    %v2694 = vpack.c.b16 %v2670, %v2669
    %v2695 = vpack.c.b16 %v2672, %v2671
    %v2696 = vpack.c.b16 %v2674, %v2673
    %v2697 = vpack.c.b16 %v2676, %v2675
    %v2698 = vpack.c.b16 %v2678, %v2677
    %v2699 = vpack.c.b16 %v2680, %v2679
    %v2700 = vpack.c.b16 %v2682, %v2681
    %v2701 = vpack.c.b16 %v2684, %v2683
    %v2702 = vpack.c.b16 %v2686, %v2685
    %2719 = vmatprep.subr.bf16.mxu0 0
    %2720 = vmatpush1.bf16.msra.mxu0 %v2687
    %2721 = vmatprep.subr.bf16.mxu0 0
    %2722 = vmatpush1.bf16.msra.mxu0 %v2688
    %2723 = vmatprep.subr.bf16.mxu0 0
    %2724 = vmatpush1.bf16.msra.mxu0 %v2689
    %2725 = vmatprep.subr.bf16.mxu0 0
    %2726 = vmatpush1.bf16.msra.mxu0 %v2690
    %2727 = vmatprep.subr.bf16.mxu0 0
    %2728 = vmatpush1.bf16.msra.mxu0 %v2691
    %2729 = vmatprep.subr.bf16.mxu0 0
    %2730 = vmatpush1.bf16.msra.mxu0 %v2692
    %2731 = vmatprep.subr.bf16.mxu0 0
    %2732 = vmatpush1.bf16.msra.mxu0 %v2693
    %2733 = vmatprep.subr.bf16.mxu0 0
    %2734 = vmatpush1.bf16.msra.mxu0 %v2694
    %2735 = vmatprep.subr.bf16.mxu0 0
    %2736 = vmatpush1.bf16.msra.mxu0 %v2695
    %2737 = vmatprep.subr.bf16.mxu0 0
    %2738 = vmatpush1.bf16.msra.mxu0 %v2696
    %2739 = vmatprep.subr.bf16.mxu0 0
    %2740 = vmatpush1.bf16.msra.mxu0 %v2697
    %2741 = vmatprep.subr.bf16.mxu0 0
    %2742 = vmatpush1.bf16.msra.mxu0 %v2698
    %2743 = vmatprep.subr.bf16.mxu0 0
    %2744 = vmatpush1.bf16.msra.mxu0 %v2699
    %2745 = vmatprep.subr.bf16.mxu0 0
    %2746 = vmatpush1.bf16.msra.mxu0 %v2700
    %2747 = vmatprep.subr.bf16.mxu0 0
    %2748 = vmatpush1.bf16.msra.mxu0 %v2701
    %2749 = vmatprep.subr.bf16.mxu0 0
    %2750 = vmatpush1.bf16.msra.mxu0 %v2702
    %2751 = vmatprep.mubr.bf16.mxu0 %v2581
    %2752 = vmatmul.mubr.bf16.gmra.mrb[0].mxu0 %v2580
    %v2753 = vpop.f32.mrb[0].mxu0
    %v2754 = vadd.f32 %v2621, %v2753
    %v2755 = vpop.f32.mrb[0].mxu0
    %v2756 = vpop.f32.mrb[0].mxu0
    %v2757 = vadd.f32 %v2621, %v2756
    %v2758 = vpop.f32.mrb[0].mxu0
    %2759 = vdwg.mxu0
    %v2760 = vadd.f32 %v2754, %v2388
    %v2761 = vadd.f32 %v2757, %v2389
    %s2762 = scalar_lea.vmem %s14, 1
    %v2763 = vld [vmem:[%s2762] sm:$0x1]
    %s2764 = scalar_lea.vmem %s15, 1
    %v2765 = vld [vmem:[%s2764] sm:$0x1]
    %2766 = vadd.xlane.f32.xlu0 %v2760
    %v2767 = vpop.xlane.xlu0 %2766
    %2768 = vadd.xlane.f32.xlu0 %v2761
    %v2769 = vpop.xlane.xlu0 %2768
    %v2770 = vmul.f32 %v2767, %v75
    %v2771 = vmul.f32 %v2769, %v75
    %v2772 = vsub.f32 %v2760, %v2770
    %v2773 = vsub.f32 %v2761, %v2771
    %v2774 = vmul.f32 %v2772, %v2772
    %v2775 = vmul.f32 %v2773, %v2773
    %2776 = vadd.xlane.f32.xlu0 %v2774
    %v2777 = vpop.xlane.xlu0 %2776
    %2778 = vadd.xlane.f32.xlu0 %v2775
    %v2779 = vpop.xlane.xlu0 %2778
    %v2780 = vmul.f32 %v2777, %v75
    %v2781 = vmul.f32 %v2779, %v75
    %v2782 = vadd.f32 %v2780, 1e-12
    %v2783 = vadd.f32 %v2781, 1e-12
    %v2784 = vrsqrt.pop %v2782
    %v2785 = vrsqrt.pop %v2783
    %v2786 = vmul.f32 %v2772, %v2784
    %v2787 = vmul.f32 %v2773, %v2785
    %v2789 = vlaneseq
    %v2790 = vshrl.u32 %v2789, 7
    %v2791 = vsub.s32 0, %v2790
    %v2792 = vrot.slane %v2763, %v2791
    %v2794 = vmul.f32 %v2786, %v2792
    %v2795 = vmul.f32 %v2787, %v2792
    %v2797 = vlaneseq
    %v2798 = vshrl.u32 %v2797, 7
    %v2799 = vsub.s32 0, %v2798
    %v2800 = vrot.slane %v2765, %v2799
    %v2802 = vadd.f32 %v2794, %v2800
    %v2803 = vadd.f32 %v2795, %v2800
    %v2804 = vlaneseq
    %v2805 = vand.u32 %v2804, 127
    %v2806 = vlaneseq
    %v2807 = vshrl.u32 %v2806, 7
    %v2808 = vmul.u32 %v2807, 8
    %vm2809 = vcmp.eq.s32.totalorder %v2805, %v2808
    %v2810 = vsel %vm2809, 1, 0
    %v2811 = vcvt.s32.f32 %v2810
    %v2813 = vsel %vm425, %v2811, 0
    %2815 = vmatprep.subr.mxu0 0.0
    %2816 = vmatpush1.msra.mxu0 %v2802
    %2817 = vmatprep.subr.mxu0 0.0
    %2818 = vmatpush1.msra.mxu0 %v2803
    %2819 = vmatprep.subr.mxu0 0.0
    %2820 = vmatpush1.msra.mxu0 0.0
    %2821 = vmatprep.subr.mxu0 0.0
    %2822 = vmatpush1.msra.mxu0 0.0
    %2823 = vmatprep.subr.mxu0 0.0
    %2824 = vmatpush1.msra.mxu0 0.0
    %2825 = vmatprep.subr.mxu0 0.0
    %2826 = vmatpush1.msra.mxu0 0.0
    %2827 = vmatprep.subr.mxu0 0.0
    %2828 = vmatpush1.msra.mxu0 0.0
    %2829 = vmatprep.subr.mxu0 0.0
    %2830 = vmatpush1.msra.mxu0 0.0
    %2831 = vmatprep.subr.mxu0 0.0
    %2832 = vmatpush1.msra.mxu0 0.0
    %2833 = vmatprep.subr.mxu0 0.0
    %2834 = vmatpush1.msra.mxu0 0.0
    %2835 = vmatprep.subr.mxu0 0.0
    %2836 = vmatpush1.msra.mxu0 0.0
    %2837 = vmatprep.subr.mxu0 0.0
    %2838 = vmatpush1.msra.mxu0 0.0
    %2839 = vmatprep.subr.mxu0 0.0
    %2840 = vmatpush1.msra.mxu0 0.0
    %2841 = vmatprep.subr.mxu0 0.0
    %2842 = vmatpush1.msra.mxu0 0.0
    %2843 = vmatprep.subr.mxu0 0.0
    %2844 = vmatpush1.msra.mxu0 0.0
    %2845 = vmatprep.subr.mxu0 0.0
    %2846 = vmatpush1.msra.mxu0 0.0
    %2847 = vmatprep.subr.mxu0 0.0
    %2848 = vmatpush1.msra.mxu0 0.0
    %2849 = vmatprep.subr.mxu0 0.0
    %2850 = vmatpush1.msra.mxu0 0.0
    %2851 = vmatprep.subr.mxu0 0.0
    %2852 = vmatpush1.msra.mxu0 0.0
    %2853 = vmatprep.subr.mxu0 0.0
    %2854 = vmatpush1.msra.mxu0 0.0
    %2855 = vmatprep.subr.mxu0 0.0
    %2856 = vmatpush1.msra.mxu0 0.0
    %2857 = vmatprep.subr.mxu0 0.0
    %2858 = vmatpush1.msra.mxu0 0.0
    %2859 = vmatprep.subr.mxu0 0.0
    %2860 = vmatpush1.msra.mxu0 0.0
    %2861 = vmatprep.subr.mxu0 0.0
    %2862 = vmatpush1.msra.mxu0 0.0
    %2863 = vmatprep.subr.mxu0 0.0
    %2864 = vmatpush1.msra.mxu0 0.0
    %2865 = vmatprep.subr.mxu0 0.0
    %2866 = vmatpush1.msra.mxu0 0.0
    %2867 = vmatprep.subr.mxu0 0.0
    %2868 = vmatpush1.msra.mxu0 0.0
    %2869 = vmatprep.subr.mxu0 0.0
    %2870 = vmatpush1.msra.mxu0 0.0
    %2871 = vmatprep.subr.mxu0 0.0
    %2872 = vmatpush1.msra.mxu0 0.0
    %2873 = vmatprep.subr.mxu0 0.0
    %2874 = vmatpush1.msra.mxu0 0.0
    %2875 = vmatprep.subr.mxu0 0.0
    %2876 = vmatpush1.msra.mxu0 0.0
    %2877 = vmatprep.subr.mxu0 0.0
    %2878 = vmatpush1.msra.mxu0 0.0
    %2879 = vmatprep.mubr.f32.mxu0 0.0
    %2880 = vmatmul.mubr.f32.gmra.mrb[0].mxu0 %v2813
    %v2881 = vpop.f32.mrb[0].mxu0
    %v2882 = vadd.f32 0.0, %v2881
    %v2883 = vpop.f32.mrb[0].mxu0
    %2884 = vdwg.mxu0
    %v2885 = vpack.c.bf16 %v2882, %v2882
    %v2886 = vld [vmem:[%s16] sm:$0xf]
    %v2887 = vld [vmem:[%s16 + $0x4] sm:$0xf]
    %v2888 = vld [vmem:[%s16 + $0x8] sm:$0xf]
    %v2889 = vld [vmem:[%s16 + $0xc] sm:$0xf]
    %v2890 = vld [vmem:[%s16 + $0x10] sm:$0xf]
    %v2891 = vld [vmem:[%s16 + $0x14] sm:$0xf]
    %v2892 = vld [vmem:[%s16 + $0x18] sm:$0xf]
    %v2893 = vld [vmem:[%s16 + $0x1c] sm:$0xf]
    %v2894 = vld [vmem:[%s16 + $0x20] sm:$0xf]
    %v2895 = vld [vmem:[%s16 + $0x24] sm:$0xf]
    %v2896 = vld [vmem:[%s16 + $0x28] sm:$0xf]
    %v2897 = vld [vmem:[%s16 + $0x2c] sm:$0xf]
    %v2898 = vld [vmem:[%s16 + $0x30] sm:$0xf]
    %v2899 = vld [vmem:[%s16 + $0x34] sm:$0xf]
    %v2900 = vld [vmem:[%s16 + $0x38] sm:$0xf]
    %v2901 = vld [vmem:[%s16 + $0x3c] sm:$0xf]
    %v2902 = vld [vmem:[%s17] sm:$0x1]
    %v2904 = vlaneseq
    %v2905 = vshrl.u32 %v2904, 7
    %v2906 = vsub.s32 0, %v2905
    %v2907 = vrot.slane %v2902, %v2906
    %v2925 = vunpack.c.l.b16 %v2886
    %v2926 = vunpack.c.l.b16 %v2887
    %v2927 = vunpack.c.l.b16 %v2888
    %v2928 = vunpack.c.l.b16 %v2889
    %v2929 = vunpack.c.l.b16 %v2890
    %v2930 = vunpack.c.l.b16 %v2891
    %v2931 = vunpack.c.l.b16 %v2892
    %v2932 = vunpack.c.l.b16 %v2893
    %v2933 = vunpack.c.l.b16 %v2894
    %v2934 = vunpack.c.l.b16 %v2895
    %v2935 = vunpack.c.l.b16 %v2896
    %v2936 = vunpack.c.l.b16 %v2897
    %v2937 = vunpack.c.l.b16 %v2898
    %v2938 = vunpack.c.l.b16 %v2899
    %v2939 = vunpack.c.l.b16 %v2900
    %v2940 = vunpack.c.l.b16 %v2901
    %v2941 = vpack.c.b16 %v2926, %v2925
    %v2942 = vpack.c.b16 %v2928, %v2927
    %v2943 = vpack.c.b16 %v2930, %v2929
    %v2944 = vpack.c.b16 %v2932, %v2931
    %v2945 = vpack.c.b16 %v2934, %v2933
    %v2946 = vpack.c.b16 %v2936, %v2935
    %v2947 = vpack.c.b16 %v2938, %v2937
    %v2948 = vpack.c.b16 %v2940, %v2939
    %2957 = vmatprep.subr.bf16.mxu0 0
    %2958 = vmatpush1.bf16.msra.mxu0 %v2941
    %2959 = vmatprep.subr.bf16.mxu0 0
    %2960 = vmatpush1.bf16.msra.mxu0 %v2942
    %2961 = vmatprep.subr.bf16.mxu0 0
    %2962 = vmatpush1.bf16.msra.mxu0 %v2943
    %2963 = vmatprep.subr.bf16.mxu0 0
    %2964 = vmatpush1.bf16.msra.mxu0 %v2944
    %2965 = vmatprep.subr.bf16.mxu0 0
    %2966 = vmatpush1.bf16.msra.mxu0 %v2945
    %2967 = vmatprep.subr.bf16.mxu0 0
    %2968 = vmatpush1.bf16.msra.mxu0 %v2946
    %2969 = vmatprep.subr.bf16.mxu0 0
    %2970 = vmatpush1.bf16.msra.mxu0 %v2947
    %2971 = vmatprep.subr.bf16.mxu0 0
    %2972 = vmatpush1.bf16.msra.mxu0 %v2948
    %2973 = vmatprep.subr.bf16.mxu0 0
    %2974 = vmatpush1.bf16.msra.mxu0 0
    %2975 = vmatprep.subr.bf16.mxu0 0
    %2976 = vmatpush1.bf16.msra.mxu0 0
    %2977 = vmatprep.subr.bf16.mxu0 0
    %2978 = vmatpush1.bf16.msra.mxu0 0
    %2979 = vmatprep.subr.bf16.mxu0 0
    %2980 = vmatpush1.bf16.msra.mxu0 0
    %2981 = vmatprep.subr.bf16.mxu0 0
    %2982 = vmatpush1.bf16.msra.mxu0 0
    %2983 = vmatprep.subr.bf16.mxu0 0
    %2984 = vmatpush1.bf16.msra.mxu0 0
    %2985 = vmatprep.subr.bf16.mxu0 0
    %2986 = vmatpush1.bf16.msra.mxu0 0
    %2987 = vmatprep.subr.bf16.mxu0 0
    %2988 = vmatpush1.bf16.msra.mxu0 0
    %2989 = vmatprep.mubr.bf16.mxu0 0
    %2990 = vmatmul.mubr.bf16.gmra.mrb[0].mxu0 %v2885
    %v2991 = vpop.f32.mrb[0].mxu0
    %v2992 = vadd.f32 %v2907, %v2991
    %v2993 = vpop.f32.mrb[0].mxu0
    %v2994 = vpop.f32.mrb[0].mxu0
    %v2995 = vpop.f32.mrb[0].mxu0
    %2996 = vdwg.mxu0
    %v2997 = vtanh.pop %v2992
    %v2998 = vpack.c.bf16 %v2997, %v2997
    %v2999 = vld [vmem:[%s18] sm:$0xf]
    %v3000 = vld [vmem:[%s18 + $0x4] sm:$0xf]
    %v3001 = vld [vmem:[%s18 + $0x8] sm:$0xf]
    %v3002 = vld [vmem:[%s18 + $0xc] sm:$0xf]
    %v3003 = vld [vmem:[%s18 + $0x10] sm:$0xf]
    %v3004 = vld [vmem:[%s18 + $0x14] sm:$0xf]
    %v3005 = vld [vmem:[%s18 + $0x18] sm:$0xf]
    %v3006 = vld [vmem:[%s18 + $0x1c] sm:$0xf]
    %v3007 = vld [vmem:[%s18 + $0x20] sm:$0xf]
    %v3008 = vld [vmem:[%s18 + $0x24] sm:$0xf]
    %v3009 = vld [vmem:[%s18 + $0x28] sm:$0xf]
    %v3010 = vld [vmem:[%s18 + $0x2c] sm:$0xf]
    %v3011 = vld [vmem:[%s18 + $0x30] sm:$0xf]
    %v3012 = vld [vmem:[%s18 + $0x34] sm:$0xf]
    %v3013 = vld [vmem:[%s18 + $0x38] sm:$0xf]
    %v3014 = vld [vmem:[%s18 + $0x3c] sm:$0xf]
    %v3015 = vld [vmem:[%s19] sm:$0x1]
    %v3017 = vlaneseq
    %v3018 = vshrl.u32 %v3017, 7
    %v3019 = vsub.s32 0, %v3018
    %v3020 = vrot.slane %v3015, %v3019
    %v3038 = vunpack.c.l.b16 %v2999
    %v3039 = vunpack.c.l.b16 %v3000
    %v3040 = vunpack.c.l.b16 %v3001
    %v3041 = vunpack.c.l.b16 %v3002
    %v3042 = vunpack.c.l.b16 %v3003
    %v3043 = vunpack.c.l.b16 %v3004
    %v3044 = vunpack.c.l.b16 %v3005
    %v3045 = vunpack.c.l.b16 %v3006
    %v3046 = vunpack.c.l.b16 %v3007
    %v3047 = vunpack.c.l.b16 %v3008
    %v3048 = vunpack.c.l.b16 %v3009
    %v3049 = vunpack.c.l.b16 %v3010
    %v3050 = vunpack.c.l.b16 %v3011
    %v3051 = vunpack.c.l.b16 %v3012
    %v3052 = vunpack.c.l.b16 %v3013
    %v3053 = vunpack.c.l.b16 %v3014
    %v3054 = vpack.c.b16 %v3039, %v3038
    %v3055 = vpack.c.b16 %v3041, %v3040
    %v3056 = vpack.c.b16 %v3043, %v3042
    %v3057 = vpack.c.b16 %v3045, %v3044
    %v3058 = vpack.c.b16 %v3047, %v3046
    %v3059 = vpack.c.b16 %v3049, %v3048
    %v3060 = vpack.c.b16 %v3051, %v3050
    %v3061 = vpack.c.b16 %v3053, %v3052
    %3070 = vmatprep.subr.bf16.mxu0 0
    %3071 = vmatpush1.bf16.msra.mxu0 %v3054
    %3072 = vmatprep.subr.bf16.mxu0 0
    %3073 = vmatpush1.bf16.msra.mxu0 %v3055
    %3074 = vmatprep.subr.bf16.mxu0 0
    %3075 = vmatpush1.bf16.msra.mxu0 %v3056
    %3076 = vmatprep.subr.bf16.mxu0 0
    %3077 = vmatpush1.bf16.msra.mxu0 %v3057
    %3078 = vmatprep.subr.bf16.mxu0 0
    %3079 = vmatpush1.bf16.msra.mxu0 %v3058
    %3080 = vmatprep.subr.bf16.mxu0 0
    %3081 = vmatpush1.bf16.msra.mxu0 %v3059
    %3082 = vmatprep.subr.bf16.mxu0 0
    %3083 = vmatpush1.bf16.msra.mxu0 %v3060
    %3084 = vmatprep.subr.bf16.mxu0 0
    %3085 = vmatpush1.bf16.msra.mxu0 %v3061
    %3086 = vmatprep.subr.bf16.mxu0 0
    %3087 = vmatpush1.bf16.msra.mxu0 0
    %3088 = vmatprep.subr.bf16.mxu0 0
    %3089 = vmatpush1.bf16.msra.mxu0 0
    %3090 = vmatprep.subr.bf16.mxu0 0
    %3091 = vmatpush1.bf16.msra.mxu0 0
    %3092 = vmatprep.subr.bf16.mxu0 0
    %3093 = vmatpush1.bf16.msra.mxu0 0
    %3094 = vmatprep.subr.bf16.mxu0 0
    %3095 = vmatpush1.bf16.msra.mxu0 0
    %3096 = vmatprep.subr.bf16.mxu0 0
    %3097 = vmatpush1.bf16.msra.mxu0 0
    %3098 = vmatprep.subr.bf16.mxu0 0
    %3099 = vmatpush1.bf16.msra.mxu0 0
    %3100 = vmatprep.subr.bf16.mxu0 0
    %3101 = vmatpush1.bf16.msra.mxu0 0
    %3102 = vmatprep.mubr.bf16.mxu0 0
    %3103 = vmatmul.mubr.bf16.gmra.mrb[0].mxu0 %v2998
    %v3104 = vpop.f32.mrb[0].mxu0
    %v3105 = vadd.f32 %v3020, %v3104
    %v3106 = vpop.f32.mrb[0].mxu0
    %v3107 = vpop.f32.mrb[0].mxu0
    %v3108 = vpop.f32.mrb[0].mxu0
    %3109 = vdwg.mxu0
    %3110 = vst [vmem:[#allocation2] sm:$0x3] %v3105
    // Predicated region
    $region82: #{bert_classify_forward.1} parent=1 // pred_check
      _
    $region83: #{bert_classify_forward.1} parent=1 // pred_check_branch
      %3112 = sbr.rel (0) target = $region85
    $region84: #{bert_classify_forward.1} parent=1 // pred_region
      %s3114 = ssub.s32 32, 32
      %3115 = vsyncadd [#allocation3], %s3114
      %s3117 = sshll.u32 [#allocation2], 4
      %s3118 = int_to_ptr.vmem [resolvable:$true] %s3117
      %3120 = dma.vmem_to_hbm [thread:$0]  %s3118, 32, %s20, [#allocation3]
    $region85: #{bert_classify_forward.1} parent=1 // pred_fallthru
      _
    // Predicated region
    $region86: #{bert_classify_forward.1} parent=1 // pred_check
      _
    $region87: #{bert_classify_forward.1} parent=1 // pred_check_branch
      %3122 = sbr.rel (0) target = $region89
    $region88: #{bert_classify_forward.1} parent=1 // pred_region
      %3123 = dma.done [#allocation3], 32
    $region89: #{bert_classify_forward.1} parent=1 // pred_fallthru
      _
    %3124 = vsyncpa [#allocation3], 1

</llo_original>
